<compile_context>
chip_gen: v5e
topology: v5e:2x2
jax: 0.10.0
libtpu: 0.0.40
codegen_flags: <defaults>
</compile_context>

<pallas_src>
import math
from functools import partial

import jax
import jax.numpy as jnp
from jax.experimental import pallas as pl
from jax.experimental.pallas import tpu as pltpu

_MXU_DTYPE = jnp.bfloat16   # MXU operand dtype; accumulation is always f32.


# ----------------------------------------------------------------------------- in-kernel helpers

def _gelu(x):
    # tanh-approx GELU: the transcendental runs on the EUP instead of ~12 VALU ops/elem
    # for an erf polynomial on the VPU.
    c = 0.7978845608028654  # sqrt(2/pi)
    return 0.5 * x * (1.0 + jnp.tanh(c * (x + 0.044715 * (x * x * x))))


def _layernorm(x, g, b, eps=1e-5):
    mu = jnp.mean(x, axis=-1, keepdims=True)
    xc = x - mu
    var = jnp.mean(xc * xc, axis=-1, keepdims=True)
    return xc * jax.lax.rsqrt(var + eps) * g + b


def _softmax_lastdim(s):
    s = s - jnp.max(s, axis=-1, keepdims=True)
    e = jnp.exp(s)
    # approximate reciprocal goes to the EUP (free bundle slot) instead of a VPU divide
    return e * pl.reciprocal(jnp.sum(e, axis=-1, keepdims=True), approx=True)


def _wspec(w):
    # Full-array weight block with a constant block index -> stays resident in VMEM
    # across all grid steps (no per-step re-DMA).
    return pl.BlockSpec(w.shape, lambda b, _n=w.ndim: (0,) * _n)


# ----------------------------------------------------------------------------- fused TransformerBlock

def _tblock_kernel(x_ref,
                   wq_ref, bq_ref, wk_ref, bk_ref, wv_ref, bv_ref, wo_ref, bo_ref,
                   w1_ref, b1_ref, w2_ref, b2_ref,
                   g1_ref, be1_ref, g2_ref, be2_ref,
                   o_ref, *, head_num, atten_dim):
    # One batch element per grid point; the whole TransformerBlock in one kernel.
    # TODO(synk): the `Attention` submodule source was not provided; standard multi-head
    # scaled-dot-product attention (q/k/v/out linear projections) is assumed; dropout = identity.
    x = x_ref[0]                                    # (L, D) f32; residual for BOTH norms (as in PyTorch)
    xc = x.astype(_MXU_DTYPE)
    scale = 1.0 / math.sqrt(atten_dim)

    attn = None
    for h in range(head_num):                       # unrolled: all heads in a single grid point
        qh = jnp.dot(xc, wq_ref[h], preferred_element_type=jnp.float32) + bq_ref[h]   # (L, dh)
        kh = jnp.dot(xc, wk_ref[h], preferred_element_type=jnp.float32) + bk_ref[h]
        vh = jnp.dot(xc, wv_ref[h], preferred_element_type=jnp.float32) + bv_ref[h]
        s = jax.lax.dot_general(qh.astype(_MXU_DTYPE), kh.astype(_MXU_DTYPE),
                                (((1,), (1,)), ((), ())),        # q @ k^T without an explicit transpose
                                preferred_element_type=jnp.float32) * scale
        p = _softmax_lastdim(s)                                   # (L, L) f32
        pv = jnp.dot(p.astype(_MXU_DTYPE), vh.astype(_MXU_DTYPE),
                     preferred_element_type=jnp.float32)          # (L, dh)
        contrib = jnp.dot(pv.astype(_MXU_DTYPE), wo_ref[h],
                          preferred_element_type=jnp.float32)     # out-proj folded per head -> (L, D)
        attn = contrib if attn is None else attn + contrib
    attn = attn + bo_ref[...]

    y1 = _layernorm(attn + x, g1_ref[...], be1_ref[...])                          # norm1(attn + residual)
    f = _gelu(jnp.dot(y1.astype(_MXU_DTYPE), w1_ref[...],
                      preferred_element_type=jnp.float32) + b1_ref[...])          # gelu(conv1)
    f = _gelu(jnp.dot(f.astype(_MXU_DTYPE), w2_ref[...],
                      preferred_element_type=jnp.float32) + b2_ref[...])          # gelu(conv2)
    o_ref[0] = _layernorm(f + x, g2_ref[...], be2_ref[...])                       # norm2(ffn + residual)


_TB_KEYS = ('wq', 'bq', 'wk', 'bk', 'wv', 'bv', 'wo', 'bo',
            'w1', 'b1', 'w2', 'b2', 'g1', 'be1', 'g2', 'be2')


def transformer_block_forward(p, x, head_num, atten_dim):
    # Whole TransformerBlock (self-attention: q = k = v = x) as a single fused pallas_call.
    B, L, D = x.shape
    weights = [p[k] for k in _TB_KEYS]
    return pl.pallas_call(
        partial(_tblock_kernel, head_num=head_num, atten_dim=atten_dim),
        out_shape=jax.ShapeDtypeStruct((B, L, D), jnp.float32),
        grid=(B,),
        in_specs=[pl.BlockSpec((1, L, D), lambda b: (b, 0, 0))] + [_wspec(w) for w in weights],
        out_specs=pl.BlockSpec((1, L, D), lambda b: (b, 0, 0)),
        compiler_params=pltpu.CompilerParams(dimension_semantics=("parallel",)),
    )(x, *weights)


# ----------------------------------------------------------------------------- fused STB mixer (conv1..conv4)

def _mixer_kernel(xs_ref, xt_ref, w1_ref, b1_ref, w2_ref, b2_ref,
                  w3a_ref, w3b_ref, b3_ref, w4_ref, b4_ref, o_ref):
    # STB conv1..conv4 chain with the PyTorch permutes folded into weight orientation.
    X = xs_ref[0].astype(_MXU_DTYPE)                # (F, D): conv1 sees channels=F, length=D
    xt = xt_ref[0].astype(_MXU_DTYPE)               # (W, D)
    # a1[i, j] = gelu( sum_f W1[i,f] * xs[f,j] + b1[i] )                              -> (D, D)
    a1 = _gelu(jnp.dot(w1_ref[...], X, preferred_element_type=jnp.float32) + b1_ref[...])
    # a2[w, i] = gelu( sum_j W2[w,j] * a1[i,j] + b2[w] )   == gelu(conv2(a1^T))       -> (W, D)
    a2 = _gelu(jax.lax.dot_general(w2_ref[...], a1.astype(_MXU_DTYPE),
                                   (((1,), (1,)), ((), ())),
                                   preferred_element_type=jnp.float32) + b2_ref[...])
    # conv3 on cat((xt, a2), -1): W3 pre-split by input-channel half -> no in-kernel concat   -> (W, ff)
    a3 = _gelu(jnp.dot(xt, w3a_ref[...], preferred_element_type=jnp.float32)
               + jnp.dot(a2.astype(_MXU_DTYPE), w3b_ref[...], preferred_element_type=jnp.float32)
               + b3_ref[...])
    # gelu(conv4(a3)) already in channels-last layout                                  -> (W, D)
    o_ref[0] = _gelu(jnp.dot(a3.astype(_MXU_DTYPE), w4_ref[...],
                             preferred_element_type=jnp.float32) + b4_ref[...])


_MX_KEYS = ('mx_w1', 'mx_b1', 'mx_w2', 'mx_b2', 'mx_w3a', 'mx_w3b', 'mx_b3', 'mx_w4', 'mx_b4')


def mixer_forward(p, xs2, xt2):
    B, F, D = xs2.shape
    W = xt2.shape[1]
    weights = [p[k] for k in _MX_KEYS]
    return pl.pallas_call(
        _mixer_kernel,
        out_shape=jax.ShapeDtypeStruct((B, W, D), jnp.float32),
        grid=(B,),
        in_specs=[pl.BlockSpec((1, F, D), lambda b: (b, 0, 0)),
                  pl.BlockSpec((1, W, D), lambda b: (b, 0, 0))] + [_wspec(w) for w in weights],
        out_specs=pl.BlockSpec((1, W, D), lambda b: (b, 0, 0)),
        compiler_params=pltpu.CompilerParams(dimension_semantics=("parallel",)),
    )(xs2, xt2, *weights)


# ----------------------------------------------------------------------------- fused STB tail (conv5/6 + norm)

def _tail_kernel(z_ref, res_ref, w5_ref, b5_ref, w6_ref, b6_ref, g_ref, be_ref, o_ref):
    z = z_ref[0]                                    # (W, D)
    a5 = _gelu(jnp.dot(z.astype(_MXU_DTYPE), w5_ref[...],
                       preferred_element_type=jnp.float32) + b5_ref[...])         # gelu(conv5)
    u = _gelu(jnp.dot(a5.astype(_MXU_DTYPE), w6_ref[...],
                      preferred_element_type=jnp.float32) + b6_ref[...])          # gelu(conv6)
    o_ref[0] = _layernorm(u + res_ref[0], g_ref[...], be_ref[...])                # norm(x + residual)


_TL_KEYS = ('tl_w5', 'tl_b5', 'tl_w6', 'tl_b6', 'ln_g', 'ln_b')


def tail_forward(p, z, residual):
    B, W, D = z.shape
    weights = [p[k] for k in _TL_KEYS]
    return pl.pallas_call(
        _tail_kernel,
        out_shape=jax.ShapeDtypeStruct((B, W, D), jnp.float32),
        grid=(B,),
        in_specs=[pl.BlockSpec((1, W, D), lambda b: (b, 0, 0)),
                  pl.BlockSpec((1, W, D), lambda b: (b, 0, 0))] + [_wspec(w) for w in weights],
        out_specs=pl.BlockSpec((1, W, D), lambda b: (b, 0, 0)),
        compiler_params=pltpu.CompilerParams(dimension_semantics=("parallel",)),
    )(z, residual, *weights)


# ----------------------------------------------------------------------------- full forward

def stb_forward(p, xt, xs, head_num, atten_dim):
    residual = xt                                                             # xt.clone()
    xt2 = transformer_block_forward(p['temporal'], xt, head_num, atten_dim)   # (B, W, D)
    xs2 = transformer_block_forward(p['spatial'], xs, head_num, atten_dim)    # (B, F, D)
    y = mixer_forward(p, xs2, xt2)                                            # conv1..conv4 (+cat)  (B, W, D)
    z = transformer_block_forward(p['ordinary'], y, head_num, atten_dim)      # (B, W, D)
    out = tail_forward(p, z, residual)                                        # conv5/conv6 + norm(+residual)
    return out, xs2


# ----------------------------------------------------------------------------- parameter init (PyTorch-equivalent)

def _kaiming(key, out_c, in_c):
    # kaiming_normal_(mode='fan_in', nonlinearity='leaky_relu', a=0): std = sqrt(2 / fan_in)
    return jax.random.normal(key, (out_c, in_c), jnp.float32) * math.sqrt(2.0 / in_c)


def _conv_bias(key, n, fan_in):
    bound = 1.0 / math.sqrt(fan_in)
    return jax.random.uniform(key, (n,), jnp.float32, -bound, bound)


def _linear_init(key, out_c, in_c):
    kw, kb = jax.random.split(key)
    bound = 1.0 / math.sqrt(in_c)
    w = jax.random.uniform(kw, (out_c, in_c), jnp.float32, -bound, bound)
    b = jax.random.uniform(kb, (out_c,), jnp.float32, -bound, bound)
    return w, b


def init_transformer_block(key, model_dim, ff_dim, atten_dim, head_num):
    ks = jax.random.split(key, 8)
    H, dh, Dh = head_num, atten_dim, head_num * atten_dim
    Wq, bq = _linear_init(ks[0], Dh, model_dim)
    Wk, bk = _linear_init(ks[1], Dh, model_dim)
    Wv, bv = _linear_init(ks[2], Dh, model_dim)
    Wo, bo = _linear_init(ks[3], model_dim, Dh)
    W1 = _kaiming(ks[4], ff_dim, model_dim); b1 = _conv_bias(ks[5], ff_dim, model_dim)
    W2 = _kaiming(ks[6], model_dim, ff_dim); b2 = _conv_bias(ks[7], model_dim, ff_dim)
    c = _MXU_DTYPE

    def qkv_heads(W):      # (Dh, D) PyTorch (out,in) -> (H, D, dh) so q_h = x @ W[h]
        return jnp.transpose(W.reshape(H, dh, model_dim), (0, 2, 1)).astype(c)

    def head_bias(b):      # (Dh,) -> (H, 1, dh)
        return b.reshape(H, 1, dh)

    return dict(
        wq=qkv_heads(Wq), bq=head_bias(bq),
        wk=qkv_heads(Wk), bk=head_bias(bk),
        wv=qkv_heads(Wv), bv=head_bias(bv),
        wo=jnp.transpose(Wo, (1, 0)).reshape(H, dh, model_dim).astype(c),   # (H, dh, D): out += pv_h @ wo[h]
        bo=bo.reshape(1, model_dim),
        w1=W1.T.astype(c), b1=b1.reshape(1, -1),
        w2=W2.T.astype(c), b2=b2.reshape(1, -1),
        g1=jnp.ones((1, model_dim), jnp.float32), be1=jnp.zeros((1, model_dim), jnp.float32),
        g2=jnp.ones((1, model_dim), jnp.float32), be2=jnp.zeros((1, model_dim), jnp.float32),
    )


def init_stb(key, feature_num, window_size, model_dim, ff_dim, atten_dim, head_num):
    ks = jax.random.split(key, 15)
    c = _MXU_DTYPE
    W1 = _kaiming(ks[3], model_dim, feature_num);  b1 = _conv_bias(ks[4], model_dim, feature_num)
    W2 = _kaiming(ks[5], window_size, model_dim);  b2 = _conv_bias(ks[6], window_size, model_dim)
    W3 = _kaiming(ks[7], ff_dim, 2 * model_dim);   b3 = _conv_bias(ks[8], ff_dim, 2 * model_dim)
    W4 = _kaiming(ks[9], model_dim, ff_dim);       b4 = _conv_bias(ks[10], model_dim, ff_dim)
    W5 = _kaiming(ks[11], ff_dim, model_dim);      b5 = _conv_bias(ks[12], ff_dim, model_dim)
    W6 = _kaiming(ks[13], model_dim, ff_dim);      b6 = _conv_bias(ks[14], model_dim, ff_dim)
    return {
        'temporal': init_transformer_block(ks[0], model_dim, ff_dim, atten_dim, head_num),
        'spatial':  init_transformer_block(ks[1], model_dim, ff_dim, atten_dim, head_num),
        'ordinary': init_transformer_block(ks[2], model_dim, ff_dim, atten_dim, head_num),
        # mixer (STB conv1..conv4): conv1/conv2 kept channels-first, conv3 split by input half,
        # conv3/conv4 stored pre-transposed -> no activation transposes anywhere.
        'mx_w1': W1.astype(c),                     'mx_b1': b1.reshape(-1, 1),
        'mx_w2': W2.astype(c),                     'mx_b2': b2.reshape(-1, 1),
        'mx_w3a': W3[:, :model_dim].T.astype(c),
        'mx_w3b': W3[:, model_dim:].T.astype(c),
        'mx_b3': b3.reshape(1, -1),
        'mx_w4': W4.T.astype(c),                   'mx_b4': b4.reshape(1, -1),
        # tail (STB conv5/conv6 + final LayerNorm)
        'tl_w5': W5.T.astype(c), 'tl_b5': b5.reshape(1, -1),
        'tl_w6': W6.T.astype(c), 'tl_b6': b6.reshape(1, -1),
        'ln_g': jnp.ones((1, model_dim), jnp.float32),
        'ln_b': jnp.zeros((1, model_dim), jnp.float32),
    }


# ----------------------------------------------------------------------------- main

if __name__ == "__main__":
    key = jax.random.PRNGKey(0)
    kp, kxt, kxs = jax.random.split(key, 3)

    B = 2
    feature_num, window_size = 16, 8
    model_dim, ff_dim, atten_dim, head_num = 32, 64, 16, 2

    params = init_stb(kp, feature_num, window_size, model_dim, ff_dim, atten_dim, head_num)
    xt = jax.random.normal(kxt, (B, window_size, model_dim), jnp.float32)   # temporal stream
    xs = jax.random.normal(kxs, (B, feature_num, model_dim), jnp.float32)   # spatial stream

    fwd = jax.jit(partial(stb_forward, head_num=head_num, atten_dim=atten_dim))
    out, xs_out = fwd(params, xt, xs)
    out = jax.block_until_ready(out)
    xs_out = jax.block_until_ready(xs_out)

    assert out.shape == (B, window_size, model_dim)
    assert xs_out.shape == (B, feature_num, model_dim)
    assert bool(jnp.all(jnp.isfinite(out))) and bool(jnp.all(jnp.isfinite(xs_out)))
    print("KERNEL_OK")
</pallas_src>

<mosaic_0001>
module attributes {stable_mosaic.version = 11 : i64} {
  func.func @_tblock_kernel(%arg0: i32, %arg1: memref<1x8x32xf32, #tpu.memory_space<vmem>>, %arg2: memref<2x32x16xbf16, #tpu.memory_space<vmem>>, %arg3: memref<2x1x16xf32, #tpu.memory_space<vmem>>, %arg4: memref<2x32x16xbf16, #tpu.memory_space<vmem>>, %arg5: memref<2x1x16xf32, #tpu.memory_space<vmem>>, %arg6: memref<2x32x16xbf16, #tpu.memory_space<vmem>>, %arg7: memref<2x1x16xf32, #tpu.memory_space<vmem>>, %arg8: memref<2x16x32xbf16, #tpu.memory_space<vmem>>, %arg9: memref<1x32xf32, #tpu.memory_space<vmem>>, %arg10: memref<32x64xbf16, #tpu.memory_space<vmem>>, %arg11: memref<1x64xf32, #tpu.memory_space<vmem>>, %arg12: memref<64x32xbf16, #tpu.memory_space<vmem>>, %arg13: memref<1x32xf32, #tpu.memory_space<vmem>>, %arg14: memref<1x32xf32, #tpu.memory_space<vmem>>, %arg15: memref<1x32xf32, #tpu.memory_space<vmem>>, %arg16: memref<1x32xf32, #tpu.memory_space<vmem>>, %arg17: memref<1x32xf32, #tpu.memory_space<vmem>>, %arg18: memref<1x8x32xf32, #tpu.memory_space<vmem>>) attributes {dimension_semantics = [#tpu.dimension_semantics<parallel>], iteration_bounds = array<i64: 2>, scalar_prefetch = 0 : i64, scratch_operands = 0 : i64, tpu.core_type = #tpu.core_type<tc>, window_params = [{transform_indices = @transform_0, window_bounds = array<i64: 1, 8, 32>}, {pipeline_mode = #tpu.pipeline_mode<synchronous>, transform_indices = @transform_1, window_bounds = array<i64: 2, 32, 16>}, {pipeline_mode = #tpu.pipeline_mode<synchronous>, transform_indices = @transform_2, window_bounds = array<i64: 2, 1, 16>}, {pipeline_mode = #tpu.pipeline_mode<synchronous>, transform_indices = @transform_3, window_bounds = array<i64: 2, 32, 16>}, {pipeline_mode = #tpu.pipeline_mode<synchronous>, transform_indices = @transform_4, window_bounds = array<i64: 2, 1, 16>}, {pipeline_mode = #tpu.pipeline_mode<synchronous>, transform_indices = @transform_5, window_bounds = array<i64: 2, 32, 16>}, {pipeline_mode = #tpu.pipeline_mode<synchronous>, transform_indices = @transform_6, window_bounds = array<i64: 2, 1, 16>}, {pipeline_mode = #tpu.pipeline_mode<synchronous>, transform_indices = @transform_7, window_bounds = array<i64: 2, 16, 32>}, {pipeline_mode = #tpu.pipeline_mode<synchronous>, transform_indices = @transform_8, window_bounds = array<i64: 1, 32>}, {pipeline_mode = #tpu.pipeline_mode<synchronous>, transform_indices = @transform_9, window_bounds = array<i64: 32, 64>}, {pipeline_mode = #tpu.pipeline_mode<synchronous>, transform_indices = @transform_10, window_bounds = array<i64: 1, 64>}, {pipeline_mode = #tpu.pipeline_mode<synchronous>, transform_indices = @transform_11, window_bounds = array<i64: 64, 32>}, {pipeline_mode = #tpu.pipeline_mode<synchronous>, transform_indices = @transform_12, window_bounds = array<i64: 1, 32>}, {pipeline_mode = #tpu.pipeline_mode<synchronous>, transform_indices = @transform_13, window_bounds = array<i64: 1, 32>}, {pipeline_mode = #tpu.pipeline_mode<synchronous>, transform_indices = @transform_14, window_bounds = array<i64: 1, 32>}, {pipeline_mode = #tpu.pipeline_mode<synchronous>, transform_indices = @transform_15, window_bounds = array<i64: 1, 32>}, {pipeline_mode = #tpu.pipeline_mode<synchronous>, transform_indices = @transform_16, window_bounds = array<i64: 1, 32>}, {transform_indices = @transform_17, window_bounds = array<i64: 1, 8, 32>}]} {
    %c0 = arith.constant 0 : index
    %c0_0 = arith.constant 0 : index
    %c0_1 = arith.constant 0 : index
    %0 = vector.load %arg1[%c0, %c0_0, %c0_1] : memref<1x8x32xf32, #tpu.memory_space<vmem>>, vector<1x8x32xf32>
    %1 = vector.shape_cast %0 : vector<1x8x32xf32> to vector<8x32xf32>
    %2 = arith.truncf %1 : vector<8x32xf32> to vector<8x32xbf16>
    %c0_2 = arith.constant 0 : index
    %c0_3 = arith.constant 0 : index
    %c0_4 = arith.constant 0 : index
    %3 = vector.load %arg2[%c0_2, %c0_3, %c0_4] : memref<2x32x16xbf16, #tpu.memory_space<vmem>>, vector<1x32x16xbf16>
    %4 = vector.shape_cast %3 : vector<1x32x16xbf16> to vector<32x16xbf16>
    %cst = arith.constant dense<0.000000e+00> : vector<8x16xf32>
    %5 = tpu.matmul %2, %4, %cst {dimension_numbers = #tpu.dot_dimension_numbers<[1], [0], [0], [1], [0, 0, 1, 1], [], []>} : vector<8x32xbf16>, vector<32x16xbf16>, vector<8x16xf32> -> vector<8x16xf32>
    %c0_5 = arith.constant 0 : index
    %c0_6 = arith.constant 0 : index
    %c0_7 = arith.constant 0 : index
    %6 = vector.load %arg3[%c0_5, %c0_6, %c0_7] : memref<2x1x16xf32, #tpu.memory_space<vmem>>, vector<1x1x16xf32>
    %7 = vector.shape_cast %6 : vector<1x1x16xf32> to vector<1x16xf32>
    %8 = vector.broadcast %7 : vector<1x16xf32> to vector<8x16xf32>
    %9 = arith.addf %5, %8 : vector<8x16xf32>
    %c0_8 = arith.constant 0 : index
    %c0_9 = arith.constant 0 : index
    %c0_10 = arith.constant 0 : index
    %10 = vector.load %arg4[%c0_8, %c0_9, %c0_10] : memref<2x32x16xbf16, #tpu.memory_space<vmem>>, vector<1x32x16xbf16>
    %11 = vector.shape_cast %10 : vector<1x32x16xbf16> to vector<32x16xbf16>
    %cst_11 = arith.constant dense<0.000000e+00> : vector<8x16xf32>
    %12 = tpu.matmul %2, %11, %cst_11 {dimension_numbers = #tpu.dot_dimension_numbers<[1], [0], [0], [1], [0, 0, 1, 1], [], []>} : vector<8x32xbf16>, vector<32x16xbf16>, vector<8x16xf32> -> vector<8x16xf32>
    %c0_12 = arith.constant 0 : index
    %c0_13 = arith.constant 0 : index
    %c0_14 = arith.constant 0 : index
    %13 = vector.load %arg5[%c0_12, %c0_13, %c0_14] : memref<2x1x16xf32, #tpu.memory_space<vmem>>, vector<1x1x16xf32>
    %14 = vector.shape_cast %13 : vector<1x1x16xf32> to vector<1x16xf32>
    %15 = vector.broadcast %14 : vector<1x16xf32> to vector<8x16xf32>
    %16 = arith.addf %12, %15 : vector<8x16xf32>
    %c0_15 = arith.constant 0 : index
    %c0_16 = arith.constant 0 : index
    %c0_17 = arith.constant 0 : index
    %17 = vector.load %arg6[%c0_15, %c0_16, %c0_17] : memref<2x32x16xbf16, #tpu.memory_space<vmem>>, vector<1x32x16xbf16>
    %18 = vector.shape_cast %17 : vector<1x32x16xbf16> to vector<32x16xbf16>
    %cst_18 = arith.constant dense<0.000000e+00> : vector<8x16xf32>
    %19 = tpu.matmul %2, %18, %cst_18 {dimension_numbers = #tpu.dot_dimension_numbers<[1], [0], [0], [1], [0, 0, 1, 1], [], []>} : vector<8x32xbf16>, vector<32x16xbf16>, vector<8x16xf32> -> vector<8x16xf32>
    %c0_19 = arith.constant 0 : index
    %c0_20 = arith.constant 0 : index
    %c0_21 = arith.constant 0 : index
    %20 = vector.load %arg7[%c0_19, %c0_20, %c0_21] : memref<2x1x16xf32, #tpu.memory_space<vmem>>, vector<1x1x16xf32>
    %21 = vector.shape_cast %20 : vector<1x1x16xf32> to vector<1x16xf32>
    %22 = vector.broadcast %21 : vector<1x16xf32> to vector<8x16xf32>
    %23 = arith.addf %19, %22 : vector<8x16xf32>
    %24 = arith.truncf %9 : vector<8x16xf32> to vector<8x16xbf16>
    %25 = arith.truncf %16 : vector<8x16xf32> to vector<8x16xbf16>
    %cst_22 = arith.constant dense<0.000000e+00> : vector<8x8xf32>
    %26 = tpu.matmul %24, %25, %cst_22 {dimension_numbers = #tpu.dot_dimension_numbers<[1], [1], [0], [0], [0, 0, 1, 0], [], []>} : vector<8x16xbf16>, vector<8x16xbf16>, vector<8x8xf32> -> vector<8x8xf32>
    %cst_23 = arith.constant 2.500000e-01 : f32
    %27 = vector.broadcast %cst_23 : f32 to vector<8x8xf32>
    %28 = arith.mulf %26, %27 : vector<8x8xf32>
    %cst_24 = arith.constant dense<0xFF800000> : vector<8xf32>
    %29 = vector.multi_reduction <maximumf>, %28, %cst_24 [1] : vector<8x8xf32> to vector<8xf32>
    %30 = vector.shape_cast %29 : vector<8xf32> to vector<8x1xf32>
    %31 = vector.broadcast %30 : vector<8x1xf32> to vector<8x8xf32>
    %32 = arith.subf %28, %31 : vector<8x8xf32>
    %33 = math.exp %32 : vector<8x8xf32>
    %cst_25 = arith.constant dense<0.000000e+00> : vector<8xf32>
    %34 = vector.multi_reduction <add>, %33, %cst_25 [1] : vector<8x8xf32> to vector<8xf32>
    %35 = vector.shape_cast %34 : vector<8xf32> to vector<8x1xf32>
    %36 = tpu.reciprocal %35 {approx = true} : vector<8x1xf32> -> vector<8x1xf32>
    %37 = vector.broadcast %36 : vector<8x1xf32> to vector<8x8xf32>
    %38 = arith.mulf %33, %37 : vector<8x8xf32>
    %39 = arith.truncf %38 : vector<8x8xf32> to vector<8x8xbf16>
    %40 = arith.truncf %23 : vector<8x16xf32> to vector<8x16xbf16>
    %cst_26 = arith.constant dense<0.000000e+00> : vector<8x16xf32>
    %41 = tpu.matmul %39, %40, %cst_26 {dimension_numbers = #tpu.dot_dimension_numbers<[1], [0], [0], [1], [0, 0, 1, 1], [], []>} : vector<8x8xbf16>, vector<8x16xbf16>, vector<8x16xf32> -> vector<8x16xf32>
    %42 = arith.truncf %41 : vector<8x16xf32> to vector<8x16xbf16>
    %c0_27 = arith.constant 0 : index
    %c0_28 = arith.constant 0 : index
    %c0_29 = arith.constant 0 : index
    %43 = vector.load %arg8[%c0_27, %c0_28, %c0_29] : memref<2x16x32xbf16, #tpu.memory_space<vmem>>, vector<1x16x32xbf16>
    %44 = vector.shape_cast %43 : vector<1x16x32xbf16> to vector<16x32xbf16>
    %cst_30 = arith.constant dense<0.000000e+00> : vector<8x32xf32>
    %45 = tpu.matmul %42, %44, %cst_30 {dimension_numbers = #tpu.dot_dimension_numbers<[1], [0], [0], [1], [0, 0, 1, 1], [], []>} : vector<8x16xbf16>, vector<16x32xbf16>, vector<8x32xf32> -> vector<8x32xf32>
    %c1 = arith.constant 1 : index
    %c0_31 = arith.constant 0 : index
    %c0_32 = arith.constant 0 : index
    %46 = vector.load %arg2[%c1, %c0_31, %c0_32] : memref<2x32x16xbf16, #tpu.memory_space<vmem>>, vector<1x32x16xbf16>
    %47 = vector.shape_cast %46 : vector<1x32x16xbf16> to vector<32x16xbf16>
    %cst_33 = arith.constant dense<0.000000e+00> : vector<8x16xf32>
    %48 = tpu.matmul %2, %47, %cst_33 {dimension_numbers = #tpu.dot_dimension_numbers<[1], [0], [0], [1], [0, 0, 1, 1], [], []>} : vector<8x32xbf16>, vector<32x16xbf16>, vector<8x16xf32> -> vector<8x16xf32>
    %c1_34 = arith.constant 1 : index
    %c0_35 = arith.constant 0 : index
    %c0_36 = arith.constant 0 : index
    %49 = vector.load %arg3[%c1_34, %c0_35, %c0_36] : memref<2x1x16xf32, #tpu.memory_space<vmem>>, vector<1x1x16xf32>
    %50 = vector.shape_cast %49 : vector<1x1x16xf32> to vector<1x16xf32>
    %51 = vector.broadcast %50 : vector<1x16xf32> to vector<8x16xf32>
    %52 = arith.addf %48, %51 : vector<8x16xf32>
    %c1_37 = arith.constant 1 : index
    %c0_38 = arith.constant 0 : index
    %c0_39 = arith.constant 0 : index
    %53 = vector.load %arg4[%c1_37, %c0_38, %c0_39] : memref<2x32x16xbf16, #tpu.memory_space<vmem>>, vector<1x32x16xbf16>
    %54 = vector.shape_cast %53 : vector<1x32x16xbf16> to vector<32x16xbf16>
    %cst_40 = arith.constant dense<0.000000e+00> : vector<8x16xf32>
    %55 = tpu.matmul %2, %54, %cst_40 {dimension_numbers = #tpu.dot_dimension_numbers<[1], [0], [0], [1], [0, 0, 1, 1], [], []>} : vector<8x32xbf16>, vector<32x16xbf16>, vector<8x16xf32> -> vector<8x16xf32>
    %c1_41 = arith.constant 1 : index
    %c0_42 = arith.constant 0 : index
    %c0_43 = arith.constant 0 : index
    %56 = vector.load %arg5[%c1_41, %c0_42, %c0_43] : memref<2x1x16xf32, #tpu.memory_space<vmem>>, vector<1x1x16xf32>
    %57 = vector.shape_cast %56 : vector<1x1x16xf32> to vector<1x16xf32>
    %58 = vector.broadcast %57 : vector<1x16xf32> to vector<8x16xf32>
    %59 = arith.addf %55, %58 : vector<8x16xf32>
    %c1_44 = arith.constant 1 : index
    %c0_45 = arith.constant 0 : index
    %c0_46 = arith.constant 0 : index
    %60 = vector.load %arg6[%c1_44, %c0_45, %c0_46] : memref<2x32x16xbf16, #tpu.memory_space<vmem>>, vector<1x32x16xbf16>
    %61 = vector.shape_cast %60 : vector<1x32x16xbf16> to vector<32x16xbf16>
    %cst_47 = arith.constant dense<0.000000e+00> : vector<8x16xf32>
    %62 = tpu.matmul %2, %61, %cst_47 {dimension_numbers = #tpu.dot_dimension_numbers<[1], [0], [0], [1], [0, 0, 1, 1], [], []>} : vector<8x32xbf16>, vector<32x16xbf16>, vector<8x16xf32> -> vector<8x16xf32>
    %c1_48 = arith.constant 1 : index
    %c0_49 = arith.constant 0 : index
    %c0_50 = arith.constant 0 : index
    %63 = vector.load %arg7[%c1_48, %c0_49, %c0_50] : memref<2x1x16xf32, #tpu.memory_space<vmem>>, vector<1x1x16xf32>
    %64 = vector.shape_cast %63 : vector<1x1x16xf32> to vector<1x16xf32>
    %65 = vector.broadcast %64 : vector<1x16xf32> to vector<8x16xf32>
    %66 = arith.addf %62, %65 : vector<8x16xf32>
    %67 = arith.truncf %52 : vector<8x16xf32> to vector<8x16xbf16>
    %68 = arith.truncf %59 : vector<8x16xf32> to vector<8x16xbf16>
    %cst_51 = arith.constant dense<0.000000e+00> : vector<8x8xf32>
    %69 = tpu.matmul %67, %68, %cst_51 {dimension_numbers = #tpu.dot_dimension_numbers<[1], [1], [0], [0], [0, 0, 1, 0], [], []>} : vector<8x16xbf16>, vector<8x16xbf16>, vector<8x8xf32> -> vector<8x8xf32>
    %cst_52 = arith.constant 2.500000e-01 : f32
    %70 = vector.broadcast %cst_52 : f32 to vector<8x8xf32>
    %71 = arith.mulf %69, %70 : vector<8x8xf32>
    %cst_53 = arith.constant dense<0xFF800000> : vector<8xf32>
    %72 = vector.multi_reduction <maximumf>, %71, %cst_53 [1] : vector<8x8xf32> to vector<8xf32>
    %73 = vector.shape_cast %72 : vector<8xf32> to vector<8x1xf32>
    %74 = vector.broadcast %73 : vector<8x1xf32> to vector<8x8xf32>
    %75 = arith.subf %71, %74 : vector<8x8xf32>
    %76 = math.exp %75 : vector<8x8xf32>
    %cst_54 = arith.constant dense<0.000000e+00> : vector<8xf32>
    %77 = vector.multi_reduction <add>, %76, %cst_54 [1] : vector<8x8xf32> to vector<8xf32>
    %78 = vector.shape_cast %77 : vector<8xf32> to vector<8x1xf32>
    %79 = tpu.reciprocal %78 {approx = true} : vector<8x1xf32> -> vector<8x1xf32>
    %80 = vector.broadcast %79 : vector<8x1xf32> to vector<8x8xf32>
    %81 = arith.mulf %76, %80 : vector<8x8xf32>
    %82 = arith.truncf %81 : vector<8x8xf32> to vector<8x8xbf16>
    %83 = arith.truncf %66 : vector<8x16xf32> to vector<8x16xbf16>
    %cst_55 = arith.constant dense<0.000000e+00> : vector<8x16xf32>
    %84 = tpu.matmul %82, %83, %cst_55 {dimension_numbers = #tpu.dot_dimension_numbers<[1], [0], [0], [1], [0, 0, 1, 1], [], []>} : vector<8x8xbf16>, vector<8x16xbf16>, vector<8x16xf32> -> vector<8x16xf32>
    %85 = arith.truncf %84 : vector<8x16xf32> to vector<8x16xbf16>
    %c1_56 = arith.constant 1 : index
    %c0_57 = arith.constant 0 : index
    %c0_58 = arith.constant 0 : index
    %86 = vector.load %arg8[%c1_56, %c0_57, %c0_58] : memref<2x16x32xbf16, #tpu.memory_space<vmem>>, vector<1x16x32xbf16>
    %87 = vector.shape_cast %86 : vector<1x16x32xbf16> to vector<16x32xbf16>
    %cst_59 = arith.constant dense<0.000000e+00> : vector<8x32xf32>
    %88 = tpu.matmul %85, %87, %cst_59 {dimension_numbers = #tpu.dot_dimension_numbers<[1], [0], [0], [1], [0, 0, 1, 1], [], []>} : vector<8x16xbf16>, vector<16x32xbf16>, vector<8x32xf32> -> vector<8x32xf32>
    %89 = arith.addf %45, %88 : vector<8x32xf32>
    %c0_60 = arith.constant 0 : index
    %c0_61 = arith.constant 0 : index
    %90 = vector.load %arg9[%c0_60, %c0_61] : memref<1x32xf32, #tpu.memory_space<vmem>>, vector<1x32xf32>
    %91 = vector.broadcast %90 : vector<1x32xf32> to vector<8x32xf32>
    %92 = arith.addf %89, %91 : vector<8x32xf32>
    %93 = arith.addf %92, %1 : vector<8x32xf32>
    %c0_62 = arith.constant 0 : index
    %c0_63 = arith.constant 0 : index
    %94 = vector.load %arg14[%c0_62, %c0_63] : memref<1x32xf32, #tpu.memory_space<vmem>>, vector<1x32xf32>
    %c0_64 = arith.constant 0 : index
    %c0_65 = arith.constant 0 : index
    %95 = vector.load %arg15[%c0_64, %c0_65] : memref<1x32xf32, #tpu.memory_space<vmem>>, vector<1x32xf32>
    %cst_66 = arith.constant dense<0.000000e+00> : vector<8xf32>
    %96 = vector.multi_reduction <add>, %93, %cst_66 [1] : vector<8x32xf32> to vector<8xf32>
    %97 = vector.shape_cast %96 : vector<8xf32> to vector<8x1xf32>
    %cst_67 = arith.constant 3.200000e+01 : f32
    %98 = vector.broadcast %cst_67 : f32 to vector<8x1xf32>
    %99 = arith.divf %97, %98 : vector<8x1xf32>
    %100 = vector.broadcast %99 : vector<8x1xf32> to vector<8x32xf32>
    %101 = arith.subf %93, %100 : vector<8x32xf32>
    %102 = arith.mulf %101, %101 : vector<8x32xf32>
    %cst_68 = arith.constant dense<0.000000e+00> : vector<8xf32>
    %103 = vector.multi_reduction <add>, %102, %cst_68 [1] : vector<8x32xf32> to vector<8xf32>
    %104 = vector.shape_cast %103 : vector<8xf32> to vector<8x1xf32>
    %cst_69 = arith.constant 3.200000e+01 : f32
    %105 = vector.broadcast %cst_69 : f32 to vector<8x1xf32>
    %106 = arith.divf %104, %105 : vector<8x1xf32>
    %cst_70 = arith.constant 9.99999974E-6 : f32
    %107 = vector.broadcast %cst_70 : f32 to vector<8x1xf32>
    %108 = arith.addf %106, %107 : vector<8x1xf32>
    %109 = math.rsqrt %108 : vector<8x1xf32>
    %110 = vector.broadcast %109 : vector<8x1xf32> to vector<8x32xf32>
    %111 = arith.mulf %101, %110 : vector<8x32xf32>
    %112 = vector.broadcast %94 : vector<1x32xf32> to vector<8x32xf32>
    %113 = arith.mulf %111, %112 : vector<8x32xf32>
    %114 = vector.broadcast %95 : vector<1x32xf32> to vector<8x32xf32>
    %115 = arith.addf %113, %114 : vector<8x32xf32>
    %116 = arith.truncf %115 : vector<8x32xf32> to vector<8x32xbf16>
    %c0_71 = arith.constant 0 : index
    %c0_72 = arith.constant 0 : index
    %117 = vector.load %arg10[%c0_71, %c0_72] : memref<32x64xbf16, #tpu.memory_space<vmem>>, vector<32x64xbf16>
    %cst_73 = arith.constant dense<0.000000e+00> : vector<8x64xf32>
    %118 = tpu.matmul %116, %117, %cst_73 {dimension_numbers = #tpu.dot_dimension_numbers<[1], [0], [0], [1], [0, 0, 1, 1], [], []>} : vector<8x32xbf16>, vector<32x64xbf16>, vector<8x64xf32> -> vector<8x64xf32>
    %c0_74 = arith.constant 0 : index
    %c0_75 = arith.constant 0 : index
    %119 = vector.load %arg11[%c0_74, %c0_75] : memref<1x64xf32, #tpu.memory_space<vmem>>, vector<1x64xf32>
    %120 = vector.broadcast %119 : vector<1x64xf32> to vector<8x64xf32>
    %121 = arith.addf %118, %120 : vector<8x64xf32>
    %cst_76 = arith.constant 5.000000e-01 : f32
    %122 = vector.broadcast %cst_76 : f32 to vector<8x64xf32>
    %123 = arith.mulf %122, %121 : vector<8x64xf32>
    %124 = arith.mulf %121, %121 : vector<8x64xf32>
    %125 = arith.mulf %124, %121 : vector<8x64xf32>
    %cst_77 = arith.constant 4.471500e-02 : f32
    %126 = vector.broadcast %cst_77 : f32 to vector<8x64xf32>
    %127 = arith.mulf %126, %125 : vector<8x64xf32>
    %128 = arith.addf %121, %127 : vector<8x64xf32>
    %cst_78 = arith.constant 0.797884583 : f32
    %129 = vector.broadcast %cst_78 : f32 to vector<8x64xf32>
    %130 = arith.mulf %129, %128 : vector<8x64xf32>
    %131 = math.tanh %130 : vector<8x64xf32>
    %cst_79 = arith.constant 1.000000e+00 : f32
    %132 = vector.broadcast %cst_79 : f32 to vector<8x64xf32>
    %133 = arith.addf %132, %131 : vector<8x64xf32>
    %134 = arith.mulf %123, %133 : vector<8x64xf32>
    %135 = arith.truncf %134 : vector<8x64xf32> to vector<8x64xbf16>
    %c0_80 = arith.constant 0 : index
    %c0_81 = arith.constant 0 : index
    %136 = vector.load %arg12[%c0_80, %c0_81] : memref<64x32xbf16, #tpu.memory_space<vmem>>, vector<64x32xbf16>
    %cst_82 = arith.constant dense<0.000000e+00> : vector<8x32xf32>
    %137 = tpu.matmul %135, %136, %cst_82 {dimension_numbers = #tpu.dot_dimension_numbers<[1], [0], [0], [1], [0, 0, 1, 1], [], []>} : vector<8x64xbf16>, vector<64x32xbf16>, vector<8x32xf32> -> vector<8x32xf32>
    %c0_83 = arith.constant 0 : index
    %c0_84 = arith.constant 0 : index
    %138 = vector.load %arg13[%c0_83, %c0_84] : memref<1x32xf32, #tpu.memory_space<vmem>>, vector<1x32xf32>
    %139 = vector.broadcast %138 : vector<1x32xf32> to vector<8x32xf32>
    %140 = arith.addf %137, %139 : vector<8x32xf32>
    %cst_85 = arith.constant 5.000000e-01 : f32
    %141 = vector.broadcast %cst_85 : f32 to vector<8x32xf32>
    %142 = arith.mulf %141, %140 : vector<8x32xf32>
    %143 = arith.mulf %140, %140 : vector<8x32xf32>
    %144 = arith.mulf %143, %140 : vector<8x32xf32>
    %cst_86 = arith.constant 4.471500e-02 : f32
    %145 = vector.broadcast %cst_86 : f32 to vector<8x32xf32>
    %146 = arith.mulf %145, %144 : vector<8x32xf32>
    %147 = arith.addf %140, %146 : vector<8x32xf32>
    %cst_87 = arith.constant 0.797884583 : f32
    %148 = vector.broadcast %cst_87 : f32 to vector<8x32xf32>
    %149 = arith.mulf %148, %147 : vector<8x32xf32>
    %150 = math.tanh %149 : vector<8x32xf32>
    %cst_88 = arith.constant 1.000000e+00 : f32
    %151 = vector.broadcast %cst_88 : f32 to vector<8x32xf32>
    %152 = arith.addf %151, %150 : vector<8x32xf32>
    %153 = arith.mulf %142, %152 : vector<8x32xf32>
    %154 = arith.addf %153, %1 : vector<8x32xf32>
    %c0_89 = arith.constant 0 : index
    %c0_90 = arith.constant 0 : index
    %155 = vector.load %arg16[%c0_89, %c0_90] : memref<1x32xf32, #tpu.memory_space<vmem>>, vector<1x32xf32>
    %c0_91 = arith.constant 0 : index
    %c0_92 = arith.constant 0 : index
    %156 = vector.load %arg17[%c0_91, %c0_92] : memref<1x32xf32, #tpu.memory_space<vmem>>, vector<1x32xf32>
    %cst_93 = arith.constant dense<0.000000e+00> : vector<8xf32>
    %157 = vector.multi_reduction <add>, %154, %cst_93 [1] : vector<8x32xf32> to vector<8xf32>
    %158 = vector.shape_cast %157 : vector<8xf32> to vector<8x1xf32>
    %cst_94 = arith.constant 3.200000e+01 : f32
    %159 = vector.broadcast %cst_94 : f32 to vector<8x1xf32>
    %160 = arith.divf %158, %159 : vector<8x1xf32>
    %161 = vector.broadcast %160 : vector<8x1xf32> to vector<8x32xf32>
    %162 = arith.subf %154, %161 : vector<8x32xf32>
    %163 = arith.mulf %162, %162 : vector<8x32xf32>
    %cst_95 = arith.constant dense<0.000000e+00> : vector<8xf32>
    %164 = vector.multi_reduction <add>, %163, %cst_95 [1] : vector<8x32xf32> to vector<8xf32>
    %165 = vector.shape_cast %164 : vector<8xf32> to vector<8x1xf32>
    %cst_96 = arith.constant 3.200000e+01 : f32
    %166 = vector.broadcast %cst_96 : f32 to vector<8x1xf32>
    %167 = arith.divf %165, %166 : vector<8x1xf32>
    %cst_97 = arith.constant 9.99999974E-6 : f32
    %168 = vector.broadcast %cst_97 : f32 to vector<8x1xf32>
    %169 = arith.addf %167, %168 : vector<8x1xf32>
    %170 = math.rsqrt %169 : vector<8x1xf32>
    %171 = vector.broadcast %170 : vector<8x1xf32> to vector<8x32xf32>
    %172 = arith.mulf %162, %171 : vector<8x32xf32>
    %173 = vector.broadcast %155 : vector<1x32xf32> to vector<8x32xf32>
    %174 = arith.mulf %172, %173 : vector<8x32xf32>
    %175 = vector.broadcast %156 : vector<1x32xf32> to vector<8x32xf32>
    %176 = arith.addf %174, %175 : vector<8x32xf32>
    %c0_98 = arith.constant 0 : index
    %c0_99 = arith.constant 0 : index
    %c0_100 = arith.constant 0 : index
    %177 = vector.load %arg18[%c0_98, %c0_99, %c0_100] : memref<1x8x32xf32, #tpu.memory_space<vmem>>, vector<1x8x32xf32>
    %178 = vector.shape_cast %177 : vector<1x8x32xf32> to vector<8x32xf32>
    %179 = vector.shape_cast %176 : vector<8x32xf32> to vector<1x8x32xf32>
    tpu.vector_store %arg18[%c0_98, %c0_99, %c0_100], %179 {strides = array<i32>} : memref<1x8x32xf32, #tpu.memory_space<vmem>>, vector<1x8x32xf32>,
    return
  }
  func.func @transform_0(%arg0: i32) -> (i32, i32, i32) {
    %c0_i32 = arith.constant 0 : i32
    %c0_i32_0 = arith.constant 0 : i32
    %c0_i32_1 = arith.constant 0 : i32
    return %arg0, %c0_i32, %c0_i32_0 : i32, i32, i32
  }
  func.func @transform_1(%arg0: i32) -> (i32, i32, i32) {
    %c0_i32 = arith.constant 0 : i32
    %c0_i32_0 = arith.constant 0 : i32
    %c0_i32_1 = arith.constant 0 : i32
    %c0_i32_2 = arith.constant 0 : i32
    return %c0_i32, %c0_i32_0, %c0_i32_1 : i32, i32, i32
  }
  func.func @transform_2(%arg0: i32) -> (i32, i32, i32) {
    %c0_i32 = arith.constant 0 : i32
    %c0_i32_0 = arith.constant 0 : i32
    %c0_i32_1 = arith.constant 0 : i32
    %c0_i32_2 = arith.constant 0 : i32
    return %c0_i32, %c0_i32_0, %c0_i32_1 : i32, i32, i32
  }
  func.func @transform_3(%arg0: i32) -> (i32, i32, i32) {
    %c0_i32 = arith.constant 0 : i32
    %c0_i32_0 = arith.constant 0 : i32
    %c0_i32_1 = arith.constant 0 : i32
    %c0_i32_2 = arith.constant 0 : i32
    return %c0_i32, %c0_i32_0, %c0_i32_1 : i32, i32, i32
  }
  func.func @transform_4(%arg0: i32) -> (i32, i32, i32) {
    %c0_i32 = arith.constant 0 : i32
    %c0_i32_0 = arith.constant 0 : i32
    %c0_i32_1 = arith.constant 0 : i32
    %c0_i32_2 = arith.constant 0 : i32
    return %c0_i32, %c0_i32_0, %c0_i32_1 : i32, i32, i32
  }
  func.func @transform_5(%arg0: i32) -> (i32, i32, i32) {
    %c0_i32 = arith.constant 0 : i32
    %c0_i32_0 = arith.constant 0 : i32
    %c0_i32_1 = arith.constant 0 : i32
    %c0_i32_2 = arith.constant 0 : i32
    return %c0_i32, %c0_i32_0, %c0_i32_1 : i32, i32, i32
  }
  func.func @transform_6(%arg0: i32) -> (i32, i32, i32) {
    %c0_i32 = arith.constant 0 : i32
    %c0_i32_0 = arith.constant 0 : i32
    %c0_i32_1 = arith.constant 0 : i32
    %c0_i32_2 = arith.constant 0 : i32
    return %c0_i32, %c0_i32_0, %c0_i32_1 : i32, i32, i32
  }
  func.func @transform_7(%arg0: i32) -> (i32, i32, i32) {
    %c0_i32 = arith.constant 0 : i32
    %c0_i32_0 = arith.constant 0 : i32
    %c0_i32_1 = arith.constant 0 : i32
    %c0_i32_2 = arith.constant 0 : i32
    return %c0_i32, %c0_i32_0, %c0_i32_1 : i32, i32, i32
  }
  func.func @transform_8(%arg0: i32) -> (i32, i32) {
    %c0_i32 = arith.constant 0 : i32
    %c0_i32_0 = arith.constant 0 : i32
    %c0_i32_1 = arith.constant 0 : i32
    return %c0_i32, %c0_i32_0 : i32, i32
  }
  func.func @transform_9(%arg0: i32) -> (i32, i32) {
    %c0_i32 = arith.constant 0 : i32
    %c0_i32_0 = arith.constant 0 : i32
    %c0_i32_1 = arith.constant 0 : i32
    return %c0_i32, %c0_i32_0 : i32, i32
  }
  func.func @transform_10(%arg0: i32) -> (i32, i32) {
    %c0_i32 = arith.constant 0 : i32
    %c0_i32_0 = arith.constant 0 : i32
    %c0_i32_1 = arith.constant 0 : i32
    return %c0_i32, %c0_i32_0 : i32, i32
  }
  func.func @transform_11(%arg0: i32) -> (i32, i32) {
    %c0_i32 = arith.constant 0 : i32
    %c0_i32_0 = arith.constant 0 : i32
    %c0_i32_1 = arith.constant 0 : i32
    return %c0_i32, %c0_i32_0 : i32, i32
  }
  func.func @transform_12(%arg0: i32) -> (i32, i32) {
    %c0_i32 = arith.constant 0 : i32
    %c0_i32_0 = arith.constant 0 : i32
    %c0_i32_1 = arith.constant 0 : i32
    return %c0_i32, %c0_i32_0 : i32, i32
  }
  func.func @transform_13(%arg0: i32) -> (i32, i32) {
    %c0_i32 = arith.constant 0 : i32
    %c0_i32_0 = arith.constant 0 : i32
    %c0_i32_1 = arith.constant 0 : i32
    return %c0_i32, %c0_i32_0 : i32, i32
  }
  func.func @transform_14(%arg0: i32) -> (i32, i32) {
    %c0_i32 = arith.constant 0 : i32
    %c0_i32_0 = arith.constant 0 : i32
    %c0_i32_1 = arith.constant 0 : i32
    return %c0_i32, %c0_i32_0 : i32, i32
  }
  func.func @transform_15(%arg0: i32) -> (i32, i32) {
    %c0_i32 = arith.constant 0 : i32
    %c0_i32_0 = arith.constant 0 : i32
    %c0_i32_1 = arith.constant 0 : i32
    return %c0_i32, %c0_i32_0 : i32, i32
  }
  func.func @transform_16(%arg0: i32) -> (i32, i32) {
    %c0_i32 = arith.constant 0 : i32
    %c0_i32_0 = arith.constant 0 : i32
    %c0_i32_1 = arith.constant 0 : i32
    return %c0_i32, %c0_i32_0 : i32, i32
  }
  func.func @transform_17(%arg0: i32) -> (i32, i32, i32) {
    %c0_i32 = arith.constant 0 : i32
    %c0_i32_0 = arith.constant 0 : i32
    %c0_i32_1 = arith.constant 0 : i32
    return %arg0, %c0_i32, %c0_i32_0 : i32, i32, i32
  }
}

module attributes {stable_mosaic.version = 11 : i64} {
  func.func @_tblock_kernel(%arg0: i32, %arg1: memref<1x16x32xf32, #tpu.memory_space<vmem>>, %arg2: memref<2x32x16xbf16, #tpu.memory_space<vmem>>, %arg3: memref<2x1x16xf32, #tpu.memory_space<vmem>>, %arg4: memref<2x32x16xbf16, #tpu.memory_space<vmem>>, %arg5: memref<2x1x16xf32, #tpu.memory_space<vmem>>, %arg6: memref<2x32x16xbf16, #tpu.memory_space<vmem>>, %arg7: memref<2x1x16xf32, #tpu.memory_space<vmem>>, %arg8: memref<2x16x32xbf16, #tpu.memory_space<vmem>>, %arg9: memref<1x32xf32, #tpu.memory_space<vmem>>, %arg10: memref<32x64xbf16, #tpu.memory_space<vmem>>, %arg11: memref<1x64xf32, #tpu.memory_space<vmem>>, %arg12: memref<64x32xbf16, #tpu.memory_space<vmem>>, %arg13: memref<1x32xf32, #tpu.memory_space<vmem>>, %arg14: memref<1x32xf32, #tpu.memory_space<vmem>>, %arg15: memref<1x32xf32, #tpu.memory_space<vmem>>, %arg16: memref<1x32xf32, #tpu.memory_space<vmem>>, %arg17: memref<1x32xf32, #tpu.memory_space<vmem>>, %arg18: memref<1x16x32xf32, #tpu.memory_space<vmem>>) attributes {dimension_semantics = [#tpu.dimension_semantics<parallel>], iteration_bounds = array<i64: 2>, scalar_prefetch = 0 : i64, scratch_operands = 0 : i64, tpu.core_type = #tpu.core_type<tc>, window_params = [{transform_indices = @transform_0, window_bounds = array<i64: 1, 16, 32>}, {pipeline_mode = #tpu.pipeline_mode<synchronous>, transform_indices = @transform_1, window_bounds = array<i64: 2, 32, 16>}, {pipeline_mode = #tpu.pipeline_mode<synchronous>, transform_indices = @transform_2, window_bounds = array<i64: 2, 1, 16>}, {pipeline_mode = #tpu.pipeline_mode<synchronous>, transform_indices = @transform_3, window_bounds = array<i64: 2, 32, 16>}, {pipeline_mode = #tpu.pipeline_mode<synchronous>, transform_indices = @transform_4, window_bounds = array<i64: 2, 1, 16>}, {pipeline_mode = #tpu.pipeline_mode<synchronous>, transform_indices = @transform_5, window_bounds = array<i64: 2, 32, 16>}, {pipeline_mode = #tpu.pipeline_mode<synchronous>, transform_indices = @transform_6, window_bounds = array<i64: 2, 1, 16>}, {pipeline_mode = #tpu.pipeline_mode<synchronous>, transform_indices = @transform_7, window_bounds = array<i64: 2, 16, 32>}, {pipeline_mode = #tpu.pipeline_mode<synchronous>, transform_indices = @transform_8, window_bounds = array<i64: 1, 32>}, {pipeline_mode = #tpu.pipeline_mode<synchronous>, transform_indices = @transform_9, window_bounds = array<i64: 32, 64>}, {pipeline_mode = #tpu.pipeline_mode<synchronous>, transform_indices = @transform_10, window_bounds = array<i64: 1, 64>}, {pipeline_mode = #tpu.pipeline_mode<synchronous>, transform_indices = @transform_11, window_bounds = array<i64: 64, 32>}, {pipeline_mode = #tpu.pipeline_mode<synchronous>, transform_indices = @transform_12, window_bounds = array<i64: 1, 32>}, {pipeline_mode = #tpu.pipeline_mode<synchronous>, transform_indices = @transform_13, window_bounds = array<i64: 1, 32>}, {pipeline_mode = #tpu.pipeline_mode<synchronous>, transform_indices = @transform_14, window_bounds = array<i64: 1, 32>}, {pipeline_mode = #tpu.pipeline_mode<synchronous>, transform_indices = @transform_15, window_bounds = array<i64: 1, 32>}, {pipeline_mode = #tpu.pipeline_mode<synchronous>, transform_indices = @transform_16, window_bounds = array<i64: 1, 32>}, {transform_indices = @transform_17, window_bounds = array<i64: 1, 16, 32>}]} {
    %c0 = arith.constant 0 : index
    %c0_0 = arith.constant 0 : index
    %c0_1 = arith.constant 0 : index
    %0 = vector.load %arg1[%c0, %c0_0, %c0_1] : memref<1x16x32xf32, #tpu.memory_space<vmem>>, vector<1x16x32xf32>
    %1 = vector.shape_cast %0 : vector<1x16x32xf32> to vector<16x32xf32>
    %2 = arith.truncf %1 : vector<16x32xf32> to vector<16x32xbf16>
    %c0_2 = arith.constant 0 : index
    %c0_3 = arith.constant 0 : index
    %c0_4 = arith.constant 0 : index
    %3 = vector.load %arg2[%c0_2, %c0_3, %c0_4] : memref<2x32x16xbf16, #tpu.memory_space<vmem>>, vector<1x32x16xbf16>
    %4 = vector.shape_cast %3 : vector<1x32x16xbf16> to vector<32x16xbf16>
    %cst = arith.constant dense<0.000000e+00> : vector<16x16xf32>
    %5 = tpu.matmul %2, %4, %cst {dimension_numbers = #tpu.dot_dimension_numbers<[1], [0], [0], [1], [0, 0, 1, 1], [], []>} : vector<16x32xbf16>, vector<32x16xbf16>, vector<16x16xf32> -> vector<16x16xf32>
    %c0_5 = arith.constant 0 : index
    %c0_6 = arith.constant 0 : index
    %c0_7 = arith.constant 0 : index
    %6 = vector.load %arg3[%c0_5, %c0_6, %c0_7] : memref<2x1x16xf32, #tpu.memory_space<vmem>>, vector<1x1x16xf32>
    %7 = vector.shape_cast %6 : vector<1x1x16xf32> to vector<1x16xf32>
    %8 = vector.broadcast %7 : vector<1x16xf32> to vector<16x16xf32>
    %9 = arith.addf %5, %8 : vector<16x16xf32>
    %c0_8 = arith.constant 0 : index
    %c0_9 = arith.constant 0 : index
    %c0_10 = arith.constant 0 : index
    %10 = vector.load %arg4[%c0_8, %c0_9, %c0_10] : memref<2x32x16xbf16, #tpu.memory_space<vmem>>, vector<1x32x16xbf16>
    %11 = vector.shape_cast %10 : vector<1x32x16xbf16> to vector<32x16xbf16>
    %cst_11 = arith.constant dense<0.000000e+00> : vector<16x16xf32>
    %12 = tpu.matmul %2, %11, %cst_11 {dimension_numbers = #tpu.dot_dimension_numbers<[1], [0], [0], [1], [0, 0, 1, 1], [], []>} : vector<16x32xbf16>, vector<32x16xbf16>, vector<16x16xf32> -> vector<16x16xf32>
    %c0_12 = arith.constant 0 : index
    %c0_13 = arith.constant 0 : index
    %c0_14 = arith.constant 0 : index
    %13 = vector.load %arg5[%c0_12, %c0_13, %c0_14] : memref<2x1x16xf32, #tpu.memory_space<vmem>>, vector<1x1x16xf32>
    %14 = vector.shape_cast %13 : vector<1x1x16xf32> to vector<1x16xf32>
    %15 = vector.broadcast %14 : vector<1x16xf32> to vector<16x16xf32>
    %16 = arith.addf %12, %15 : vector<16x16xf32>
    %c0_15 = arith.constant 0 : index
    %c0_16 = arith.constant 0 : index
    %c0_17 = arith.constant 0 : index
    %17 = vector.load %arg6[%c0_15, %c0_16, %c0_17] : memref<2x32x16xbf16, #tpu.memory_space<vmem>>, vector<1x32x16xbf16>
    %18 = vector.shape_cast %17 : vector<1x32x16xbf16> to vector<32x16xbf16>
    %cst_18 = arith.constant dense<0.000000e+00> : vector<16x16xf32>
    %19 = tpu.matmul %2, %18, %cst_18 {dimension_numbers = #tpu.dot_dimension_numbers<[1], [0], [0], [1], [0, 0, 1, 1], [], []>} : vector<16x32xbf16>, vector<32x16xbf16>, vector<16x16xf32> -> vector<16x16xf32>
    %c0_19 = arith.constant 0 : index
    %c0_20 = arith.constant 0 : index
    %c0_21 = arith.constant 0 : index
    %20 = vector.load %arg7[%c0_19, %c0_20, %c0_21] : memref<2x1x16xf32, #tpu.memory_space<vmem>>, vector<1x1x16xf32>
    %21 = vector.shape_cast %20 : vector<1x1x16xf32> to vector<1x16xf32>
    %22 = vector.broadcast %21 : vector<1x16xf32> to vector<16x16xf32>
    %23 = arith.addf %19, %22 : vector<16x16xf32>
    %24 = arith.truncf %9 : vector<16x16xf32> to vector<16x16xbf16>
    %25 = arith.truncf %16 : vector<16x16xf32> to vector<16x16xbf16>
    %cst_22 = arith.constant dense<0.000000e+00> : vector<16x16xf32>
    %26 = tpu.matmul %24, %25, %cst_22 {dimension_numbers = #tpu.dot_dimension_numbers<[1], [1], [0], [0], [0, 0, 1, 0], [], []>} : vector<16x16xbf16>, vector<16x16xbf16>, vector<16x16xf32> -> vector<16x16xf32>
    %cst_23 = arith.constant 2.500000e-01 : f32
    %27 = vector.broadcast %cst_23 : f32 to vector<16x16xf32>
    %28 = arith.mulf %26, %27 : vector<16x16xf32>
    %cst_24 = arith.constant dense<0xFF800000> : vector<16xf32>
    %29 = vector.multi_reduction <maximumf>, %28, %cst_24 [1] : vector<16x16xf32> to vector<16xf32>
    %30 = vector.shape_cast %29 : vector<16xf32> to vector<16x1xf32>
    %31 = vector.broadcast %30 : vector<16x1xf32> to vector<16x16xf32>
    %32 = arith.subf %28, %31 : vector<16x16xf32>
    %33 = math.exp %32 : vector<16x16xf32>
    %cst_25 = arith.constant dense<0.000000e+00> : vector<16xf32>
    %34 = vector.multi_reduction <add>, %33, %cst_25 [1] : vector<16x16xf32> to vector<16xf32>
    %35 = vector.shape_cast %34 : vector<16xf32> to vector<16x1xf32>
    %36 = tpu.reciprocal %35 {approx = true} : vector<16x1xf32> -> vector<16x1xf32>
    %37 = vector.broadcast %36 : vector<16x1xf32> to vector<16x16xf32>
    %38 = arith.mulf %33, %37 : vector<16x16xf32>
    %39 = arith.truncf %38 : vector<16x16xf32> to vector<16x16xbf16>
    %40 = arith.truncf %23 : vector<16x16xf32> to vector<16x16xbf16>
    %cst_26 = arith.constant dense<0.000000e+00> : vector<16x16xf32>
    %41 = tpu.matmul %39, %40, %cst_26 {dimension_numbers = #tpu.dot_dimension_numbers<[1], [0], [0], [1], [0, 0, 1, 1], [], []>} : vector<16x16xbf16>, vector<16x16xbf16>, vector<16x16xf32> -> vector<16x16xf32>
    %42 = arith.truncf %41 : vector<16x16xf32> to vector<16x16xbf16>
    %c0_27 = arith.constant 0 : index
    %c0_28 = arith.constant 0 : index
    %c0_29 = arith.constant 0 : index
    %43 = vector.load %arg8[%c0_27, %c0_28, %c0_29] : memref<2x16x32xbf16, #tpu.memory_space<vmem>>, vector<1x16x32xbf16>
    %44 = vector.shape_cast %43 : vector<1x16x32xbf16> to vector<16x32xbf16>
    %cst_30 = arith.constant dense<0.000000e+00> : vector<16x32xf32>
    %45 = tpu.matmul %42, %44, %cst_30 {dimension_numbers = #tpu.dot_dimension_numbers<[1], [0], [0], [1], [0, 0, 1, 1], [], []>} : vector<16x16xbf16>, vector<16x32xbf16>, vector<16x32xf32> -> vector<16x32xf32>
    %c1 = arith.constant 1 : index
    %c0_31 = arith.constant 0 : index
    %c0_32 = arith.constant 0 : index
    %46 = vector.load %arg2[%c1, %c0_31, %c0_32] : memref<2x32x16xbf16, #tpu.memory_space<vmem>>, vector<1x32x16xbf16>
    %47 = vector.shape_cast %46 : vector<1x32x16xbf16> to vector<32x16xbf16>
    %cst_33 = arith.constant dense<0.000000e+00> : vector<16x16xf32>
    %48 = tpu.matmul %2, %47, %cst_33 {dimension_numbers = #tpu.dot_dimension_numbers<[1], [0], [0], [1], [0, 0, 1, 1], [], []>} : vector<16x32xbf16>, vector<32x16xbf16>, vector<16x16xf32> -> vector<16x16xf32>
    %c1_34 = arith.constant 1 : index
    %c0_35 = arith.constant 0 : index
    %c0_36 = arith.constant 0 : index
    %49 = vector.load %arg3[%c1_34, %c0_35, %c0_36] : memref<2x1x16xf32, #tpu.memory_space<vmem>>, vector<1x1x16xf32>
    %50 = vector.shape_cast %49 : vector<1x1x16xf32> to vector<1x16xf32>
    %51 = vector.broadcast %50 : vector<1x16xf32> to vector<16x16xf32>
    %52 = arith.addf %48, %51 : vector<16x16xf32>
    %c1_37 = arith.constant 1 : index
    %c0_38 = arith.constant 0 : index
    %c0_39 = arith.constant 0 : index
    %53 = vector.load %arg4[%c1_37, %c0_38, %c0_39] : memref<2x32x16xbf16, #tpu.memory_space<vmem>>, vector<1x32x16xbf16>
    %54 = vector.shape_cast %53 : vector<1x32x16xbf16> to vector<32x16xbf16>
    %cst_40 = arith.constant dense<0.000000e+00> : vector<16x16xf32>
    %55 = tpu.matmul %2, %54, %cst_40 {dimension_numbers = #tpu.dot_dimension_numbers<[1], [0], [0], [1], [0, 0, 1, 1], [], []>} : vector<16x32xbf16>, vector<32x16xbf16>, vector<16x16xf32> -> vector<16x16xf32>
    %c1_41 = arith.constant 1 : index
    %c0_42 = arith.constant 0 : index
    %c0_43 = arith.constant 0 : index
    %56 = vector.load %arg5[%c1_41, %c0_42, %c0_43] : memref<2x1x16xf32, #tpu.memory_space<vmem>>, vector<1x1x16xf32>
    %57 = vector.shape_cast %56 : vector<1x1x16xf32> to vector<1x16xf32>
    %58 = vector.broadcast %57 : vector<1x16xf32> to vector<16x16xf32>
    %59 = arith.addf %55, %58 : vector<16x16xf32>
    %c1_44 = arith.constant 1 : index
    %c0_45 = arith.constant 0 : index
    %c0_46 = arith.constant 0 : index
    %60 = vector.load %arg6[%c1_44, %c0_45, %c0_46] : memref<2x32x16xbf16, #tpu.memory_space<vmem>>, vector<1x32x16xbf16>
    %61 = vector.shape_cast %60 : vector<1x32x16xbf16> to vector<32x16xbf16>
    %cst_47 = arith.constant dense<0.000000e+00> : vector<16x16xf32>
    %62 = tpu.matmul %2, %61, %cst_47 {dimension_numbers = #tpu.dot_dimension_numbers<[1], [0], [0], [1], [0, 0, 1, 1], [], []>} : vector<16x32xbf16>, vector<32x16xbf16>, vector<16x16xf32> -> vector<16x16xf32>
    %c1_48 = arith.constant 1 : index
    %c0_49 = arith.constant 0 : index
    %c0_50 = arith.constant 0 : index
    %63 = vector.load %arg7[%c1_48, %c0_49, %c0_50] : memref<2x1x16xf32, #tpu.memory_space<vmem>>, vector<1x1x16xf32>
    %64 = vector.shape_cast %63 : vector<1x1x16xf32> to vector<1x16xf32>
    %65 = vector.broadcast %64 : vector<1x16xf32> to vector<16x16xf32>
    %66 = arith.addf %62, %65 : vector<16x16xf32>
    %67 = arith.truncf %52 : vector<16x16xf32> to vector<16x16xbf16>
    %68 = arith.truncf %59 : vector<16x16xf32> to vector<16x16xbf16>
    %cst_51 = arith.constant dense<0.000000e+00> : vector<16x16xf32>
    %69 = tpu.matmul %67, %68, %cst_51 {dimension_numbers = #tpu.dot_dimension_numbers<[1], [1], [0], [0], [0, 0, 1, 0], [], []>} : vector<16x16xbf16>, vector<16x16xbf16>, vector<16x16xf32> -> vector<16x16xf32>
    %cst_52 = arith.constant 2.500000e-01 : f32
    %70 = vector.broadcast %cst_52 : f32 to vector<16x16xf32>
    %71 = arith.mulf %69, %70 : vector<16x16xf32>
    %cst_53 = arith.constant dense<0xFF800000> : vector<16xf32>
    %72 = vector.multi_reduction <maximumf>, %71, %cst_53 [1] : vector<16x16xf32> to vector<16xf32>
    %73 = vector.shape_cast %72 : vector<16xf32> to vector<16x1xf32>
    %74 = vector.broadcast %73 : vector<16x1xf32> to vector<16x16xf32>
    %75 = arith.subf %71, %74 : vector<16x16xf32>
    %76 = math.exp %75 : vector<16x16xf32>
    %cst_54 = arith.constant dense<0.000000e+00> : vector<16xf32>
    %77 = vector.multi_reduction <add>, %76, %cst_54 [1] : vector<16x16xf32> to vector<16xf32>
    %78 = vector.shape_cast %77 : vector<16xf32> to vector<16x1xf32>
    %79 = tpu.reciprocal %78 {approx = true} : vector<16x1xf32> -> vector<16x1xf32>
    %80 = vector.broadcast %79 : vector<16x1xf32> to vector<16x16xf32>
    %81 = arith.mulf %76, %80 : vector<16x16xf32>
    %82 = arith.truncf %81 : vector<16x16xf32> to vector<16x16xbf16>
    %83 = arith.truncf %66 : vector<16x16xf32> to vector<16x16xbf16>
    %cst_55 = arith.constant dense<0.000000e+00> : vector<16x16xf32>
    %84 = tpu.matmul %82, %83, %cst_55 {dimension_numbers = #tpu.dot_dimension_numbers<[1], [0], [0], [1], [0, 0, 1, 1], [], []>} : vector<16x16xbf16>, vector<16x16xbf16>, vector<16x16xf32> -> vector<16x16xf32>
    %85 = arith.truncf %84 : vector<16x16xf32> to vector<16x16xbf16>
    %c1_56 = arith.constant 1 : index
    %c0_57 = arith.constant 0 : index
    %c0_58 = arith.constant 0 : index
    %86 = vector.load %arg8[%c1_56, %c0_57, %c0_58] : memref<2x16x32xbf16, #tpu.memory_space<vmem>>, vector<1x16x32xbf16>
    %87 = vector.shape_cast %86 : vector<1x16x32xbf16> to vector<16x32xbf16>
    %cst_59 = arith.constant dense<0.000000e+00> : vector<16x32xf32>
    %88 = tpu.matmul %85, %87, %cst_59 {dimension_numbers = #tpu.dot_dimension_numbers<[1], [0], [0], [1], [0, 0, 1, 1], [], []>} : vector<16x16xbf16>, vector<16x32xbf16>, vector<16x32xf32> -> vector<16x32xf32>
    %89 = arith.addf %45, %88 : vector<16x32xf32>
    %c0_60 = arith.constant 0 : index
    %c0_61 = arith.constant 0 : index
    %90 = vector.load %arg9[%c0_60, %c0_61] : memref<1x32xf32, #tpu.memory_space<vmem>>, vector<1x32xf32>
    %91 = vector.broadcast %90 : vector<1x32xf32> to vector<16x32xf32>
    %92 = arith.addf %89, %91 : vector<16x32xf32>
    %93 = arith.addf %92, %1 : vector<16x32xf32>
    %c0_62 = arith.constant 0 : index
    %c0_63 = arith.constant 0 : index
    %94 = vector.load %arg14[%c0_62, %c0_63] : memref<1x32xf32, #tpu.memory_space<vmem>>, vector<1x32xf32>
    %c0_64 = arith.constant 0 : index
    %c0_65 = arith.constant 0 : index
    %95 = vector.load %arg15[%c0_64, %c0_65] : memref<1x32xf32, #tpu.memory_space<vmem>>, vector<1x32xf32>
    %cst_66 = arith.constant dense<0.000000e+00> : vector<16xf32>
    %96 = vector.multi_reduction <add>, %93, %cst_66 [1] : vector<16x32xf32> to vector<16xf32>
    %97 = vector.shape_cast %96 : vector<16xf32> to vector<16x1xf32>
    %cst_67 = arith.constant 3.200000e+01 : f32
    %98 = vector.broadcast %cst_67 : f32 to vector<16x1xf32>
    %99 = arith.divf %97, %98 : vector<16x1xf32>
    %100 = vector.broadcast %99 : vector<16x1xf32> to vector<16x32xf32>
    %101 = arith.subf %93, %100 : vector<16x32xf32>
    %102 = arith.mulf %101, %101 : vector<16x32xf32>
    %cst_68 = arith.constant dense<0.000000e+00> : vector<16xf32>
    %103 = vector.multi_reduction <add>, %102, %cst_68 [1] : vector<16x32xf32> to vector<16xf32>
    %104 = vector.shape_cast %103 : vector<16xf32> to vector<16x1xf32>
    %cst_69 = arith.constant 3.200000e+01 : f32
    %105 = vector.broadcast %cst_69 : f32 to vector<16x1xf32>
    %106 = arith.divf %104, %105 : vector<16x1xf32>
    %cst_70 = arith.constant 9.99999974E-6 : f32
    %107 = vector.broadcast %cst_70 : f32 to vector<16x1xf32>
    %108 = arith.addf %106, %107 : vector<16x1xf32>
    %109 = math.rsqrt %108 : vector<16x1xf32>
    %110 = vector.broadcast %109 : vector<16x1xf32> to vector<16x32xf32>
    %111 = arith.mulf %101, %110 : vector<16x32xf32>
    %112 = vector.broadcast %94 : vector<1x32xf32> to vector<16x32xf32>
    %113 = arith.mulf %111, %112 : vector<16x32xf32>
    %114 = vector.broadcast %95 : vector<1x32xf32> to vector<16x32xf32>
    %115 = arith.addf %113, %114 : vector<16x32xf32>
    %116 = arith.truncf %115 : vector<16x32xf32> to vector<16x32xbf16>
    %c0_71 = arith.constant 0 : index
    %c0_72 = arith.constant 0 : index
    %117 = vector.load %arg10[%c0_71, %c0_72] : memref<32x64xbf16, #tpu.memory_space<vmem>>, vector<32x64xbf16>
    %cst_73 = arith.constant dense<0.000000e+00> : vector<16x64xf32>
    %118 = tpu.matmul %116, %117, %cst_73 {dimension_numbers = #tpu.dot_dimension_numbers<[1], [0], [0], [1], [0, 0, 1, 1], [], []>} : vector<16x32xbf16>, vector<32x64xbf16>, vector<16x64xf32> -> vector<16x64xf32>
    %c0_74 = arith.constant 0 : index
    %c0_75 = arith.constant 0 : index
    %119 = vector.load %arg11[%c0_74, %c0_75] : memref<1x64xf32, #tpu.memory_space<vmem>>, vector<1x64xf32>
    %120 = vector.broadcast %119 : vector<1x64xf32> to vector<16x64xf32>
    %121 = arith.addf %118, %120 : vector<16x64xf32>
    %cst_76 = arith.constant 5.000000e-01 : f32
    %122 = vector.broadcast %cst_76 : f32 to vector<16x64xf32>
    %123 = arith.mulf %122, %121 : vector<16x64xf32>
    %124 = arith.mulf %121, %121 : vector<16x64xf32>
    %125 = arith.mulf %124, %121 : vector<16x64xf32>
    %cst_77 = arith.constant 4.471500e-02 : f32
    %126 = vector.broadcast %cst_77 : f32 to vector<16x64xf32>
    %127 = arith.mulf %126, %125 : vector<16x64xf32>
    %128 = arith.addf %121, %127 : vector<16x64xf32>
    %cst_78 = arith.constant 0.797884583 : f32
    %129 = vector.broadcast %cst_78 : f32 to vector<16x64xf32>
    %130 = arith.mulf %129, %128 : vector<16x64xf32>
    %131 = math.tanh %130 : vector<16x64xf32>
    %cst_79 = arith.constant 1.000000e+00 : f32
    %132 = vector.broadcast %cst_79 : f32 to vector<16x64xf32>
    %133 = arith.addf %132, %131 : vector<16x64xf32>
    %134 = arith.mulf %123, %133 : vector<16x64xf32>
    %135 = arith.truncf %134 : vector<16x64xf32> to vector<16x64xbf16>
    %c0_80 = arith.constant 0 : index
    %c0_81 = arith.constant 0 : index
    %136 = vector.load %arg12[%c0_80, %c0_81] : memref<64x32xbf16, #tpu.memory_space<vmem>>, vector<64x32xbf16>
    %cst_82 = arith.constant dense<0.000000e+00> : vector<16x32xf32>
    %137 = tpu.matmul %135, %136, %cst_82 {dimension_numbers = #tpu.dot_dimension_numbers<[1], [0], [0], [1], [0, 0, 1, 1], [], []>} : vector<16x64xbf16>, vector<64x32xbf16>, vector<16x32xf32> -> vector<16x32xf32>
    %c0_83 = arith.constant 0 : index
    %c0_84 = arith.constant 0 : index
    %138 = vector.load %arg13[%c0_83, %c0_84] : memref<1x32xf32, #tpu.memory_space<vmem>>, vector<1x32xf32>
    %139 = vector.broadcast %138 : vector<1x32xf32> to vector<16x32xf32>
    %140 = arith.addf %137, %139 : vector<16x32xf32>
    %cst_85 = arith.constant 5.000000e-01 : f32
    %141 = vector.broadcast %cst_85 : f32 to vector<16x32xf32>
    %142 = arith.mulf %141, %140 : vector<16x32xf32>
    %143 = arith.mulf %140, %140 : vector<16x32xf32>
    %144 = arith.mulf %143, %140 : vector<16x32xf32>
    %cst_86 = arith.constant 4.471500e-02 : f32
    %145 = vector.broadcast %cst_86 : f32 to vector<16x32xf32>
    %146 = arith.mulf %145, %144 : vector<16x32xf32>
    %147 = arith.addf %140, %146 : vector<16x32xf32>
    %cst_87 = arith.constant 0.797884583 : f32
    %148 = vector.broadcast %cst_87 : f32 to vector<16x32xf32>
    %149 = arith.mulf %148, %147 : vector<16x32xf32>
    %150 = math.tanh %149 : vector<16x32xf32>
    %cst_88 = arith.constant 1.000000e+00 : f32
    %151 = vector.broadcast %cst_88 : f32 to vector<16x32xf32>
    %152 = arith.addf %151, %150 : vector<16x32xf32>
    %153 = arith.mulf %142, %152 : vector<16x32xf32>
    %154 = arith.addf %153, %1 : vector<16x32xf32>
    %c0_89 = arith.constant 0 : index
    %c0_90 = arith.constant 0 : index
    %155 = vector.load %arg16[%c0_89, %c0_90] : memref<1x32xf32, #tpu.memory_space<vmem>>, vector<1x32xf32>
    %c0_91 = arith.constant 0 : index
    %c0_92 = arith.constant 0 : index
    %156 = vector.load %arg17[%c0_91, %c0_92] : memref<1x32xf32, #tpu.memory_space<vmem>>, vector<1x32xf32>
    %cst_93 = arith.constant dense<0.000000e+00> : vector<16xf32>
    %157 = vector.multi_reduction <add>, %154, %cst_93 [1] : vector<16x32xf32> to vector<16xf32>
    %158 = vector.shape_cast %157 : vector<16xf32> to vector<16x1xf32>
    %cst_94 = arith.constant 3.200000e+01 : f32
    %159 = vector.broadcast %cst_94 : f32 to vector<16x1xf32>
    %160 = arith.divf %158, %159 : vector<16x1xf32>
    %161 = vector.broadcast %160 : vector<16x1xf32> to vector<16x32xf32>
    %162 = arith.subf %154, %161 : vector<16x32xf32>
    %163 = arith.mulf %162, %162 : vector<16x32xf32>
    %cst_95 = arith.constant dense<0.000000e+00> : vector<16xf32>
    %164 = vector.multi_reduction <add>, %163, %cst_95 [1] : vector<16x32xf32> to vector<16xf32>
    %165 = vector.shape_cast %164 : vector<16xf32> to vector<16x1xf32>
    %cst_96 = arith.constant 3.200000e+01 : f32
    %166 = vector.broadcast %cst_96 : f32 to vector<16x1xf32>
    %167 = arith.divf %165, %166 : vector<16x1xf32>
    %cst_97 = arith.constant 9.99999974E-6 : f32
    %168 = vector.broadcast %cst_97 : f32 to vector<16x1xf32>
    %169 = arith.addf %167, %168 : vector<16x1xf32>
    %170 = math.rsqrt %169 : vector<16x1xf32>
    %171 = vector.broadcast %170 : vector<16x1xf32> to vector<16x32xf32>
    %172 = arith.mulf %162, %171 : vector<16x32xf32>
    %173 = vector.broadcast %155 : vector<1x32xf32> to vector<16x32xf32>
    %174 = arith.mulf %172, %173 : vector<16x32xf32>
    %175 = vector.broadcast %156 : vector<1x32xf32> to vector<16x32xf32>
    %176 = arith.addf %174, %175 : vector<16x32xf32>
    %c0_98 = arith.constant 0 : index
    %c0_99 = arith.constant 0 : index
    %c0_100 = arith.constant 0 : index
    %177 = vector.load %arg18[%c0_98, %c0_99, %c0_100] : memref<1x16x32xf32, #tpu.memory_space<vmem>>, vector<1x16x32xf32>
    %178 = vector.shape_cast %177 : vector<1x16x32xf32> to vector<16x32xf32>
    %179 = vector.shape_cast %176 : vector<16x32xf32> to vector<1x16x32xf32>
    tpu.vector_store %arg18[%c0_98, %c0_99, %c0_100], %179 {strides = array<i32>} : memref<1x16x32xf32, #tpu.memory_space<vmem>>, vector<1x16x32xf32>,
    return
  }
  func.func @transform_0(%arg0: i32) -> (i32, i32, i32) {
    %c0_i32 = arith.constant 0 : i32
    %c0_i32_0 = arith.constant 0 : i32
    %c0_i32_1 = arith.constant 0 : i32
    return %arg0, %c0_i32, %c0_i32_0 : i32, i32, i32
  }
  func.func @transform_1(%arg0: i32) -> (i32, i32, i32) {
    %c0_i32 = arith.constant 0 : i32
    %c0_i32_0 = arith.constant 0 : i32
    %c0_i32_1 = arith.constant 0 : i32
    %c0_i32_2 = arith.constant 0 : i32
    return %c0_i32, %c0_i32_0, %c0_i32_1 : i32, i32, i32
  }
  func.func @transform_2(%arg0: i32) -> (i32, i32, i32) {
    %c0_i32 = arith.constant 0 : i32
    %c0_i32_0 = arith.constant 0 : i32
    %c0_i32_1 = arith.constant 0 : i32
    %c0_i32_2 = arith.constant 0 : i32
    return %c0_i32, %c0_i32_0, %c0_i32_1 : i32, i32, i32
  }
  func.func @transform_3(%arg0: i32) -> (i32, i32, i32) {
    %c0_i32 = arith.constant 0 : i32
    %c0_i32_0 = arith.constant 0 : i32
    %c0_i32_1 = arith.constant 0 : i32
    %c0_i32_2 = arith.constant 0 : i32
    return %c0_i32, %c0_i32_0, %c0_i32_1 : i32, i32, i32
  }
  func.func @transform_4(%arg0: i32) -> (i32, i32, i32) {
    %c0_i32 = arith.constant 0 : i32
    %c0_i32_0 = arith.constant 0 : i32
    %c0_i32_1 = arith.constant 0 : i32
    %c0_i32_2 = arith.constant 0 : i32
    return %c0_i32, %c0_i32_0, %c0_i32_1 : i32, i32, i32
  }
  func.func @transform_5(%arg0: i32) -> (i32, i32, i32) {
    %c0_i32 = arith.constant 0 : i32
    %c0_i32_0 = arith.constant 0 : i32
    %c0_i32_1 = arith.constant 0 : i32
    %c0_i32_2 = arith.constant 0 : i32
    return %c0_i32, %c0_i32_0, %c0_i32_1 : i32, i32, i32
  }
  func.func @transform_6(%arg0: i32) -> (i32, i32, i32) {
    %c0_i32 = arith.constant 0 : i32
    %c0_i32_0 = arith.constant 0 : i32
    %c0_i32_1 = arith.constant 0 : i32
    %c0_i32_2 = arith.constant 0 : i32
    return %c0_i32, %c0_i32_0, %c0_i32_1 : i32, i32, i32
  }
  func.func @transform_7(%arg0: i32) -> (i32, i32, i32) {
    %c0_i32 = arith.constant 0 : i32
    %c0_i32_0 = arith.constant 0 : i32
    %c0_i32_1 = arith.constant 0 : i32
    %c0_i32_2 = arith.constant 0 : i32
    return %c0_i32, %c0_i32_0, %c0_i32_1 : i32, i32, i32
  }
  func.func @transform_8(%arg0: i32) -> (i32, i32) {
    %c0_i32 = arith.constant 0 : i32
    %c0_i32_0 = arith.constant 0 : i32
    %c0_i32_1 = arith.constant 0 : i32
    return %c0_i32, %c0_i32_0 : i32, i32
  }
  func.func @transform_9(%arg0: i32) -> (i32, i32) {
    %c0_i32 = arith.constant 0 : i32
    %c0_i32_0 = arith.constant 0 : i32
    %c0_i32_1 = arith.constant 0 : i32
    return %c0_i32, %c0_i32_0 : i32, i32
  }
  func.func @transform_10(%arg0: i32) -> (i32, i32) {
    %c0_i32 = arith.constant 0 : i32
    %c0_i32_0 = arith.constant 0 : i32
    %c0_i32_1 = arith.constant 0 : i32
    return %c0_i32, %c0_i32_0 : i32, i32
  }
  func.func @transform_11(%arg0: i32) -> (i32, i32) {
    %c0_i32 = arith.constant 0 : i32
    %c0_i32_0 = arith.constant 0 : i32
    %c0_i32_1 = arith.constant 0 : i32
    return %c0_i32, %c0_i32_0 : i32, i32
  }
  func.func @transform_12(%arg0: i32) -> (i32, i32) {
    %c0_i32 = arith.constant 0 : i32
    %c0_i32_0 = arith.constant 0 : i32
    %c0_i32_1 = arith.constant 0 : i32
    return %c0_i32, %c0_i32_0 : i32, i32
  }
  func.func @transform_13(%arg0: i32) -> (i32, i32) {
    %c0_i32 = arith.constant 0 : i32
    %c0_i32_0 = arith.constant 0 : i32
    %c0_i32_1 = arith.constant 0 : i32
    return %c0_i32, %c0_i32_0 : i32, i32
  }
  func.func @transform_14(%arg0: i32) -> (i32, i32) {
    %c0_i32 = arith.constant 0 : i32
    %c0_i32_0 = arith.constant 0 : i32
    %c0_i32_1 = arith.constant 0 : i32
    return %c0_i32, %c0_i32_0 : i32, i32
  }
  func.func @transform_15(%arg0: i32) -> (i32, i32) {
    %c0_i32 = arith.constant 0 : i32
    %c0_i32_0 = arith.constant 0 : i32
    %c0_i32_1 = arith.constant 0 : i32
    return %c0_i32, %c0_i32_0 : i32, i32
  }
  func.func @transform_16(%arg0: i32) -> (i32, i32) {
    %c0_i32 = arith.constant 0 : i32
    %c0_i32_0 = arith.constant 0 : i32
    %c0_i32_1 = arith.constant 0 : i32
    return %c0_i32, %c0_i32_0 : i32, i32
  }
  func.func @transform_17(%arg0: i32) -> (i32, i32, i32) {
    %c0_i32 = arith.constant 0 : i32
    %c0_i32_0 = arith.constant 0 : i32
    %c0_i32_1 = arith.constant 0 : i32
    return %arg0, %c0_i32, %c0_i32_0 : i32, i32, i32
  }
}

module attributes {stable_mosaic.version = 11 : i64} {
  func.func @_mixer_kernel(%arg0: i32, %arg1: memref<1x16x32xf32, #tpu.memory_space<vmem>>, %arg2: memref<1x8x32xf32, #tpu.memory_space<vmem>>, %arg3: memref<32x16xbf16, #tpu.memory_space<vmem>>, %arg4: memref<32x1xf32, #tpu.memory_space<vmem>>, %arg5: memref<8x32xbf16, #tpu.memory_space<vmem>>, %arg6: memref<8x1xf32, #tpu.memory_space<vmem>>, %arg7: memref<32x64xbf16, #tpu.memory_space<vmem>>, %arg8: memref<32x64xbf16, #tpu.memory_space<vmem>>, %arg9: memref<1x64xf32, #tpu.memory_space<vmem>>, %arg10: memref<64x32xbf16, #tpu.memory_space<vmem>>, %arg11: memref<1x32xf32, #tpu.memory_space<vmem>>, %arg12: memref<1x8x32xf32, #tpu.memory_space<vmem>>) attributes {dimension_semantics = [#tpu.dimension_semantics<parallel>], iteration_bounds = array<i64: 2>, scalar_prefetch = 0 : i64, scratch_operands = 0 : i64, tpu.core_type = #tpu.core_type<tc>, window_params = [{transform_indices = @transform_0, window_bounds = array<i64: 1, 16, 32>}, {transform_indices = @transform_1, window_bounds = array<i64: 1, 8, 32>}, {pipeline_mode = #tpu.pipeline_mode<synchronous>, transform_indices = @transform_2, window_bounds = array<i64: 32, 16>}, {pipeline_mode = #tpu.pipeline_mode<synchronous>, transform_indices = @transform_3, window_bounds = array<i64: 32, 1>}, {pipeline_mode = #tpu.pipeline_mode<synchronous>, transform_indices = @transform_4, window_bounds = array<i64: 8, 32>}, {pipeline_mode = #tpu.pipeline_mode<synchronous>, transform_indices = @transform_5, window_bounds = array<i64: 8, 1>}, {pipeline_mode = #tpu.pipeline_mode<synchronous>, transform_indices = @transform_6, window_bounds = array<i64: 32, 64>}, {pipeline_mode = #tpu.pipeline_mode<synchronous>, transform_indices = @transform_7, window_bounds = array<i64: 32, 64>}, {pipeline_mode = #tpu.pipeline_mode<synchronous>, transform_indices = @transform_8, window_bounds = array<i64: 1, 64>}, {pipeline_mode = #tpu.pipeline_mode<synchronous>, transform_indices = @transform_9, window_bounds = array<i64: 64, 32>}, {pipeline_mode = #tpu.pipeline_mode<synchronous>, transform_indices = @transform_10, window_bounds = array<i64: 1, 32>}, {transform_indices = @transform_11, window_bounds = array<i64: 1, 8, 32>}]} {
    %c0 = arith.constant 0 : index
    %c0_0 = arith.constant 0 : index
    %c0_1 = arith.constant 0 : index
    %0 = vector.load %arg1[%c0, %c0_0, %c0_1] : memref<1x16x32xf32, #tpu.memory_space<vmem>>, vector<1x16x32xf32>
    %1 = vector.shape_cast %0 : vector<1x16x32xf32> to vector<16x32xf32>
    %2 = arith.truncf %1 : vector<16x32xf32> to vector<16x32xbf16>
    %c0_2 = arith.constant 0 : index
    %c0_3 = arith.constant 0 : index
    %c0_4 = arith.constant 0 : index
    %3 = vector.load %arg2[%c0_2, %c0_3, %c0_4] : memref<1x8x32xf32, #tpu.memory_space<vmem>>, vector<1x8x32xf32>
    %4 = vector.shape_cast %3 : vector<1x8x32xf32> to vector<8x32xf32>
    %5 = arith.truncf %4 : vector<8x32xf32> to vector<8x32xbf16>
    %c0_5 = arith.constant 0 : index
    %c0_6 = arith.constant 0 : index
    %6 = vector.load %arg3[%c0_5, %c0_6] : memref<32x16xbf16, #tpu.memory_space<vmem>>, vector<32x16xbf16>
    %cst = arith.constant dense<0.000000e+00> : vector<32x32xf32>
    %7 = tpu.matmul %6, %2, %cst {dimension_numbers = #tpu.dot_dimension_numbers<[1], [0], [0], [1], [0, 0, 1, 1], [], []>} : vector<32x16xbf16>, vector<16x32xbf16>, vector<32x32xf32> -> vector<32x32xf32>
    %c0_7 = arith.constant 0 : index
    %c0_8 = arith.constant 0 : index
    %8 = vector.load %arg4[%c0_7, %c0_8] : memref<32x1xf32, #tpu.memory_space<vmem>>, vector<32x1xf32>
    %9 = vector.broadcast %8 : vector<32x1xf32> to vector<32x32xf32>
    %10 = arith.addf %7, %9 : vector<32x32xf32>
    %cst_9 = arith.constant 5.000000e-01 : f32
    %11 = vector.broadcast %cst_9 : f32 to vector<32x32xf32>
    %12 = arith.mulf %11, %10 : vector<32x32xf32>
    %13 = arith.mulf %10, %10 : vector<32x32xf32>
    %14 = arith.mulf %13, %10 : vector<32x32xf32>
    %cst_10 = arith.constant 4.471500e-02 : f32
    %15 = vector.broadcast %cst_10 : f32 to vector<32x32xf32>
    %16 = arith.mulf %15, %14 : vector<32x32xf32>
    %17 = arith.addf %10, %16 : vector<32x32xf32>
    %cst_11 = arith.constant 0.797884583 : f32
    %18 = vector.broadcast %cst_11 : f32 to vector<32x32xf32>
    %19 = arith.mulf %18, %17 : vector<32x32xf32>
    %20 = math.tanh %19 : vector<32x32xf32>
    %cst_12 = arith.constant 1.000000e+00 : f32
    %21 = vector.broadcast %cst_12 : f32 to vector<32x32xf32>
    %22 = arith.addf %21, %20 : vector<32x32xf32>
    %23 = arith.mulf %12, %22 : vector<32x32xf32>
    %c0_13 = arith.constant 0 : index
    %c0_14 = arith.constant 0 : index
    %24 = vector.load %arg5[%c0_13, %c0_14] : memref<8x32xbf16, #tpu.memory_space<vmem>>, vector<8x32xbf16>
    %25 = arith.truncf %23 : vector<32x32xf32> to vector<32x32xbf16>
    %cst_15 = arith.constant dense<0.000000e+00> : vector<8x32xf32>
    %26 = tpu.matmul %24, %25, %cst_15 {dimension_numbers = #tpu.dot_dimension_numbers<[1], [1], [0], [0], [0, 0, 1, 0], [], []>} : vector<8x32xbf16>, vector<32x32xbf16>, vector<8x32xf32> -> vector<8x32xf32>
    %c0_16 = arith.constant 0 : index
    %c0_17 = arith.constant 0 : index
    %27 = vector.load %arg6[%c0_16, %c0_17] : memref<8x1xf32, #tpu.memory_space<vmem>>, vector<8x1xf32>
    %28 = vector.broadcast %27 : vector<8x1xf32> to vector<8x32xf32>
    %29 = arith.addf %26, %28 : vector<8x32xf32>
    %cst_18 = arith.constant 5.000000e-01 : f32
    %30 = vector.broadcast %cst_18 : f32 to vector<8x32xf32>
    %31 = arith.mulf %30, %29 : vector<8x32xf32>
    %32 = arith.mulf %29, %29 : vector<8x32xf32>
    %33 = arith.mulf %32, %29 : vector<8x32xf32>
    %cst_19 = arith.constant 4.471500e-02 : f32
    %34 = vector.broadcast %cst_19 : f32 to vector<8x32xf32>
    %35 = arith.mulf %34, %33 : vector<8x32xf32>
    %36 = arith.addf %29, %35 : vector<8x32xf32>
    %cst_20 = arith.constant 0.797884583 : f32
    %37 = vector.broadcast %cst_20 : f32 to vector<8x32xf32>
    %38 = arith.mulf %37, %36 : vector<8x32xf32>
    %39 = math.tanh %38 : vector<8x32xf32>
    %cst_21 = arith.constant 1.000000e+00 : f32
    %40 = vector.broadcast %cst_21 : f32 to vector<8x32xf32>
    %41 = arith.addf %40, %39 : vector<8x32xf32>
    %42 = arith.mulf %31, %41 : vector<8x32xf32>
    %c0_22 = arith.constant 0 : index
    %c0_23 = arith.constant 0 : index
    %43 = vector.load %arg7[%c0_22, %c0_23] : memref<32x64xbf16, #tpu.memory_space<vmem>>, vector<32x64xbf16>
    %cst_24 = arith.constant dense<0.000000e+00> : vector<8x64xf32>
    %44 = tpu.matmul %5, %43, %cst_24 {dimension_numbers = #tpu.dot_dimension_numbers<[1], [0], [0], [1], [0, 0, 1, 1], [], []>} : vector<8x32xbf16>, vector<32x64xbf16>, vector<8x64xf32> -> vector<8x64xf32>
    %45 = arith.truncf %42 : vector<8x32xf32> to vector<8x32xbf16>
    %c0_25 = arith.constant 0 : index
    %c0_26 = arith.constant 0 : index
    %46 = vector.load %arg8[%c0_25, %c0_26] : memref<32x64xbf16, #tpu.memory_space<vmem>>, vector<32x64xbf16>
    %cst_27 = arith.constant dense<0.000000e+00> : vector<8x64xf32>
    %47 = tpu.matmul %45, %46, %cst_27 {dimension_numbers = #tpu.dot_dimension_numbers<[1], [0], [0], [1], [0, 0, 1, 1], [], []>} : vector<8x32xbf16>, vector<32x64xbf16>, vector<8x64xf32> -> vector<8x64xf32>
    %48 = arith.addf %44, %47 : vector<8x64xf32>
    %c0_28 = arith.constant 0 : index
    %c0_29 = arith.constant 0 : index
    %49 = vector.load %arg9[%c0_28, %c0_29] : memref<1x64xf32, #tpu.memory_space<vmem>>, vector<1x64xf32>
    %50 = vector.broadcast %49 : vector<1x64xf32> to vector<8x64xf32>
    %51 = arith.addf %48, %50 : vector<8x64xf32>
    %cst_30 = arith.constant 5.000000e-01 : f32
    %52 = vector.broadcast %cst_30 : f32 to vector<8x64xf32>
    %53 = arith.mulf %52, %51 : vector<8x64xf32>
    %54 = arith.mulf %51, %51 : vector<8x64xf32>
    %55 = arith.mulf %54, %51 : vector<8x64xf32>
    %cst_31 = arith.constant 4.471500e-02 : f32
    %56 = vector.broadcast %cst_31 : f32 to vector<8x64xf32>
    %57 = arith.mulf %56, %55 : vector<8x64xf32>
    %58 = arith.addf %51, %57 : vector<8x64xf32>
    %cst_32 = arith.constant 0.797884583 : f32
    %59 = vector.broadcast %cst_32 : f32 to vector<8x64xf32>
    %60 = arith.mulf %59, %58 : vector<8x64xf32>
    %61 = math.tanh %60 : vector<8x64xf32>
    %cst_33 = arith.constant 1.000000e+00 : f32
    %62 = vector.broadcast %cst_33 : f32 to vector<8x64xf32>
    %63 = arith.addf %62, %61 : vector<8x64xf32>
    %64 = arith.mulf %53, %63 : vector<8x64xf32>
    %65 = arith.truncf %64 : vector<8x64xf32> to vector<8x64xbf16>
    %c0_34 = arith.constant 0 : index
    %c0_35 = arith.constant 0 : index
    %66 = vector.load %arg10[%c0_34, %c0_35] : memref<64x32xbf16, #tpu.memory_space<vmem>>, vector<64x32xbf16>
    %cst_36 = arith.constant dense<0.000000e+00> : vector<8x32xf32>
    %67 = tpu.matmul %65, %66, %cst_36 {dimension_numbers = #tpu.dot_dimension_numbers<[1], [0], [0], [1], [0, 0, 1, 1], [], []>} : vector<8x64xbf16>, vector<64x32xbf16>, vector<8x32xf32> -> vector<8x32xf32>
    %c0_37 = arith.constant 0 : index
    %c0_38 = arith.constant 0 : index
    %68 = vector.load %arg11[%c0_37, %c0_38] : memref<1x32xf32, #tpu.memory_space<vmem>>, vector<1x32xf32>
    %69 = vector.broadcast %68 : vector<1x32xf32> to vector<8x32xf32>
    %70 = arith.addf %67, %69 : vector<8x32xf32>
    %cst_39 = arith.constant 5.000000e-01 : f32
    %71 = vector.broadcast %cst_39 : f32 to vector<8x32xf32>
    %72 = arith.mulf %71, %70 : vector<8x32xf32>
    %73 = arith.mulf %70, %70 : vector<8x32xf32>
    %74 = arith.mulf %73, %70 : vector<8x32xf32>
    %cst_40 = arith.constant 4.471500e-02 : f32
    %75 = vector.broadcast %cst_40 : f32 to vector<8x32xf32>
    %76 = arith.mulf %75, %74 : vector<8x32xf32>
    %77 = arith.addf %70, %76 : vector<8x32xf32>
    %cst_41 = arith.constant 0.797884583 : f32
    %78 = vector.broadcast %cst_41 : f32 to vector<8x32xf32>
    %79 = arith.mulf %78, %77 : vector<8x32xf32>
    %80 = math.tanh %79 : vector<8x32xf32>
    %cst_42 = arith.constant 1.000000e+00 : f32
    %81 = vector.broadcast %cst_42 : f32 to vector<8x32xf32>
    %82 = arith.addf %81, %80 : vector<8x32xf32>
    %83 = arith.mulf %72, %82 : vector<8x32xf32>
    %c0_43 = arith.constant 0 : index
    %c0_44 = arith.constant 0 : index
    %c0_45 = arith.constant 0 : index
    %84 = vector.load %arg12[%c0_43, %c0_44, %c0_45] : memref<1x8x32xf32, #tpu.memory_space<vmem>>, vector<1x8x32xf32>
    %85 = vector.shape_cast %84 : vector<1x8x32xf32> to vector<8x32xf32>
    %86 = vector.shape_cast %83 : vector<8x32xf32> to vector<1x8x32xf32>
    tpu.vector_store %arg12[%c0_43, %c0_44, %c0_45], %86 {strides = array<i32>} : memref<1x8x32xf32, #tpu.memory_space<vmem>>, vector<1x8x32xf32>,
    return
  }
  func.func @transform_0(%arg0: i32) -> (i32, i32, i32) {
    %c0_i32 = arith.constant 0 : i32
    %c0_i32_0 = arith.constant 0 : i32
    %c0_i32_1 = arith.constant 0 : i32
    return %arg0, %c0_i32, %c0_i32_0 : i32, i32, i32
  }
  func.func @transform_1(%arg0: i32) -> (i32, i32, i32) {
    %c0_i32 = arith.constant 0 : i32
    %c0_i32_0 = arith.constant 0 : i32
    %c0_i32_1 = arith.constant 0 : i32
    return %arg0, %c0_i32, %c0_i32_0 : i32, i32, i32
  }
  func.func @transform_2(%arg0: i32) -> (i32, i32) {
    %c0_i32 = arith.constant 0 : i32
    %c0_i32_0 = arith.constant 0 : i32
    %c0_i32_1 = arith.constant 0 : i32
    return %c0_i32, %c0_i32_0 : i32, i32
  }
  func.func @transform_3(%arg0: i32) -> (i32, i32) {
    %c0_i32 = arith.constant 0 : i32
    %c0_i32_0 = arith.constant 0 : i32
    %c0_i32_1 = arith.constant 0 : i32
    return %c0_i32, %c0_i32_0 : i32, i32
  }
  func.func @transform_4(%arg0: i32) -> (i32, i32) {
    %c0_i32 = arith.constant 0 : i32
    %c0_i32_0 = arith.constant 0 : i32
    %c0_i32_1 = arith.constant 0 : i32
    return %c0_i32, %c0_i32_0 : i32, i32
  }
  func.func @transform_5(%arg0: i32) -> (i32, i32) {
    %c0_i32 = arith.constant 0 : i32
    %c0_i32_0 = arith.constant 0 : i32
    %c0_i32_1 = arith.constant 0 : i32
    return %c0_i32, %c0_i32_0 : i32, i32
  }
  func.func @transform_6(%arg0: i32) -> (i32, i32) {
    %c0_i32 = arith.constant 0 : i32
    %c0_i32_0 = arith.constant 0 : i32
    %c0_i32_1 = arith.constant 0 : i32
    return %c0_i32, %c0_i32_0 : i32, i32
  }
  func.func @transform_7(%arg0: i32) -> (i32, i32) {
    %c0_i32 = arith.constant 0 : i32
    %c0_i32_0 = arith.constant 0 : i32
    %c0_i32_1 = arith.constant 0 : i32
    return %c0_i32, %c0_i32_0 : i32, i32
  }
  func.func @transform_8(%arg0: i32) -> (i32, i32) {
    %c0_i32 = arith.constant 0 : i32
    %c0_i32_0 = arith.constant 0 : i32
    %c0_i32_1 = arith.constant 0 : i32
    return %c0_i32, %c0_i32_0 : i32, i32
  }
  func.func @transform_9(%arg0: i32) -> (i32, i32) {
    %c0_i32 = arith.constant 0 : i32
    %c0_i32_0 = arith.constant 0 : i32
    %c0_i32_1 = arith.constant 0 : i32
    return %c0_i32, %c0_i32_0 : i32, i32
  }
  func.func @transform_10(%arg0: i32) -> (i32, i32) {
    %c0_i32 = arith.constant 0 : i32
    %c0_i32_0 = arith.constant 0 : i32
    %c0_i32_1 = arith.constant 0 : i32
    return %c0_i32, %c0_i32_0 : i32, i32
  }
  func.func @transform_11(%arg0: i32) -> (i32, i32, i32) {
    %c0_i32 = arith.constant 0 : i32
    %c0_i32_0 = arith.constant 0 : i32
    %c0_i32_1 = arith.constant 0 : i32
    return %arg0, %c0_i32, %c0_i32_0 : i32, i32, i32
  }
}

module attributes {stable_mosaic.version = 11 : i64} {
  func.func @_tail_kernel(%arg0: i32, %arg1: memref<1x8x32xf32, #tpu.memory_space<vmem>>, %arg2: memref<1x8x32xf32, #tpu.memory_space<vmem>>, %arg3: memref<32x64xbf16, #tpu.memory_space<vmem>>, %arg4: memref<1x64xf32, #tpu.memory_space<vmem>>, %arg5: memref<64x32xbf16, #tpu.memory_space<vmem>>, %arg6: memref<1x32xf32, #tpu.memory_space<vmem>>, %arg7: memref<1x32xf32, #tpu.memory_space<vmem>>, %arg8: memref<1x32xf32, #tpu.memory_space<vmem>>, %arg9: memref<1x8x32xf32, #tpu.memory_space<vmem>>) attributes {dimension_semantics = [#tpu.dimension_semantics<parallel>], iteration_bounds = array<i64: 2>, scalar_prefetch = 0 : i64, scratch_operands = 0 : i64, tpu.core_type = #tpu.core_type<tc>, window_params = [{transform_indices = @transform_0, window_bounds = array<i64: 1, 8, 32>}, {transform_indices = @transform_1, window_bounds = array<i64: 1, 8, 32>}, {pipeline_mode = #tpu.pipeline_mode<synchronous>, transform_indices = @transform_2, window_bounds = array<i64: 32, 64>}, {pipeline_mode = #tpu.pipeline_mode<synchronous>, transform_indices = @transform_3, window_bounds = array<i64: 1, 64>}, {pipeline_mode = #tpu.pipeline_mode<synchronous>, transform_indices = @transform_4, window_bounds = array<i64: 64, 32>}, {pipeline_mode = #tpu.pipeline_mode<synchronous>, transform_indices = @transform_5, window_bounds = array<i64: 1, 32>}, {pipeline_mode = #tpu.pipeline_mode<synchronous>, transform_indices = @transform_6, window_bounds = array<i64: 1, 32>}, {pipeline_mode = #tpu.pipeline_mode<synchronous>, transform_indices = @transform_7, window_bounds = array<i64: 1, 32>}, {transform_indices = @transform_8, window_bounds = array<i64: 1, 8, 32>}]} {
    %c0 = arith.constant 0 : index
    %c0_0 = arith.constant 0 : index
    %c0_1 = arith.constant 0 : index
    %0 = vector.load %arg1[%c0, %c0_0, %c0_1] : memref<1x8x32xf32, #tpu.memory_space<vmem>>, vector<1x8x32xf32>
    %1 = vector.shape_cast %0 : vector<1x8x32xf32> to vector<8x32xf32>
    %2 = arith.truncf %1 : vector<8x32xf32> to vector<8x32xbf16>
    %c0_2 = arith.constant 0 : index
    %c0_3 = arith.constant 0 : index
    %3 = vector.load %arg3[%c0_2, %c0_3] : memref<32x64xbf16, #tpu.memory_space<vmem>>, vector<32x64xbf16>
    %cst = arith.constant dense<0.000000e+00> : vector<8x64xf32>
    %4 = tpu.matmul %2, %3, %cst {dimension_numbers = #tpu.dot_dimension_numbers<[1], [0], [0], [1], [0, 0, 1, 1], [], []>} : vector<8x32xbf16>, vector<32x64xbf16>, vector<8x64xf32> -> vector<8x64xf32>
    %c0_4 = arith.constant 0 : index
    %c0_5 = arith.constant 0 : index
    %5 = vector.load %arg4[%c0_4, %c0_5] : memref<1x64xf32, #tpu.memory_space<vmem>>, vector<1x64xf32>
    %6 = vector.broadcast %5 : vector<1x64xf32> to vector<8x64xf32>
    %7 = arith.addf %4, %6 : vector<8x64xf32>
    %cst_6 = arith.constant 5.000000e-01 : f32
    %8 = vector.broadcast %cst_6 : f32 to vector<8x64xf32>
    %9 = arith.mulf %8, %7 : vector<8x64xf32>
    %10 = arith.mulf %7, %7 : vector<8x64xf32>
    %11 = arith.mulf %10, %7 : vector<8x64xf32>
    %cst_7 = arith.constant 4.471500e-02 : f32
    %12 = vector.broadcast %cst_7 : f32 to vector<8x64xf32>
    %13 = arith.mulf %12, %11 : vector<8x64xf32>
    %14 = arith.addf %7, %13 : vector<8x64xf32>
    %cst_8 = arith.constant 0.797884583 : f32
    %15 = vector.broadcast %cst_8 : f32 to vector<8x64xf32>
    %16 = arith.mulf %15, %14 : vector<8x64xf32>
    %17 = math.tanh %16 : vector<8x64xf32>
    %cst_9 = arith.constant 1.000000e+00 : f32
    %18 = vector.broadcast %cst_9 : f32 to vector<8x64xf32>
    %19 = arith.addf %18, %17 : vector<8x64xf32>
    %20 = arith.mulf %9, %19 : vector<8x64xf32>
    %21 = arith.truncf %20 : vector<8x64xf32> to vector<8x64xbf16>
    %c0_10 = arith.constant 0 : index
    %c0_11 = arith.constant 0 : index
    %22 = vector.load %arg5[%c0_10, %c0_11] : memref<64x32xbf16, #tpu.memory_space<vmem>>, vector<64x32xbf16>
    %cst_12 = arith.constant dense<0.000000e+00> : vector<8x32xf32>
    %23 = tpu.matmul %21, %22, %cst_12 {dimension_numbers = #tpu.dot_dimension_numbers<[1], [0], [0], [1], [0, 0, 1, 1], [], []>} : vector<8x64xbf16>, vector<64x32xbf16>, vector<8x32xf32> -> vector<8x32xf32>
    %c0_13 = arith.constant 0 : index
    %c0_14 = arith.constant 0 : index
    %24 = vector.load %arg6[%c0_13, %c0_14] : memref<1x32xf32, #tpu.memory_space<vmem>>, vector<1x32xf32>
    %25 = vector.broadcast %24 : vector<1x32xf32> to vector<8x32xf32>
    %26 = arith.addf %23, %25 : vector<8x32xf32>
    %cst_15 = arith.constant 5.000000e-01 : f32
    %27 = vector.broadcast %cst_15 : f32 to vector<8x32xf32>
    %28 = arith.mulf %27, %26 : vector<8x32xf32>
    %29 = arith.mulf %26, %26 : vector<8x32xf32>
    %30 = arith.mulf %29, %26 : vector<8x32xf32>
    %cst_16 = arith.constant 4.471500e-02 : f32
    %31 = vector.broadcast %cst_16 : f32 to vector<8x32xf32>
    %32 = arith.mulf %31, %30 : vector<8x32xf32>
    %33 = arith.addf %26, %32 : vector<8x32xf32>
    %cst_17 = arith.constant 0.797884583 : f32
    %34 = vector.broadcast %cst_17 : f32 to vector<8x32xf32>
    %35 = arith.mulf %34, %33 : vector<8x32xf32>
    %36 = math.tanh %35 : vector<8x32xf32>
    %cst_18 = arith.constant 1.000000e+00 : f32
    %37 = vector.broadcast %cst_18 : f32 to vector<8x32xf32>
    %38 = arith.addf %37, %36 : vector<8x32xf32>
    %39 = arith.mulf %28, %38 : vector<8x32xf32>
    %c0_19 = arith.constant 0 : index
    %c0_20 = arith.constant 0 : index
    %c0_21 = arith.constant 0 : index
    %40 = vector.load %arg2[%c0_19, %c0_20, %c0_21] : memref<1x8x32xf32, #tpu.memory_space<vmem>>, vector<1x8x32xf32>
    %41 = vector.shape_cast %40 : vector<1x8x32xf32> to vector<8x32xf32>
    %42 = arith.addf %39, %41 : vector<8x32xf32>
    %c0_22 = arith.constant 0 : index
    %c0_23 = arith.constant 0 : index
    %43 = vector.load %arg7[%c0_22, %c0_23] : memref<1x32xf32, #tpu.memory_space<vmem>>, vector<1x32xf32>
    %c0_24 = arith.constant 0 : index
    %c0_25 = arith.constant 0 : index
    %44 = vector.load %arg8[%c0_24, %c0_25] : memref<1x32xf32, #tpu.memory_space<vmem>>, vector<1x32xf32>
    %cst_26 = arith.constant dense<0.000000e+00> : vector<8xf32>
    %45 = vector.multi_reduction <add>, %42, %cst_26 [1] : vector<8x32xf32> to vector<8xf32>
    %46 = vector.shape_cast %45 : vector<8xf32> to vector<8x1xf32>
    %cst_27 = arith.constant 3.200000e+01 : f32
    %47 = vector.broadcast %cst_27 : f32 to vector<8x1xf32>
    %48 = arith.divf %46, %47 : vector<8x1xf32>
    %49 = vector.broadcast %48 : vector<8x1xf32> to vector<8x32xf32>
    %50 = arith.subf %42, %49 : vector<8x32xf32>
    %51 = arith.mulf %50, %50 : vector<8x32xf32>
    %cst_28 = arith.constant dense<0.000000e+00> : vector<8xf32>
    %52 = vector.multi_reduction <add>, %51, %cst_28 [1] : vector<8x32xf32> to vector<8xf32>
    %53 = vector.shape_cast %52 : vector<8xf32> to vector<8x1xf32>
    %cst_29 = arith.constant 3.200000e+01 : f32
    %54 = vector.broadcast %cst_29 : f32 to vector<8x1xf32>
    %55 = arith.divf %53, %54 : vector<8x1xf32>
    %cst_30 = arith.constant 9.99999974E-6 : f32
    %56 = vector.broadcast %cst_30 : f32 to vector<8x1xf32>
    %57 = arith.addf %55, %56 : vector<8x1xf32>
    %58 = math.rsqrt %57 : vector<8x1xf32>
    %59 = vector.broadcast %58 : vector<8x1xf32> to vector<8x32xf32>
    %60 = arith.mulf %50, %59 : vector<8x32xf32>
    %61 = vector.broadcast %43 : vector<1x32xf32> to vector<8x32xf32>
    %62 = arith.mulf %60, %61 : vector<8x32xf32>
    %63 = vector.broadcast %44 : vector<1x32xf32> to vector<8x32xf32>
    %64 = arith.addf %62, %63 : vector<8x32xf32>
    %c0_31 = arith.constant 0 : index
    %c0_32 = arith.constant 0 : index
    %c0_33 = arith.constant 0 : index
    %65 = vector.load %arg9[%c0_31, %c0_32, %c0_33] : memref<1x8x32xf32, #tpu.memory_space<vmem>>, vector<1x8x32xf32>
    %66 = vector.shape_cast %65 : vector<1x8x32xf32> to vector<8x32xf32>
    %67 = vector.shape_cast %64 : vector<8x32xf32> to vector<1x8x32xf32>
    tpu.vector_store %arg9[%c0_31, %c0_32, %c0_33], %67 {strides = array<i32>} : memref<1x8x32xf32, #tpu.memory_space<vmem>>, vector<1x8x32xf32>,
    return
  }
  func.func @transform_0(%arg0: i32) -> (i32, i32, i32) {
    %c0_i32 = arith.constant 0 : i32
    %c0_i32_0 = arith.constant 0 : i32
    %c0_i32_1 = arith.constant 0 : i32
    return %arg0, %c0_i32, %c0_i32_0 : i32, i32, i32
  }
  func.func @transform_1(%arg0: i32) -> (i32, i32, i32) {
    %c0_i32 = arith.constant 0 : i32
    %c0_i32_0 = arith.constant 0 : i32
    %c0_i32_1 = arith.constant 0 : i32
    return %arg0, %c0_i32, %c0_i32_0 : i32, i32, i32
  }
  func.func @transform_2(%arg0: i32) -> (i32, i32) {
    %c0_i32 = arith.constant 0 : i32
    %c0_i32_0 = arith.constant 0 : i32
    %c0_i32_1 = arith.constant 0 : i32
    return %c0_i32, %c0_i32_0 : i32, i32
  }
  func.func @transform_3(%arg0: i32) -> (i32, i32) {
    %c0_i32 = arith.constant 0 : i32
    %c0_i32_0 = arith.constant 0 : i32
    %c0_i32_1 = arith.constant 0 : i32
    return %c0_i32, %c0_i32_0 : i32, i32
  }
  func.func @transform_4(%arg0: i32) -> (i32, i32) {
    %c0_i32 = arith.constant 0 : i32
    %c0_i32_0 = arith.constant 0 : i32
    %c0_i32_1 = arith.constant 0 : i32
    return %c0_i32, %c0_i32_0 : i32, i32
  }
  func.func @transform_5(%arg0: i32) -> (i32, i32) {
    %c0_i32 = arith.constant 0 : i32
    %c0_i32_0 = arith.constant 0 : i32
    %c0_i32_1 = arith.constant 0 : i32
    return %c0_i32, %c0_i32_0 : i32, i32
  }
  func.func @transform_6(%arg0: i32) -> (i32, i32) {
    %c0_i32 = arith.constant 0 : i32
    %c0_i32_0 = arith.constant 0 : i32
    %c0_i32_1 = arith.constant 0 : i32
    return %c0_i32, %c0_i32_0 : i32, i32
  }
  func.func @transform_7(%arg0: i32) -> (i32, i32) {
    %c0_i32 = arith.constant 0 : i32
    %c0_i32_0 = arith.constant 0 : i32
    %c0_i32_1 = arith.constant 0 : i32
    return %c0_i32, %c0_i32_0 : i32, i32
  }
  func.func @transform_8(%arg0: i32) -> (i32, i32, i32) {
    %c0_i32 = arith.constant 0 : i32
    %c0_i32_0 = arith.constant 0 : i32
    %c0_i32_1 = arith.constant 0 : i32
    return %arg0, %c0_i32, %c0_i32_0 : i32, i32, i32
  }
}

</mosaic_0001>

<llo_original>
// kernel: stb_forward.7
$region0: #{stb_forward.7}
  #allocation0 [shape = 'u32[]', space=smem, size = 0x4, offset = 0x4, fixed_abs, tag = 'smem constant byte address 0x4 - core index']
  #allocation1 [shape = 'u32[72,128]{1,0:T(1,128)}', space=vmem, size = 0x9000, scoped, tag = 'internal scratch']
  %s0 = inlined_call_operand.vmem [shape: f32[2,16,32], index: 0, kind: input, shape index: {}]
  %s1 = inlined_call_operand.vmem [shape: f32[2,8,32], index: 1, kind: input, shape index: {}]
  %s2 = inlined_call_operand.vmem [shape: bf16[32,16], index: 2, kind: input, shape index: {}]
  %s3 = inlined_call_operand.vmem [shape: f32[32,1], index: 3, kind: input, shape index: {}]
  %s4 = inlined_call_operand.vmem [shape: bf16[8,32], index: 4, kind: input, shape index: {}]
  %s5 = inlined_call_operand.vmem [shape: f32[8,1], index: 5, kind: input, shape index: {}]
  %s6 = inlined_call_operand.vmem [shape: bf16[32,64], index: 6, kind: input, shape index: {}]
  %s7 = inlined_call_operand.vmem [shape: bf16[32,64], index: 7, kind: input, shape index: {}]
  %s8 = inlined_call_operand.vmem [shape: f32[1,64], index: 8, kind: input, shape index: {}]
  %s9 = inlined_call_operand.vmem [shape: bf16[64,32], index: 9, kind: input, shape index: {}]
  %s10 = inlined_call_operand.vmem [shape: f32[1,32], index: 10, kind: input, shape index: {}]
  %s11 = inlined_call_operand.vmem [shape: f32[2,8,32], index: 11, kind: output, shape index: {}]
  %s12 = sld [smem:[#allocation0]]
  $region77: #{stb_forward.7} parent=0
    _
  %s14 = ssub.s32 1, %s12
  %s15 = scalar_select 0, %s14, %s12
  loop: start=0, step=1, limit=4
  $region2: #{stb_forward.7} parent=0 // loop_pre_header
    _
  $region3: #{stb_forward.7} parent=0 // loop_header
    %s17 = sphi 0, %s21
    %p18 = scmp.ge.s32.totalorder %s17, 4
    %s27 = sphi 0, %s29
    %s30 = sphi 0, %s27
    %s31 = sphi 0, %s30
    %s47 = sphi 0, %s31
    %s53 = sphi 0, %s55
    %s56 = sphi 0, %s53
    %s57 = sphi 0, %s56
    %s73 = sphi 0, %s57
    %s77 = sphi 0, %s77
    %s79 = sphi 0, %s77
    %s80 = sphi 0, %s79
    %s94 = sphi 0, %s80
    %s98 = sphi 0, %s98
    %s100 = sphi 0, %s98
    %s101 = sphi 0, %s100
    %s115 = sphi 0, %s101
    %s119 = sphi 0, %s119
    %s121 = sphi 0, %s119
    %s122 = sphi 0, %s121
    %s136 = sphi 0, %s122
    %s140 = sphi 0, %s140
    %s142 = sphi 0, %s140
    %s143 = sphi 0, %s142
    %s157 = sphi 0, %s143
    %s161 = sphi 0, %s161
    %s163 = sphi 0, %s161
    %s164 = sphi 0, %s163
    %s178 = sphi 0, %s164
    %s182 = sphi 0, %s182
    %s184 = sphi 0, %s182
    %s185 = sphi 0, %s184
    %s199 = sphi 0, %s185
    %s203 = sphi 0, %s203
    %s205 = sphi 0, %s203
    %s206 = sphi 0, %s205
    %s220 = sphi 0, %s206
    %s224 = sphi 0, %s224
    %s226 = sphi 0, %s224
    %s227 = sphi 0, %s226
    %s241 = sphi 0, %s227
    %s245 = sphi 0, %s245
    %s247 = sphi 0, %s245
    %s248 = sphi 0, %s247
    %s262 = sphi 0, %s248
    %s268 = sphi 0, %s270
    %s271 = sphi 0, %s268
    %s272 = sphi 0, %s271
    %s288 = sphi 0, %s272
  $region4: #{stb_forward.7} parent=0 // loop_header_branch
    %20 = sbr.rel (%p18) target = $region8
  $region5: #{stb_forward.7} parent=0 // loop_body
    %s22 = ssub.s32 %s17, 1
    %s23 = ssub.s32 %s17, 2
    %s24 = sadd.s32 %s17, 1
    %s25 = ssub.s32 %s17, %s24
    %p26 = scmp.eq.s32.totalorder %s25, 0
    %s28 = sadd.s32 %s27, 1
    %s29 = scalar_select %p26, %s27, %s28
    %p32 = pneg %p26
    %p33 = scmp.eq.s32.totalorder %s17, 1
    %p34 = por %p32, %p33
    %p35 = scmp.ne.s32.totalorder %s27, %s30
    %p36 = scmp.eq.s32.totalorder %s17, 0
    %p37 = por %p35, %p36
    %p38 = scmp.ne.s32.totalorder %s27, %s30
    %p39 = scmp.eq.s32.totalorder %s22, 1
    %p40 = por %p38, %p39
    %p41 = scmp.ne.s32.totalorder %s30, %s31
    %p42 = scmp.eq.s32.totalorder %s22, 0
    %p43 = por %p41, %p42
    %p44 = scmp.ne.s32.totalorder %s30, %s31
    %p45 = scmp.eq.s32.totalorder %s23, 1
    %p46 = por %p44, %p45
    %p48 = scmp.ne.s32.totalorder %s31, %s47
    %p49 = scmp.eq.s32.totalorder %s23, 0
    %p50 = por %p48, %p49
    %s51 = ssub.s32 %s17, %s24
    %p52 = scmp.eq.s32.totalorder %s51, 0
    %s54 = sadd.s32 %s53, 1
    %s55 = scalar_select %p52, %s53, %s54
    %p58 = pneg %p52
    %p59 = scmp.eq.s32.totalorder %s17, 1
    %p60 = por %p58, %p59
    %p61 = scmp.ne.s32.totalorder %s53, %s56
    %p62 = scmp.eq.s32.totalorder %s17, 0
    %p63 = por %p61, %p62
    %p64 = scmp.ne.s32.totalorder %s53, %s56
    %p65 = scmp.eq.s32.totalorder %s22, 1
    %p66 = por %p64, %p65
    %p67 = scmp.ne.s32.totalorder %s56, %s57
    %p68 = scmp.eq.s32.totalorder %s22, 0
    %p69 = por %p67, %p68
    %p70 = scmp.ne.s32.totalorder %s56, %s57
    %p71 = scmp.eq.s32.totalorder %s23, 1
    %p72 = por %p70, %p71
    %p74 = scmp.ne.s32.totalorder %s57, %s73
    %p75 = scmp.eq.s32.totalorder %s23, 0
    %p76 = por %p74, %p75
    %s78 = sadd.s32 %s77, 1
    %p81 = scmp.eq.s32.totalorder %s17, 1
    %p82 = scmp.ne.s32.totalorder %s77, %s79
    %p83 = scmp.eq.s32.totalorder %s17, 0
    %p84 = por %p82, %p83
    %p85 = scmp.ne.s32.totalorder %s77, %s79
    %p86 = scmp.eq.s32.totalorder %s22, 1
    %p87 = por %p85, %p86
    %p88 = scmp.ne.s32.totalorder %s79, %s80
    %p89 = scmp.eq.s32.totalorder %s22, 0
    %p90 = por %p88, %p89
    %p91 = scmp.ne.s32.totalorder %s79, %s80
    %p92 = scmp.eq.s32.totalorder %s23, 1
    %p93 = por %p91, %p92
    %p95 = scmp.ne.s32.totalorder %s80, %s94
    %p96 = scmp.eq.s32.totalorder %s23, 0
    %p97 = por %p95, %p96
    %s99 = sadd.s32 %s98, 1
    %p102 = scmp.eq.s32.totalorder %s17, 1
    %p103 = scmp.ne.s32.totalorder %s98, %s100
    %p104 = scmp.eq.s32.totalorder %s17, 0
    %p105 = por %p103, %p104
    %p106 = scmp.ne.s32.totalorder %s98, %s100
    %p107 = scmp.eq.s32.totalorder %s22, 1
    %p108 = por %p106, %p107
    %p109 = scmp.ne.s32.totalorder %s100, %s101
    %p110 = scmp.eq.s32.totalorder %s22, 0
    %p111 = por %p109, %p110
    %p112 = scmp.ne.s32.totalorder %s100, %s101
    %p113 = scmp.eq.s32.totalorder %s23, 1
    %p114 = por %p112, %p113
    %p116 = scmp.ne.s32.totalorder %s101, %s115
    %p117 = scmp.eq.s32.totalorder %s23, 0
    %p118 = por %p116, %p117
    %s120 = sadd.s32 %s119, 1
    %p123 = scmp.eq.s32.totalorder %s17, 1
    %p124 = scmp.ne.s32.totalorder %s119, %s121
    %p125 = scmp.eq.s32.totalorder %s17, 0
    %p126 = por %p124, %p125
    %p127 = scmp.ne.s32.totalorder %s119, %s121
    %p128 = scmp.eq.s32.totalorder %s22, 1
    %p129 = por %p127, %p128
    %p130 = scmp.ne.s32.totalorder %s121, %s122
    %p131 = scmp.eq.s32.totalorder %s22, 0
    %p132 = por %p130, %p131
    %p133 = scmp.ne.s32.totalorder %s121, %s122
    %p134 = scmp.eq.s32.totalorder %s23, 1
    %p135 = por %p133, %p134
    %p137 = scmp.ne.s32.totalorder %s122, %s136
    %p138 = scmp.eq.s32.totalorder %s23, 0
    %p139 = por %p137, %p138
    %s141 = sadd.s32 %s140, 1
    %p144 = scmp.eq.s32.totalorder %s17, 1
    %p145 = scmp.ne.s32.totalorder %s140, %s142
    %p146 = scmp.eq.s32.totalorder %s17, 0
    %p147 = por %p145, %p146
    %p148 = scmp.ne.s32.totalorder %s140, %s142
    %p149 = scmp.eq.s32.totalorder %s22, 1
    %p150 = por %p148, %p149
    %p151 = scmp.ne.s32.totalorder %s142, %s143
    %p152 = scmp.eq.s32.totalorder %s22, 0
    %p153 = por %p151, %p152
    %p154 = scmp.ne.s32.totalorder %s142, %s143
    %p155 = scmp.eq.s32.totalorder %s23, 1
    %p156 = por %p154, %p155
    %p158 = scmp.ne.s32.totalorder %s143, %s157
    %p159 = scmp.eq.s32.totalorder %s23, 0
    %p160 = por %p158, %p159
    %s162 = sadd.s32 %s161, 1
    %p165 = scmp.eq.s32.totalorder %s17, 1
    %p166 = scmp.ne.s32.totalorder %s161, %s163
    %p167 = scmp.eq.s32.totalorder %s17, 0
    %p168 = por %p166, %p167
    %p169 = scmp.ne.s32.totalorder %s161, %s163
    %p170 = scmp.eq.s32.totalorder %s22, 1
    %p171 = por %p169, %p170
    %p172 = scmp.ne.s32.totalorder %s163, %s164
    %p173 = scmp.eq.s32.totalorder %s22, 0
    %p174 = por %p172, %p173
    %p175 = scmp.ne.s32.totalorder %s163, %s164
    %p176 = scmp.eq.s32.totalorder %s23, 1
    %p177 = por %p175, %p176
    %p179 = scmp.ne.s32.totalorder %s164, %s178
    %p180 = scmp.eq.s32.totalorder %s23, 0
    %p181 = por %p179, %p180
    %s183 = sadd.s32 %s182, 1
    %p186 = scmp.eq.s32.totalorder %s17, 1
    %p187 = scmp.ne.s32.totalorder %s182, %s184
    %p188 = scmp.eq.s32.totalorder %s17, 0
    %p189 = por %p187, %p188
    %p190 = scmp.ne.s32.totalorder %s182, %s184
    %p191 = scmp.eq.s32.totalorder %s22, 1
    %p192 = por %p190, %p191
    %p193 = scmp.ne.s32.totalorder %s184, %s185
    %p194 = scmp.eq.s32.totalorder %s22, 0
    %p195 = por %p193, %p194
    %p196 = scmp.ne.s32.totalorder %s184, %s185
    %p197 = scmp.eq.s32.totalorder %s23, 1
    %p198 = por %p196, %p197
    %p200 = scmp.ne.s32.totalorder %s185, %s199
    %p201 = scmp.eq.s32.totalorder %s23, 0
    %p202 = por %p200, %p201
    %s204 = sadd.s32 %s203, 1
    %p207 = scmp.eq.s32.totalorder %s17, 1
    %p208 = scmp.ne.s32.totalorder %s203, %s205
    %p209 = scmp.eq.s32.totalorder %s17, 0
    %p210 = por %p208, %p209
    %p211 = scmp.ne.s32.totalorder %s203, %s205
    %p212 = scmp.eq.s32.totalorder %s22, 1
    %p213 = por %p211, %p212
    %p214 = scmp.ne.s32.totalorder %s205, %s206
    %p215 = scmp.eq.s32.totalorder %s22, 0
    %p216 = por %p214, %p215
    %p217 = scmp.ne.s32.totalorder %s205, %s206
    %p218 = scmp.eq.s32.totalorder %s23, 1
    %p219 = por %p217, %p218
    %p221 = scmp.ne.s32.totalorder %s206, %s220
    %p222 = scmp.eq.s32.totalorder %s23, 0
    %p223 = por %p221, %p222
    %s225 = sadd.s32 %s224, 1
    %p228 = scmp.eq.s32.totalorder %s17, 1
    %p229 = scmp.ne.s32.totalorder %s224, %s226
    %p230 = scmp.eq.s32.totalorder %s17, 0
    %p231 = por %p229, %p230
    %p232 = scmp.ne.s32.totalorder %s224, %s226
    %p233 = scmp.eq.s32.totalorder %s22, 1
    %p234 = por %p232, %p233
    %p235 = scmp.ne.s32.totalorder %s226, %s227
    %p236 = scmp.eq.s32.totalorder %s22, 0
    %p237 = por %p235, %p236
    %p238 = scmp.ne.s32.totalorder %s226, %s227
    %p239 = scmp.eq.s32.totalorder %s23, 1
    %p240 = por %p238, %p239
    %p242 = scmp.ne.s32.totalorder %s227, %s241
    %p243 = scmp.eq.s32.totalorder %s23, 0
    %p244 = por %p242, %p243
    %s246 = sadd.s32 %s245, 1
    %p249 = scmp.eq.s32.totalorder %s17, 1
    %p250 = scmp.ne.s32.totalorder %s245, %s247
    %p251 = scmp.eq.s32.totalorder %s17, 0
    %p252 = por %p250, %p251
    %p253 = scmp.ne.s32.totalorder %s245, %s247
    %p254 = scmp.eq.s32.totalorder %s22, 1
    %p255 = por %p253, %p254
    %p256 = scmp.ne.s32.totalorder %s247, %s248
    %p257 = scmp.eq.s32.totalorder %s22, 0
    %p258 = por %p256, %p257
    %p259 = scmp.ne.s32.totalorder %s247, %s248
    %p260 = scmp.eq.s32.totalorder %s23, 1
    %p261 = por %p259, %p260
    %p263 = scmp.ne.s32.totalorder %s248, %s262
    %p264 = scmp.eq.s32.totalorder %s23, 0
    %p265 = por %p263, %p264
    %s266 = ssub.s32 %s17, %s24
    %p267 = scmp.eq.s32.totalorder %s266, 0
    %s269 = sadd.s32 %s268, 1
    %s270 = scalar_select %p267, %s268, %s269
    %p273 = pneg %p267
    %p274 = scmp.eq.s32.totalorder %s17, 1
    %p275 = por %p273, %p274
    %p276 = scmp.ne.s32.totalorder %s268, %s271
    %p277 = scmp.eq.s32.totalorder %s17, 0
    %p278 = por %p276, %p277
    %p279 = scmp.ne.s32.totalorder %s268, %s271
    %p280 = scmp.eq.s32.totalorder %s22, 1
    %p281 = por %p279, %p280
    %p282 = scmp.ne.s32.totalorder %s271, %s272
    %p283 = scmp.eq.s32.totalorder %s22, 0
    %p284 = por %p282, %p283
    %p285 = scmp.ne.s32.totalorder %s271, %s272
    %p286 = scmp.eq.s32.totalorder %s23, 1
    %p287 = por %p285, %p286
    %p289 = scmp.ne.s32.totalorder %s272, %s288
    %p290 = scmp.eq.s32.totalorder %s23, 0
    %p291 = por %p289, %p290
    %p292 = scmp.le.s32.totalorder 1, %s17
    %p293 = scmp.lt.s32.totalorder %s17, 3
    %p294 = pnand %p292, %p293
    %p295 = pneg %p294
    // Predicated region
    $region9: #{stb_forward.7} parent=5 // pred_check
      _
    $region10: #{stb_forward.7} parent=5 // pred_check_branch
      %297 = sbr.rel (%p294) target = $region12
    $region11: #{stb_forward.7} parent=5 // pred_region
      %s298 = ssub.s32 %s17, 1
      // Predicated region
      $region13: #{stb_forward.7} parent=11 // pred_check
        %p299 = pneg %p90
      $region14: #{stb_forward.7} parent=11 // pred_check_branch
        %301 = sbr.rel (%p299) target = $region16
      $region15: #{stb_forward.7} parent=11 // pred_region
        _
      $region16: #{stb_forward.7} parent=11 // pred_fallthru
        _
      // Predicated region
      $region17: #{stb_forward.7} parent=11 // pred_check
        %p302 = pneg %p111
      $region18: #{stb_forward.7} parent=11 // pred_check_branch
        %304 = sbr.rel (%p302) target = $region20
      $region19: #{stb_forward.7} parent=11 // pred_region
        _
      $region20: #{stb_forward.7} parent=11 // pred_fallthru
        _
      // Predicated region
      $region21: #{stb_forward.7} parent=11 // pred_check
        %p305 = pneg %p132
      $region22: #{stb_forward.7} parent=11 // pred_check_branch
        %307 = sbr.rel (%p305) target = $region24
      $region23: #{stb_forward.7} parent=11 // pred_region
        _
      $region24: #{stb_forward.7} parent=11 // pred_fallthru
        _
      // Predicated region
      $region25: #{stb_forward.7} parent=11 // pred_check
        %p308 = pneg %p153
      $region26: #{stb_forward.7} parent=11 // pred_check_branch
        %310 = sbr.rel (%p308) target = $region28
      $region27: #{stb_forward.7} parent=11 // pred_region
        _
      $region28: #{stb_forward.7} parent=11 // pred_fallthru
        _
      // Predicated region
      $region29: #{stb_forward.7} parent=11 // pred_check
        %p311 = pneg %p174
      $region30: #{stb_forward.7} parent=11 // pred_check_branch
        %313 = sbr.rel (%p311) target = $region32
      $region31: #{stb_forward.7} parent=11 // pred_region
        _
      $region32: #{stb_forward.7} parent=11 // pred_fallthru
        _
      // Predicated region
      $region33: #{stb_forward.7} parent=11 // pred_check
        %p314 = pneg %p195
      $region34: #{stb_forward.7} parent=11 // pred_check_branch
        %316 = sbr.rel (%p314) target = $region36
      $region35: #{stb_forward.7} parent=11 // pred_region
        _
      $region36: #{stb_forward.7} parent=11 // pred_fallthru
        _
      // Predicated region
      $region37: #{stb_forward.7} parent=11 // pred_check
        %p317 = pneg %p216
      $region38: #{stb_forward.7} parent=11 // pred_check_branch
        %319 = sbr.rel (%p317) target = $region40
      $region39: #{stb_forward.7} parent=11 // pred_region
        _
      $region40: #{stb_forward.7} parent=11 // pred_fallthru
        _
      // Predicated region
      $region41: #{stb_forward.7} parent=11 // pred_check
        %p320 = pneg %p237
      $region42: #{stb_forward.7} parent=11 // pred_check_branch
        %322 = sbr.rel (%p320) target = $region44
      $region43: #{stb_forward.7} parent=11 // pred_region
        _
      $region44: #{stb_forward.7} parent=11 // pred_fallthru
        _
      // Predicated region
      $region45: #{stb_forward.7} parent=11 // pred_check
        %p323 = pneg %p258
      $region46: #{stb_forward.7} parent=11 // pred_check_branch
        %325 = sbr.rel (%p323) target = $region48
      $region47: #{stb_forward.7} parent=11 // pred_region
        _
      $region48: #{stb_forward.7} parent=11 // pred_fallthru
        _
    $region12: #{stb_forward.7} parent=5 // pred_fallthru
      _
    %p326 = scmp.lt.s32.totalorder %s17, 2
    // Predicated region
    $region49: #{stb_forward.7} parent=5 // pred_check
      %p327 = pneg %p326
    $region50: #{stb_forward.7} parent=5 // pred_check_branch
      %329 = sbr.rel (%p327) target = $region52
    $region51: #{stb_forward.7} parent=5 // pred_region
      // Predicated region
      $region53: #{stb_forward.7} parent=51 // pred_check
        %p330 = pneg %p37
      $region54: #{stb_forward.7} parent=51 // pred_check_branch
        %332 = sbr.rel (%p330) target = $region56
      $region55: #{stb_forward.7} parent=51 // pred_region
        %p333 = scmp.lt.s32.totalorder %s17, 1
        %s334 = scalar_select %p333, %s17, 1
        %s335 = smul.addr %s334, 2
        %s336 = smul.addr %s335, 8
        %s337 = scalar_lea.vmem %s0, %s336
      $region56: #{stb_forward.7} parent=51 // pred_fallthru
        _
      // Predicated region
      $region57: #{stb_forward.7} parent=51 // pred_check
        %p338 = pneg %p63
      $region58: #{stb_forward.7} parent=51 // pred_check_branch
        %340 = sbr.rel (%p338) target = $region60
      $region59: #{stb_forward.7} parent=51 // pred_region
        %p341 = scmp.lt.s32.totalorder %s17, 1
        %s342 = scalar_select %p341, %s17, 1
        %s343 = smul.addr %s342, 8
        %s344 = scalar_lea.vmem %s1, %s343
      $region60: #{stb_forward.7} parent=51 // pred_fallthru
        _
    $region52: #{stb_forward.7} parent=5 // pred_fallthru
      _
    %p345 = scmp.le.s32.totalorder 1, %s17
    %p346 = scmp.lt.s32.totalorder %s17, 3
    %p347 = pnand %p345, %p346
    %p348 = pneg %p347
    // Predicated region
    $region61: #{stb_forward.7} parent=5 // pred_check
      _
    $region62: #{stb_forward.7} parent=5 // pred_check_branch
      %350 = sbr.rel (%p347) target = $region64
    $region63: #{stb_forward.7} parent=5 // pred_region
      %s351 = ssub.s32 %s17, 1
      %p352 = scmp.lt.s32.totalorder %s22, 1
      %s353 = scalar_select %p352, %s22, 1
      %s354 = smul.addr %s353, 2
      %s355 = smul.addr %s354, 8
      %s356 = scalar_lea.vmem %s0, %s355
      %p357 = pneg %p43
      %p358 = pneg %p40
      %p359 = scmp.lt.s32.totalorder %s22, 1
      %s360 = scalar_select %p359, %s22, 1
      %s361 = smul.addr %s360, 8
      %s362 = scalar_lea.vmem %s1, %s361
      %p363 = pneg %p69
      %p364 = pneg %p66
      %p365 = pneg %p90
      %p366 = pneg %p87
      %p367 = pneg %p111
      %p368 = pneg %p108
      %p369 = pneg %p132
      %p370 = pneg %p129
      %p371 = pneg %p153
      %p372 = pneg %p150
      %p373 = pneg %p174
      %p374 = pneg %p171
      %p375 = pneg %p195
      %p376 = pneg %p192
      %p377 = pneg %p216
      %p378 = pneg %p213
      %p379 = pneg %p237
      %p380 = pneg %p234
      %p381 = pneg %p258
      %p382 = pneg %p255
      %p383 = pneg %p284
      %p384 = pneg %p281
      %p385 = scmp.lt.s32.totalorder %s22, 1
      %s386 = scalar_select %p385, %s22, 1
      %s387 = smul.addr %s386, 8
      %s388 = scalar_lea.vmem %s11, %s387
      %p389 = scmp.lt.s32.totalorder %s22, 1
      %s390 = scalar_select %p389, %s22, 1
      %s391 = smul.addr %s390, 2
      %s392 = smul.addr %s391, 8
      %s393 = scalar_lea.vmem %s0, %s392
      %p394 = scmp.lt.s32.totalorder %s22, 1
      %s395 = scalar_select %p394, %s22, 1
      %s396 = smul.addr %s395, 8
      %s397 = scalar_lea.vmem %s1, %s396
      %p398 = scmp.lt.s32.totalorder %s22, 1
      %s399 = scalar_select %p398, %s22, 1
      %s400 = smul.addr %s399, 8
      %s401 = scalar_lea.vmem %s11, %s400
      %v403 = vld [vmem:[%s393] sm:$0xff]
      %v404 = vld [vmem:[%s393 + $0x8] sm:$0xff]
      %v405 = vpack.c.bf16 %v404, %v403
      %v406 = vld [vmem:[%s397] sm:$0xff]
      %v407 = vpack.c.bf16 %v406, %v406
      %v408 = vld [vmem:[%s2] sm:$0xf]
      %v409 = vld [vmem:[%s2 + $0x4] sm:$0xf]
      %v410 = vld [vmem:[%s2 + $0x8] sm:$0xf]
      %v411 = vld [vmem:[%s2 + $0xc] sm:$0xf]
      %v412 = vld [vmem:[%s3] sm:$0xff]
      %v413 = vld [vmem:[%s3 + $0x8] sm:$0xff]
      %v414 = vld [vmem:[%s3 + $0x10] sm:$0xff]
      %v415 = vld [vmem:[%s3 + $0x18] sm:$0xff]
      %417 = vset.pattern.permute.xlu0 0
      %418 = vperm.xlu0 %417, %v412
      %v419 = vpop.permute.xlu0 %418
      %422 = vset.pattern.permute.xlu0 0
      %423 = vperm.xlu0 %422, %v413
      %v424 = vpop.permute.xlu0 %423
      %427 = vset.pattern.permute.xlu0 0
      %428 = vperm.xlu0 %427, %v414
      %v429 = vpop.permute.xlu0 %428
      %432 = vset.pattern.permute.xlu0 0
      %433 = vperm.xlu0 %432, %v415
      %v434 = vpop.permute.xlu0 %433
      %v440 = vunpack.c.l.b16 %v408
      %v441 = vunpack.c.l.b16 %v409
      %v442 = vunpack.c.l.b16 %v410
      %v443 = vunpack.c.l.b16 %v411
      %v444 = vpack.c.b16 %v441, %v440
      %v445 = vpack.c.b16 %v443, %v442
      %vm446 = vcmask 130048
      %v448 = vsel %vm446, %v444, 0
      %v451 = vsel %vm446, %v445, 0
      %453 = vmatpush.bf16.msra.mxu0 0
      %454 = vmatpush.bf16.msra.mxu0 0
      %455 = vmatpush.bf16.msra.mxu0 0
      %456 = vmatpush.bf16.msra.mxu0 0
      %457 = vmatpush.bf16.msra.mxu0 0
      %458 = vmatpush.bf16.msra.mxu0 0
      %459 = vmatpush.bf16.msra.mxu0 0
      %460 = vmatpush.bf16.msra.mxu0 %v405
      %461 = vmatmul.bf16.gmra.mxu0 %v448
      %v462 = vpop.f32.mrf.mxu0
      %v463 = vadd.f32 %v419, %v462
      %v464 = vpop.f32.mrf.mxu0
      %v465 = vadd.f32 %v424, %v464
      %466 = vmatmul.bf16.gmra.mxu0 %v451
      %v467 = vpop.f32.mrf.mxu0
      %v468 = vadd.f32 %v429, %v467
      %v469 = vpop.f32.mrf.mxu0
      %v470 = vadd.f32 %v434, %v469
      %471 = vdwg.mxu0
      %v472 = vmul.f32 %v463, 0.5
      %v473 = vmul.f32 %v465, 0.5
      %v474 = vmul.f32 %v468, 0.5
      %v475 = vmul.f32 %v470, 0.5
      %v476 = vmul.f32 %v463, %v463
      %v477 = vmul.f32 %v465, %v465
      %v478 = vmul.f32 %v468, %v468
      %v479 = vmul.f32 %v470, %v470
      %v480 = vmul.f32 %v476, %v463
      %v481 = vmul.f32 %v477, %v465
      %v482 = vmul.f32 %v478, %v468
      %v483 = vmul.f32 %v479, %v470
      %v484 = vmul.f32 %v480, 0.044715
      %v485 = vmul.f32 %v481, 0.044715
      %v486 = vmul.f32 %v482, 0.044715
      %v487 = vmul.f32 %v483, 0.044715
      %v488 = vadd.f32 %v463, %v484
      %v489 = vadd.f32 %v465, %v485
      %v490 = vadd.f32 %v468, %v486
      %v491 = vadd.f32 %v470, %v487
      %v492 = vmul.f32 %v488, 0.7978846
      %v493 = vmul.f32 %v489, 0.7978846
      %v494 = vmul.f32 %v490, 0.7978846
      %v495 = vmul.f32 %v491, 0.7978846
      %v496 = vtanh.pop %v492
      %v497 = vtanh.pop %v493
      %v498 = vtanh.pop %v494
      %v499 = vtanh.pop %v495
      %v500 = vadd.f32 %v496, 1.0
      %v501 = vadd.f32 %v497, 1.0
      %v502 = vadd.f32 %v498, 1.0
      %v503 = vadd.f32 %v499, 1.0
      %v504 = vmul.f32 %v472, %v500
      %v505 = vmul.f32 %v473, %v501
      %v506 = vmul.f32 %v474, %v502
      %v507 = vmul.f32 %v475, %v503
      %v508 = vld [vmem:[%s4] sm:$0xf]
      %v509 = vpack.c.bf16 %v505, %v504
      %v510 = vpack.c.bf16 %v507, %v506
      %v511 = vld [vmem:[%s5] sm:$0xff]
      %513 = vset.pattern.permute.xlu0 0
      %514 = vperm.xlu0 %513, %v511
      %v515 = vpop.permute.xlu0 %514
      %vm517 = vcmask 261120
      %v519 = vsel %vm517, %v508, 0
      %v522 = vsel %vm517, %v509, 0
      %v525 = vsel %vm517, %v510, 0
      %527 = vmatpush.bf16.xpose.msra.mxu0 0
      %528 = vmatpush.bf16.xpose.msra.mxu0 0
      %529 = vmatpush.bf16.xpose.msra.mxu0 0
      %530 = vmatpush.bf16.xpose.msra.mxu0 0
      %531 = vmatpush.bf16.xpose.msra.mxu0 0
      %532 = vmatpush.bf16.xpose.msra.mxu0 0
      %533 = vmatpush.bf16.xpose.msra.mxu0 %v525
      %534 = vmatpush.bf16.xpose.msra.mxu0 %v522
      %535 = vmatmul.bf16.gmra.mxu0 %v519
      %v536 = vpop.f32.mrf.mxu0
      %v537 = vadd.f32 %v515, %v536
      %v538 = vpop.f32.mrf.mxu0
      %539 = vdwg.mxu0
      %v540 = vmul.f32 %v537, 0.5
      %v541 = vmul.f32 %v537, %v537
      %v542 = vmul.f32 %v541, %v537
      %v543 = vmul.f32 %v542, 0.044715
      %v544 = vadd.f32 %v537, %v543
      %v545 = vmul.f32 %v544, 0.7978846
      %v546 = vtanh.pop %v545
      %v547 = vadd.f32 %v546, 1.0
      %v548 = vmul.f32 %v540, %v547
      %v549 = vld [vmem:[%s6] sm:$0xf]
      %v550 = vld [vmem:[%s6 + $0x4] sm:$0xf]
      %v551 = vld [vmem:[%s6 + $0x8] sm:$0xf]
      %v552 = vld [vmem:[%s6 + $0xc] sm:$0xf]
      %v553 = vpack.c.bf16 %v548, %v548
      %v554 = vld [vmem:[%s7] sm:$0xf]
      %v555 = vld [vmem:[%s7 + $0x4] sm:$0xf]
      %v556 = vld [vmem:[%s7 + $0x8] sm:$0xf]
      %v557 = vld [vmem:[%s7 + $0xc] sm:$0xf]
      %v562 = vunpack.c.l.b16 %v554
      %v563 = vunpack.c.l.b16 %v555
      %v564 = vunpack.c.l.b16 %v556
      %v565 = vunpack.c.l.b16 %v557
      %v566 = vpack.c.b16 %v563, %v562
      %v567 = vpack.c.b16 %v565, %v564
      %v571 = vsel %vm517, %v553, 0
      %573 = vmatpush.bf16.msra.mxu0 0
      %574 = vmatpush.bf16.msra.mxu0 0
      %575 = vmatpush.bf16.msra.mxu0 0
      %576 = vmatpush.bf16.msra.mxu0 0
      %577 = vmatpush.bf16.msra.mxu0 0
      %578 = vmatpush.bf16.msra.mxu0 0
      %579 = vmatpush.bf16.msra.mxu0 %v567
      %580 = vmatpush.bf16.msra.mxu0 %v566
      %581 = vmatmul.bf16.gmra.mxu0 %v571
      %v582 = vpop.f32.mrf.mxu0
      %v583 = vadd.f32 0.0, %v582
      %v584 = vpop.f32.mrf.mxu0
      %585 = vdwg.mxu0
      %v590 = vunpack.c.l.b16 %v549
      %v591 = vunpack.c.l.b16 %v550
      %v592 = vunpack.c.l.b16 %v551
      %v593 = vunpack.c.l.b16 %v552
      %v594 = vpack.c.b16 %v591, %v590
      %v595 = vpack.c.b16 %v593, %v592
      %v599 = vsel %vm517, %v407, 0
      %601 = vmatpush.bf16.msra.mxu0 0
      %602 = vmatpush.bf16.msra.mxu0 0
      %603 = vmatpush.bf16.msra.mxu0 0
      %604 = vmatpush.bf16.msra.mxu0 0
      %605 = vmatpush.bf16.msra.mxu0 0
      %606 = vmatpush.bf16.msra.mxu0 0
      %607 = vmatpush.bf16.msra.mxu0 %v595
      %608 = vmatpush.bf16.msra.mxu0 %v594
      %609 = vmatmul.bf16.gmra.mxu0 %v599
      %v610 = vpop.f32.mrf.mxu0
      %v611 = vadd.f32 %v583, %v610
      %v612 = vpop.f32.mrf.mxu0
      %613 = vdwg.mxu0
      %v614 = vld [vmem:[%s8] sm:$0x1]
      %v616 = vperm.slane %v614, 0
      %v618 = vadd.f32 %v611, %v616
      %v619 = vmul.f32 %v618, 0.5
      %v620 = vmul.f32 %v618, %v618
      %v621 = vmul.f32 %v620, %v618
      %v622 = vmul.f32 %v621, 0.044715
      %v623 = vadd.f32 %v618, %v622
      %v624 = vmul.f32 %v623, 0.7978846
      %v625 = vtanh.pop %v624
      %v626 = vadd.f32 %v625, 1.0
      %v627 = vmul.f32 %v619, %v626
      %v628 = vpack.c.bf16 %v627, %v627
      %v629 = vld [vmem:[%s9] sm:$0xf]
      %v630 = vld [vmem:[%s9 + $0x4] sm:$0xf]
      %v631 = vld [vmem:[%s9 + $0x8] sm:$0xf]
      %v632 = vld [vmem:[%s9 + $0xc] sm:$0xf]
      %v633 = vld [vmem:[%s9 + $0x10] sm:$0xf]
      %v634 = vld [vmem:[%s9 + $0x14] sm:$0xf]
      %v635 = vld [vmem:[%s9 + $0x18] sm:$0xf]
      %v636 = vld [vmem:[%s9 + $0x1c] sm:$0xf]
      %v637 = vld [vmem:[%s10] sm:$0x1]
      %v639 = vperm.slane %v637, 0
      %v649 = vunpack.c.l.b16 %v629
      %v650 = vunpack.c.l.b16 %v630
      %v651 = vunpack.c.l.b16 %v631
      %v652 = vunpack.c.l.b16 %v632
      %v653 = vunpack.c.l.b16 %v633
      %v654 = vunpack.c.l.b16 %v634
      %v655 = vunpack.c.l.b16 %v635
      %v656 = vunpack.c.l.b16 %v636
      %v657 = vpack.c.b16 %v650, %v649
      %v658 = vpack.c.b16 %v652, %v651
      %v659 = vpack.c.b16 %v654, %v653
      %v660 = vpack.c.b16 %v656, %v655
      %vm665 = vcmask 523264
      %v667 = vsel %vm665, %v628, 0
      %669 = vmatpush.bf16.msra.mxu0 0
      %670 = vmatpush.bf16.msra.mxu0 0
      %671 = vmatpush.bf16.msra.mxu0 0
      %672 = vmatpush.bf16.msra.mxu0 0
      %673 = vmatpush.bf16.msra.mxu0 %v660
      %674 = vmatpush.bf16.msra.mxu0 %v659
      %675 = vmatpush.bf16.msra.mxu0 %v658
      %676 = vmatpush.bf16.msra.mxu0 %v657
      %677 = vmatmul.bf16.gmra.mxu0 %v667
      %v678 = vpop.f32.mrf.mxu0
      %v679 = vadd.f32 %v639, %v678
      %v680 = vpop.f32.mrf.mxu0
      %681 = vdwg.mxu0
      %v682 = vmul.f32 %v679, 0.5
      %v683 = vmul.f32 %v679, %v679
      %v684 = vmul.f32 %v683, %v679
      %v685 = vmul.f32 %v684, 0.044715
      %v686 = vadd.f32 %v679, %v685
      %v687 = vmul.f32 %v686, 0.7978846
      %v688 = vtanh.pop %v687
      %v689 = vadd.f32 %v688, 1.0
      %v690 = vmul.f32 %v682, %v689
      %691 = vst.msk [vmem:[%s401] sm:$0xff] %vm517, %v690
      %p692 = scmp.lt.s32.totalorder %s22, 1
      %s693 = scalar_select %p692, %s22, 1
      %s694 = smul.addr %s693, 8
      %s695 = scalar_lea.vmem %s11, %s694
      // Predicated region
      $region65: #{stb_forward.7} parent=63 // pred_check
        %p696 = pneg %p281
      $region66: #{stb_forward.7} parent=63 // pred_check_branch
        %698 = sbr.rel (%p696) target = $region68
      $region67: #{stb_forward.7} parent=63 // pred_region
        _
      $region68: #{stb_forward.7} parent=63 // pred_fallthru
        _
    $region64: #{stb_forward.7} parent=5 // pred_fallthru
      _
    %p699 = scmp.le.s32.totalorder 2, %s17
    // Predicated region
    $region69: #{stb_forward.7} parent=5 // pred_check
      %p700 = pneg %p699
    $region70: #{stb_forward.7} parent=5 // pred_check_branch
      %702 = sbr.rel (%p700) target = $region72
    $region71: #{stb_forward.7} parent=5 // pred_region
      %s703 = ssub.s32 %s17, 2
      // Predicated region
      $region73: #{stb_forward.7} parent=71 // pred_check
        %p704 = pneg %p287
      $region74: #{stb_forward.7} parent=71 // pred_check_branch
        %706 = sbr.rel (%p704) target = $region76
      $region75: #{stb_forward.7} parent=71 // pred_region
        %p707 = scmp.lt.s32.totalorder %s23, 1
        %s708 = scalar_select %p707, %s23, 1
        %s709 = smul.addr %s708, 8
        %s710 = scalar_lea.vmem %s11, %s709
      $region76: #{stb_forward.7} parent=71 // pred_fallthru
        _
    $region72: #{stb_forward.7} parent=5 // pred_fallthru
      _
  $region6: #{stb_forward.7} parent=0 // loop_footer
    %s21 = sadd.s32 1, %s17
  $region7: #{stb_forward.7} parent=0 // loop_footer_branch
    %16 = sbr.rel target = $region3
  $region8: #{stb_forward.7} parent=0 // loop_exit
    _

// kernel: stb_forward.5
$region0: #{stb_forward.5}
  #allocation0 [shape = 'u32[]', space=smem, size = 0x4, offset = 0x4, fixed_abs, tag = 'smem constant byte address 0x4 - core index']
  #allocation1 [shape = 'u32[72,128]{1,0:T(1,128)}', space=vmem, size = 0x9000, scoped, tag = 'internal scratch']
  %s0 = inlined_call_operand.vmem [shape: f32[2,8,32], index: 0, kind: input, shape index: {}]
  %s1 = inlined_call_operand.vmem [shape: bf16[2,32,16], index: 1, kind: input, shape index: {}]
  %s2 = inlined_call_operand.vmem [shape: f32[2,1,16], index: 2, kind: input, shape index: {}]
  %s3 = inlined_call_operand.vmem [shape: bf16[2,32,16], index: 3, kind: input, shape index: {}]
  %s4 = inlined_call_operand.vmem [shape: f32[2,1,16], index: 4, kind: input, shape index: {}]
  %s5 = inlined_call_operand.vmem [shape: bf16[2,32,16], index: 5, kind: input, shape index: {}]
  %s6 = inlined_call_operand.vmem [shape: f32[2,1,16], index: 6, kind: input, shape index: {}]
  %s7 = inlined_call_operand.vmem [shape: bf16[2,16,32], index: 7, kind: input, shape index: {}]
  %s8 = inlined_call_operand.vmem [shape: f32[1,32], index: 8, kind: input, shape index: {}]
  %s9 = inlined_call_operand.vmem [shape: bf16[32,64], index: 9, kind: input, shape index: {}]
  %s10 = inlined_call_operand.vmem [shape: f32[1,64], index: 10, kind: input, shape index: {}]
  %s11 = inlined_call_operand.vmem [shape: bf16[64,32], index: 11, kind: input, shape index: {}]
  %s12 = inlined_call_operand.vmem [shape: f32[1,32], index: 12, kind: input, shape index: {}]
  %s13 = inlined_call_operand.vmem [shape: f32[1,32], index: 13, kind: input, shape index: {}]
  %s14 = inlined_call_operand.vmem [shape: f32[1,32], index: 14, kind: input, shape index: {}]
  %s15 = inlined_call_operand.vmem [shape: f32[1,32], index: 15, kind: input, shape index: {}]
  %s16 = inlined_call_operand.vmem [shape: f32[1,32], index: 16, kind: input, shape index: {}]
  %s17 = inlined_call_operand.vmem [shape: f32[2,8,32], index: 17, kind: output, shape index: {}]
  %s18 = sld [smem:[#allocation0]]
  $region101: #{stb_forward.5} parent=0
    _
  %s20 = ssub.s32 1, %s18
  %s21 = scalar_select 0, %s20, %s18
  loop: start=0, step=1, limit=4
  $region2: #{stb_forward.5} parent=0 // loop_pre_header
    _
  $region3: #{stb_forward.5} parent=0 // loop_header
    %s23 = sphi 0, %s27
    %p24 = scmp.ge.s32.totalorder %s23, 4
    %s33 = sphi 0, %s35
    %s36 = sphi 0, %s33
    %s37 = sphi 0, %s36
    %s53 = sphi 0, %s37
    %s57 = sphi 0, %s57
    %s59 = sphi 0, %s57
    %s60 = sphi 0, %s59
    %s74 = sphi 0, %s60
    %s78 = sphi 0, %s78
    %s80 = sphi 0, %s78
    %s81 = sphi 0, %s80
    %s95 = sphi 0, %s81
    %s99 = sphi 0, %s99
    %s101 = sphi 0, %s99
    %s102 = sphi 0, %s101
    %s116 = sphi 0, %s102
    %s120 = sphi 0, %s120
    %s122 = sphi 0, %s120
    %s123 = sphi 0, %s122
    %s137 = sphi 0, %s123
    %s141 = sphi 0, %s141
    %s143 = sphi 0, %s141
    %s144 = sphi 0, %s143
    %s158 = sphi 0, %s144
    %s162 = sphi 0, %s162
    %s164 = sphi 0, %s162
    %s165 = sphi 0, %s164
    %s179 = sphi 0, %s165
    %s183 = sphi 0, %s183
    %s185 = sphi 0, %s183
    %s186 = sphi 0, %s185
    %s200 = sphi 0, %s186
    %s204 = sphi 0, %s204
    %s206 = sphi 0, %s204
    %s207 = sphi 0, %s206
    %s221 = sphi 0, %s207
    %s225 = sphi 0, %s225
    %s227 = sphi 0, %s225
    %s228 = sphi 0, %s227
    %s242 = sphi 0, %s228
    %s246 = sphi 0, %s246
    %s248 = sphi 0, %s246
    %s249 = sphi 0, %s248
    %s263 = sphi 0, %s249
    %s267 = sphi 0, %s267
    %s269 = sphi 0, %s267
    %s270 = sphi 0, %s269
    %s284 = sphi 0, %s270
    %s288 = sphi 0, %s288
    %s290 = sphi 0, %s288
    %s291 = sphi 0, %s290
    %s305 = sphi 0, %s291
    %s309 = sphi 0, %s309
    %s311 = sphi 0, %s309
    %s312 = sphi 0, %s311
    %s326 = sphi 0, %s312
    %s330 = sphi 0, %s330
    %s332 = sphi 0, %s330
    %s333 = sphi 0, %s332
    %s347 = sphi 0, %s333
    %s351 = sphi 0, %s351
    %s353 = sphi 0, %s351
    %s354 = sphi 0, %s353
    %s368 = sphi 0, %s354
    %s372 = sphi 0, %s372
    %s374 = sphi 0, %s372
    %s375 = sphi 0, %s374
    %s389 = sphi 0, %s375
    %s395 = sphi 0, %s397
    %s398 = sphi 0, %s395
    %s399 = sphi 0, %s398
    %s415 = sphi 0, %s399
  $region4: #{stb_forward.5} parent=0 // loop_header_branch
    %26 = sbr.rel (%p24) target = $region8
  $region5: #{stb_forward.5} parent=0 // loop_body
    %s28 = ssub.s32 %s23, 1
    %s29 = ssub.s32 %s23, 2
    %s30 = sadd.s32 %s23, 1
    %s31 = ssub.s32 %s23, %s30
    %p32 = scmp.eq.s32.totalorder %s31, 0
    %s34 = sadd.s32 %s33, 1
    %s35 = scalar_select %p32, %s33, %s34
    %p38 = pneg %p32
    %p39 = scmp.eq.s32.totalorder %s23, 1
    %p40 = por %p38, %p39
    %p41 = scmp.ne.s32.totalorder %s33, %s36
    %p42 = scmp.eq.s32.totalorder %s23, 0
    %p43 = por %p41, %p42
    %p44 = scmp.ne.s32.totalorder %s33, %s36
    %p45 = scmp.eq.s32.totalorder %s28, 1
    %p46 = por %p44, %p45
    %p47 = scmp.ne.s32.totalorder %s36, %s37
    %p48 = scmp.eq.s32.totalorder %s28, 0
    %p49 = por %p47, %p48
    %p50 = scmp.ne.s32.totalorder %s36, %s37
    %p51 = scmp.eq.s32.totalorder %s29, 1
    %p52 = por %p50, %p51
    %p54 = scmp.ne.s32.totalorder %s37, %s53
    %p55 = scmp.eq.s32.totalorder %s29, 0
    %p56 = por %p54, %p55
    %s58 = sadd.s32 %s57, 1
    %p61 = scmp.eq.s32.totalorder %s23, 1
    %p62 = scmp.ne.s32.totalorder %s57, %s59
    %p63 = scmp.eq.s32.totalorder %s23, 0
    %p64 = por %p62, %p63
    %p65 = scmp.ne.s32.totalorder %s57, %s59
    %p66 = scmp.eq.s32.totalorder %s28, 1
    %p67 = por %p65, %p66
    %p68 = scmp.ne.s32.totalorder %s59, %s60
    %p69 = scmp.eq.s32.totalorder %s28, 0
    %p70 = por %p68, %p69
    %p71 = scmp.ne.s32.totalorder %s59, %s60
    %p72 = scmp.eq.s32.totalorder %s29, 1
    %p73 = por %p71, %p72
    %p75 = scmp.ne.s32.totalorder %s60, %s74
    %p76 = scmp.eq.s32.totalorder %s29, 0
    %p77 = por %p75, %p76
    %s79 = sadd.s32 %s78, 1
    %p82 = scmp.eq.s32.totalorder %s23, 1
    %p83 = scmp.ne.s32.totalorder %s78, %s80
    %p84 = scmp.eq.s32.totalorder %s23, 0
    %p85 = por %p83, %p84
    %p86 = scmp.ne.s32.totalorder %s78, %s80
    %p87 = scmp.eq.s32.totalorder %s28, 1
    %p88 = por %p86, %p87
    %p89 = scmp.ne.s32.totalorder %s80, %s81
    %p90 = scmp.eq.s32.totalorder %s28, 0
    %p91 = por %p89, %p90
    %p92 = scmp.ne.s32.totalorder %s80, %s81
    %p93 = scmp.eq.s32.totalorder %s29, 1
    %p94 = por %p92, %p93
    %p96 = scmp.ne.s32.totalorder %s81, %s95
    %p97 = scmp.eq.s32.totalorder %s29, 0
    %p98 = por %p96, %p97
    %s100 = sadd.s32 %s99, 1
    %p103 = scmp.eq.s32.totalorder %s23, 1
    %p104 = scmp.ne.s32.totalorder %s99, %s101
    %p105 = scmp.eq.s32.totalorder %s23, 0
    %p106 = por %p104, %p105
    %p107 = scmp.ne.s32.totalorder %s99, %s101
    %p108 = scmp.eq.s32.totalorder %s28, 1
    %p109 = por %p107, %p108
    %p110 = scmp.ne.s32.totalorder %s101, %s102
    %p111 = scmp.eq.s32.totalorder %s28, 0
    %p112 = por %p110, %p111
    %p113 = scmp.ne.s32.totalorder %s101, %s102
    %p114 = scmp.eq.s32.totalorder %s29, 1
    %p115 = por %p113, %p114
    %p117 = scmp.ne.s32.totalorder %s102, %s116
    %p118 = scmp.eq.s32.totalorder %s29, 0
    %p119 = por %p117, %p118
    %s121 = sadd.s32 %s120, 1
    %p124 = scmp.eq.s32.totalorder %s23, 1
    %p125 = scmp.ne.s32.totalorder %s120, %s122
    %p126 = scmp.eq.s32.totalorder %s23, 0
    %p127 = por %p125, %p126
    %p128 = scmp.ne.s32.totalorder %s120, %s122
    %p129 = scmp.eq.s32.totalorder %s28, 1
    %p130 = por %p128, %p129
    %p131 = scmp.ne.s32.totalorder %s122, %s123
    %p132 = scmp.eq.s32.totalorder %s28, 0
    %p133 = por %p131, %p132
    %p134 = scmp.ne.s32.totalorder %s122, %s123
    %p135 = scmp.eq.s32.totalorder %s29, 1
    %p136 = por %p134, %p135
    %p138 = scmp.ne.s32.totalorder %s123, %s137
    %p139 = scmp.eq.s32.totalorder %s29, 0
    %p140 = por %p138, %p139
    %s142 = sadd.s32 %s141, 1
    %p145 = scmp.eq.s32.totalorder %s23, 1
    %p146 = scmp.ne.s32.totalorder %s141, %s143
    %p147 = scmp.eq.s32.totalorder %s23, 0
    %p148 = por %p146, %p147
    %p149 = scmp.ne.s32.totalorder %s141, %s143
    %p150 = scmp.eq.s32.totalorder %s28, 1
    %p151 = por %p149, %p150
    %p152 = scmp.ne.s32.totalorder %s143, %s144
    %p153 = scmp.eq.s32.totalorder %s28, 0
    %p154 = por %p152, %p153
    %p155 = scmp.ne.s32.totalorder %s143, %s144
    %p156 = scmp.eq.s32.totalorder %s29, 1
    %p157 = por %p155, %p156
    %p159 = scmp.ne.s32.totalorder %s144, %s158
    %p160 = scmp.eq.s32.totalorder %s29, 0
    %p161 = por %p159, %p160
    %s163 = sadd.s32 %s162, 1
    %p166 = scmp.eq.s32.totalorder %s23, 1
    %p167 = scmp.ne.s32.totalorder %s162, %s164
    %p168 = scmp.eq.s32.totalorder %s23, 0
    %p169 = por %p167, %p168
    %p170 = scmp.ne.s32.totalorder %s162, %s164
    %p171 = scmp.eq.s32.totalorder %s28, 1
    %p172 = por %p170, %p171
    %p173 = scmp.ne.s32.totalorder %s164, %s165
    %p174 = scmp.eq.s32.totalorder %s28, 0
    %p175 = por %p173, %p174
    %p176 = scmp.ne.s32.totalorder %s164, %s165
    %p177 = scmp.eq.s32.totalorder %s29, 1
    %p178 = por %p176, %p177
    %p180 = scmp.ne.s32.totalorder %s165, %s179
    %p181 = scmp.eq.s32.totalorder %s29, 0
    %p182 = por %p180, %p181
    %s184 = sadd.s32 %s183, 1
    %p187 = scmp.eq.s32.totalorder %s23, 1
    %p188 = scmp.ne.s32.totalorder %s183, %s185
    %p189 = scmp.eq.s32.totalorder %s23, 0
    %p190 = por %p188, %p189
    %p191 = scmp.ne.s32.totalorder %s183, %s185
    %p192 = scmp.eq.s32.totalorder %s28, 1
    %p193 = por %p191, %p192
    %p194 = scmp.ne.s32.totalorder %s185, %s186
    %p195 = scmp.eq.s32.totalorder %s28, 0
    %p196 = por %p194, %p195
    %p197 = scmp.ne.s32.totalorder %s185, %s186
    %p198 = scmp.eq.s32.totalorder %s29, 1
    %p199 = por %p197, %p198
    %p201 = scmp.ne.s32.totalorder %s186, %s200
    %p202 = scmp.eq.s32.totalorder %s29, 0
    %p203 = por %p201, %p202
    %s205 = sadd.s32 %s204, 1
    %p208 = scmp.eq.s32.totalorder %s23, 1
    %p209 = scmp.ne.s32.totalorder %s204, %s206
    %p210 = scmp.eq.s32.totalorder %s23, 0
    %p211 = por %p209, %p210
    %p212 = scmp.ne.s32.totalorder %s204, %s206
    %p213 = scmp.eq.s32.totalorder %s28, 1
    %p214 = por %p212, %p213
    %p215 = scmp.ne.s32.totalorder %s206, %s207
    %p216 = scmp.eq.s32.totalorder %s28, 0
    %p217 = por %p215, %p216
    %p218 = scmp.ne.s32.totalorder %s206, %s207
    %p219 = scmp.eq.s32.totalorder %s29, 1
    %p220 = por %p218, %p219
    %p222 = scmp.ne.s32.totalorder %s207, %s221
    %p223 = scmp.eq.s32.totalorder %s29, 0
    %p224 = por %p222, %p223
    %s226 = sadd.s32 %s225, 1
    %p229 = scmp.eq.s32.totalorder %s23, 1
    %p230 = scmp.ne.s32.totalorder %s225, %s227
    %p231 = scmp.eq.s32.totalorder %s23, 0
    %p232 = por %p230, %p231
    %p233 = scmp.ne.s32.totalorder %s225, %s227
    %p234 = scmp.eq.s32.totalorder %s28, 1
    %p235 = por %p233, %p234
    %p236 = scmp.ne.s32.totalorder %s227, %s228
    %p237 = scmp.eq.s32.totalorder %s28, 0
    %p238 = por %p236, %p237
    %p239 = scmp.ne.s32.totalorder %s227, %s228
    %p240 = scmp.eq.s32.totalorder %s29, 1
    %p241 = por %p239, %p240
    %p243 = scmp.ne.s32.totalorder %s228, %s242
    %p244 = scmp.eq.s32.totalorder %s29, 0
    %p245 = por %p243, %p244
    %s247 = sadd.s32 %s246, 1
    %p250 = scmp.eq.s32.totalorder %s23, 1
    %p251 = scmp.ne.s32.totalorder %s246, %s248
    %p252 = scmp.eq.s32.totalorder %s23, 0
    %p253 = por %p251, %p252
    %p254 = scmp.ne.s32.totalorder %s246, %s248
    %p255 = scmp.eq.s32.totalorder %s28, 1
    %p256 = por %p254, %p255
    %p257 = scmp.ne.s32.totalorder %s248, %s249
    %p258 = scmp.eq.s32.totalorder %s28, 0
    %p259 = por %p257, %p258
    %p260 = scmp.ne.s32.totalorder %s248, %s249
    %p261 = scmp.eq.s32.totalorder %s29, 1
    %p262 = por %p260, %p261
    %p264 = scmp.ne.s32.totalorder %s249, %s263
    %p265 = scmp.eq.s32.totalorder %s29, 0
    %p266 = por %p264, %p265
    %s268 = sadd.s32 %s267, 1
    %p271 = scmp.eq.s32.totalorder %s23, 1
    %p272 = scmp.ne.s32.totalorder %s267, %s269
    %p273 = scmp.eq.s32.totalorder %s23, 0
    %p274 = por %p272, %p273
    %p275 = scmp.ne.s32.totalorder %s267, %s269
    %p276 = scmp.eq.s32.totalorder %s28, 1
    %p277 = por %p275, %p276
    %p278 = scmp.ne.s32.totalorder %s269, %s270
    %p279 = scmp.eq.s32.totalorder %s28, 0
    %p280 = por %p278, %p279
    %p281 = scmp.ne.s32.totalorder %s269, %s270
    %p282 = scmp.eq.s32.totalorder %s29, 1
    %p283 = por %p281, %p282
    %p285 = scmp.ne.s32.totalorder %s270, %s284
    %p286 = scmp.eq.s32.totalorder %s29, 0
    %p287 = por %p285, %p286
    %s289 = sadd.s32 %s288, 1
    %p292 = scmp.eq.s32.totalorder %s23, 1
    %p293 = scmp.ne.s32.totalorder %s288, %s290
    %p294 = scmp.eq.s32.totalorder %s23, 0
    %p295 = por %p293, %p294
    %p296 = scmp.ne.s32.totalorder %s288, %s290
    %p297 = scmp.eq.s32.totalorder %s28, 1
    %p298 = por %p296, %p297
    %p299 = scmp.ne.s32.totalorder %s290, %s291
    %p300 = scmp.eq.s32.totalorder %s28, 0
    %p301 = por %p299, %p300
    %p302 = scmp.ne.s32.totalorder %s290, %s291
    %p303 = scmp.eq.s32.totalorder %s29, 1
    %p304 = por %p302, %p303
    %p306 = scmp.ne.s32.totalorder %s291, %s305
    %p307 = scmp.eq.s32.totalorder %s29, 0
    %p308 = por %p306, %p307
    %s310 = sadd.s32 %s309, 1
    %p313 = scmp.eq.s32.totalorder %s23, 1
    %p314 = scmp.ne.s32.totalorder %s309, %s311
    %p315 = scmp.eq.s32.totalorder %s23, 0
    %p316 = por %p314, %p315
    %p317 = scmp.ne.s32.totalorder %s309, %s311
    %p318 = scmp.eq.s32.totalorder %s28, 1
    %p319 = por %p317, %p318
    %p320 = scmp.ne.s32.totalorder %s311, %s312
    %p321 = scmp.eq.s32.totalorder %s28, 0
    %p322 = por %p320, %p321
    %p323 = scmp.ne.s32.totalorder %s311, %s312
    %p324 = scmp.eq.s32.totalorder %s29, 1
    %p325 = por %p323, %p324
    %p327 = scmp.ne.s32.totalorder %s312, %s326
    %p328 = scmp.eq.s32.totalorder %s29, 0
    %p329 = por %p327, %p328
    %s331 = sadd.s32 %s330, 1
    %p334 = scmp.eq.s32.totalorder %s23, 1
    %p335 = scmp.ne.s32.totalorder %s330, %s332
    %p336 = scmp.eq.s32.totalorder %s23, 0
    %p337 = por %p335, %p336
    %p338 = scmp.ne.s32.totalorder %s330, %s332
    %p339 = scmp.eq.s32.totalorder %s28, 1
    %p340 = por %p338, %p339
    %p341 = scmp.ne.s32.totalorder %s332, %s333
    %p342 = scmp.eq.s32.totalorder %s28, 0
    %p343 = por %p341, %p342
    %p344 = scmp.ne.s32.totalorder %s332, %s333
    %p345 = scmp.eq.s32.totalorder %s29, 1
    %p346 = por %p344, %p345
    %p348 = scmp.ne.s32.totalorder %s333, %s347
    %p349 = scmp.eq.s32.totalorder %s29, 0
    %p350 = por %p348, %p349
    %s352 = sadd.s32 %s351, 1
    %p355 = scmp.eq.s32.totalorder %s23, 1
    %p356 = scmp.ne.s32.totalorder %s351, %s353
    %p357 = scmp.eq.s32.totalorder %s23, 0
    %p358 = por %p356, %p357
    %p359 = scmp.ne.s32.totalorder %s351, %s353
    %p360 = scmp.eq.s32.totalorder %s28, 1
    %p361 = por %p359, %p360
    %p362 = scmp.ne.s32.totalorder %s353, %s354
    %p363 = scmp.eq.s32.totalorder %s28, 0
    %p364 = por %p362, %p363
    %p365 = scmp.ne.s32.totalorder %s353, %s354
    %p366 = scmp.eq.s32.totalorder %s29, 1
    %p367 = por %p365, %p366
    %p369 = scmp.ne.s32.totalorder %s354, %s368
    %p370 = scmp.eq.s32.totalorder %s29, 0
    %p371 = por %p369, %p370
    %s373 = sadd.s32 %s372, 1
    %p376 = scmp.eq.s32.totalorder %s23, 1
    %p377 = scmp.ne.s32.totalorder %s372, %s374
    %p378 = scmp.eq.s32.totalorder %s23, 0
    %p379 = por %p377, %p378
    %p380 = scmp.ne.s32.totalorder %s372, %s374
    %p381 = scmp.eq.s32.totalorder %s28, 1
    %p382 = por %p380, %p381
    %p383 = scmp.ne.s32.totalorder %s374, %s375
    %p384 = scmp.eq.s32.totalorder %s28, 0
    %p385 = por %p383, %p384
    %p386 = scmp.ne.s32.totalorder %s374, %s375
    %p387 = scmp.eq.s32.totalorder %s29, 1
    %p388 = por %p386, %p387
    %p390 = scmp.ne.s32.totalorder %s375, %s389
    %p391 = scmp.eq.s32.totalorder %s29, 0
    %p392 = por %p390, %p391
    %s393 = ssub.s32 %s23, %s30
    %p394 = scmp.eq.s32.totalorder %s393, 0
    %s396 = sadd.s32 %s395, 1
    %s397 = scalar_select %p394, %s395, %s396
    %p400 = pneg %p394
    %p401 = scmp.eq.s32.totalorder %s23, 1
    %p402 = por %p400, %p401
    %p403 = scmp.ne.s32.totalorder %s395, %s398
    %p404 = scmp.eq.s32.totalorder %s23, 0
    %p405 = por %p403, %p404
    %p406 = scmp.ne.s32.totalorder %s395, %s398
    %p407 = scmp.eq.s32.totalorder %s28, 1
    %p408 = por %p406, %p407
    %p409 = scmp.ne.s32.totalorder %s398, %s399
    %p410 = scmp.eq.s32.totalorder %s28, 0
    %p411 = por %p409, %p410
    %p412 = scmp.ne.s32.totalorder %s398, %s399
    %p413 = scmp.eq.s32.totalorder %s29, 1
    %p414 = por %p412, %p413
    %p416 = scmp.ne.s32.totalorder %s399, %s415
    %p417 = scmp.eq.s32.totalorder %s29, 0
    %p418 = por %p416, %p417
    %p419 = scmp.le.s32.totalorder 1, %s23
    %p420 = scmp.lt.s32.totalorder %s23, 3
    %p421 = pnand %p419, %p420
    %p422 = pneg %p421
    // Predicated region
    $region9: #{stb_forward.5} parent=5 // pred_check
      _
    $region10: #{stb_forward.5} parent=5 // pred_check_branch
      %424 = sbr.rel (%p421) target = $region12
    $region11: #{stb_forward.5} parent=5 // pred_region
      %s425 = ssub.s32 %s23, 1
      // Predicated region
      $region13: #{stb_forward.5} parent=11 // pred_check
        %p426 = pneg %p70
      $region14: #{stb_forward.5} parent=11 // pred_check_branch
        %428 = sbr.rel (%p426) target = $region16
      $region15: #{stb_forward.5} parent=11 // pred_region
        _
      $region16: #{stb_forward.5} parent=11 // pred_fallthru
        _
      // Predicated region
      $region17: #{stb_forward.5} parent=11 // pred_check
        %p429 = pneg %p91
      $region18: #{stb_forward.5} parent=11 // pred_check_branch
        %431 = sbr.rel (%p429) target = $region20
      $region19: #{stb_forward.5} parent=11 // pred_region
        _
      $region20: #{stb_forward.5} parent=11 // pred_fallthru
        _
      // Predicated region
      $region21: #{stb_forward.5} parent=11 // pred_check
        %p432 = pneg %p112
      $region22: #{stb_forward.5} parent=11 // pred_check_branch
        %434 = sbr.rel (%p432) target = $region24
      $region23: #{stb_forward.5} parent=11 // pred_region
        _
      $region24: #{stb_forward.5} parent=11 // pred_fallthru
        _
      // Predicated region
      $region25: #{stb_forward.5} parent=11 // pred_check
        %p435 = pneg %p133
      $region26: #{stb_forward.5} parent=11 // pred_check_branch
        %437 = sbr.rel (%p435) target = $region28
      $region27: #{stb_forward.5} parent=11 // pred_region
        _
      $region28: #{stb_forward.5} parent=11 // pred_fallthru
        _
      // Predicated region
      $region29: #{stb_forward.5} parent=11 // pred_check
        %p438 = pneg %p154
      $region30: #{stb_forward.5} parent=11 // pred_check_branch
        %440 = sbr.rel (%p438) target = $region32
      $region31: #{stb_forward.5} parent=11 // pred_region
        _
      $region32: #{stb_forward.5} parent=11 // pred_fallthru
        _
      // Predicated region
      $region33: #{stb_forward.5} parent=11 // pred_check
        %p441 = pneg %p175
      $region34: #{stb_forward.5} parent=11 // pred_check_branch
        %443 = sbr.rel (%p441) target = $region36
      $region35: #{stb_forward.5} parent=11 // pred_region
        _
      $region36: #{stb_forward.5} parent=11 // pred_fallthru
        _
      // Predicated region
      $region37: #{stb_forward.5} parent=11 // pred_check
        %p444 = pneg %p196
      $region38: #{stb_forward.5} parent=11 // pred_check_branch
        %446 = sbr.rel (%p444) target = $region40
      $region39: #{stb_forward.5} parent=11 // pred_region
        _
      $region40: #{stb_forward.5} parent=11 // pred_fallthru
        _
      // Predicated region
      $region41: #{stb_forward.5} parent=11 // pred_check
        %p447 = pneg %p217
      $region42: #{stb_forward.5} parent=11 // pred_check_branch
        %449 = sbr.rel (%p447) target = $region44
      $region43: #{stb_forward.5} parent=11 // pred_region
        _
      $region44: #{stb_forward.5} parent=11 // pred_fallthru
        _
      // Predicated region
      $region45: #{stb_forward.5} parent=11 // pred_check
        %p450 = pneg %p238
      $region46: #{stb_forward.5} parent=11 // pred_check_branch
        %452 = sbr.rel (%p450) target = $region48
      $region47: #{stb_forward.5} parent=11 // pred_region
        _
      $region48: #{stb_forward.5} parent=11 // pred_fallthru
        _
      // Predicated region
      $region49: #{stb_forward.5} parent=11 // pred_check
        %p453 = pneg %p259
      $region50: #{stb_forward.5} parent=11 // pred_check_branch
        %455 = sbr.rel (%p453) target = $region52
      $region51: #{stb_forward.5} parent=11 // pred_region
        _
      $region52: #{stb_forward.5} parent=11 // pred_fallthru
        _
      // Predicated region
      $region53: #{stb_forward.5} parent=11 // pred_check
        %p456 = pneg %p280
      $region54: #{stb_forward.5} parent=11 // pred_check_branch
        %458 = sbr.rel (%p456) target = $region56
      $region55: #{stb_forward.5} parent=11 // pred_region
        _
      $region56: #{stb_forward.5} parent=11 // pred_fallthru
        _
      // Predicated region
      $region57: #{stb_forward.5} parent=11 // pred_check
        %p459 = pneg %p301
      $region58: #{stb_forward.5} parent=11 // pred_check_branch
        %461 = sbr.rel (%p459) target = $region60
      $region59: #{stb_forward.5} parent=11 // pred_region
        _
      $region60: #{stb_forward.5} parent=11 // pred_fallthru
        _
      // Predicated region
      $region61: #{stb_forward.5} parent=11 // pred_check
        %p462 = pneg %p322
      $region62: #{stb_forward.5} parent=11 // pred_check_branch
        %464 = sbr.rel (%p462) target = $region64
      $region63: #{stb_forward.5} parent=11 // pred_region
        _
      $region64: #{stb_forward.5} parent=11 // pred_fallthru
        _
      // Predicated region
      $region65: #{stb_forward.5} parent=11 // pred_check
        %p465 = pneg %p343
      $region66: #{stb_forward.5} parent=11 // pred_check_branch
        %467 = sbr.rel (%p465) target = $region68
      $region67: #{stb_forward.5} parent=11 // pred_region
        _
      $region68: #{stb_forward.5} parent=11 // pred_fallthru
        _
      // Predicated region
      $region69: #{stb_forward.5} parent=11 // pred_check
        %p468 = pneg %p364
      $region70: #{stb_forward.5} parent=11 // pred_check_branch
        %470 = sbr.rel (%p468) target = $region72
      $region71: #{stb_forward.5} parent=11 // pred_region
        _
      $region72: #{stb_forward.5} parent=11 // pred_fallthru
        _
      // Predicated region
      $region73: #{stb_forward.5} parent=11 // pred_check
        %p471 = pneg %p385
      $region74: #{stb_forward.5} parent=11 // pred_check_branch
        %473 = sbr.rel (%p471) target = $region76
      $region75: #{stb_forward.5} parent=11 // pred_region
        _
      $region76: #{stb_forward.5} parent=11 // pred_fallthru
        _
    $region12: #{stb_forward.5} parent=5 // pred_fallthru
      _
    %p474 = scmp.lt.s32.totalorder %s23, 2
    // Predicated region
    $region77: #{stb_forward.5} parent=5 // pred_check
      %p475 = pneg %p474
    $region78: #{stb_forward.5} parent=5 // pred_check_branch
      %477 = sbr.rel (%p475) target = $region80
    $region79: #{stb_forward.5} parent=5 // pred_region
      // Predicated region
      $region81: #{stb_forward.5} parent=79 // pred_check
        %p478 = pneg %p43
      $region82: #{stb_forward.5} parent=79 // pred_check_branch
        %480 = sbr.rel (%p478) target = $region84
      $region83: #{stb_forward.5} parent=79 // pred_region
        %p481 = scmp.lt.s32.totalorder %s23, 1
        %s482 = scalar_select %p481, %s23, 1
        %s483 = smul.addr %s482, 8
        %s484 = scalar_lea.vmem %s0, %s483
      $region84: #{stb_forward.5} parent=79 // pred_fallthru
        _
    $region80: #{stb_forward.5} parent=5 // pred_fallthru
      _
    %p485 = scmp.le.s32.totalorder 1, %s23
    %p486 = scmp.lt.s32.totalorder %s23, 3
    %p487 = pnand %p485, %p486
    %p488 = pneg %p487
    // Predicated region
    $region85: #{stb_forward.5} parent=5 // pred_check
      _
    $region86: #{stb_forward.5} parent=5 // pred_check_branch
      %490 = sbr.rel (%p487) target = $region88
    $region87: #{stb_forward.5} parent=5 // pred_region
      %s491 = ssub.s32 %s23, 1
      %p492 = scmp.lt.s32.totalorder %s28, 1
      %s493 = scalar_select %p492, %s28, 1
      %s494 = smul.addr %s493, 8
      %s495 = scalar_lea.vmem %s0, %s494
      %p496 = pneg %p49
      %p497 = pneg %p46
      %p498 = pneg %p70
      %p499 = pneg %p67
      %p500 = pneg %p91
      %p501 = pneg %p88
      %p502 = pneg %p112
      %p503 = pneg %p109
      %p504 = pneg %p133
      %p505 = pneg %p130
      %p506 = pneg %p154
      %p507 = pneg %p151
      %p508 = pneg %p175
      %p509 = pneg %p172
      %p510 = pneg %p196
      %p511 = pneg %p193
      %p512 = pneg %p217
      %p513 = pneg %p214
      %p514 = pneg %p238
      %p515 = pneg %p235
      %p516 = pneg %p259
      %p517 = pneg %p256
      %p518 = pneg %p280
      %p519 = pneg %p277
      %p520 = pneg %p301
      %p521 = pneg %p298
      %p522 = pneg %p322
      %p523 = pneg %p319
      %p524 = pneg %p343
      %p525 = pneg %p340
      %p526 = pneg %p364
      %p527 = pneg %p361
      %p528 = pneg %p385
      %p529 = pneg %p382
      %p530 = pneg %p411
      %p531 = pneg %p408
      %p532 = scmp.lt.s32.totalorder %s28, 1
      %s533 = scalar_select %p532, %s28, 1
      %s534 = smul.addr %s533, 8
      %s535 = scalar_lea.vmem %s17, %s534
      %p536 = scmp.lt.s32.totalorder %s28, 1
      %s537 = scalar_select %p536, %s28, 1
      %s538 = smul.addr %s537, 8
      %s539 = scalar_lea.vmem %s0, %s538
      %p540 = scmp.lt.s32.totalorder %s28, 1
      %s541 = scalar_select %p540, %s28, 1
      %s542 = smul.addr %s541, 8
      %s543 = scalar_lea.vmem %s17, %s542
      %v545 = vld [vmem:[%s539] sm:$0xff]
      %v546 = vpack.c.bf16 %v545, %v545
      %v547 = vld [vmem:[%s1] sm:$0xf]
      %v548 = vld [vmem:[%s1 + $0x4] sm:$0xf]
      %v549 = vld [vmem:[%s1 + $0x8] sm:$0xf]
      %v550 = vld [vmem:[%s1 + $0xc] sm:$0xf]
      %v551 = vld [vmem:[%s2] sm:$0x1]
      %v553 = vperm.slane %v551, 0
      %v559 = vunpack.c.l.b16 %v547
      %v560 = vunpack.c.l.b16 %v548
      %v561 = vunpack.c.l.b16 %v549
      %v562 = vunpack.c.l.b16 %v550
      %v563 = vpack.c.b16 %v560, %v559
      %v564 = vpack.c.b16 %v562, %v561
      %vm567 = vcmask 261120
      %v569 = vsel %vm567, %v546, 0
      %571 = vmatpush.bf16.msra.mxu0 0
      %572 = vmatpush.bf16.msra.mxu0 0
      %573 = vmatpush.bf16.msra.mxu0 0
      %574 = vmatpush.bf16.msra.mxu0 0
      %575 = vmatpush.bf16.msra.mxu0 0
      %576 = vmatpush.bf16.msra.mxu0 0
      %577 = vmatpush.bf16.msra.mxu0 %v564
      %578 = vmatpush.bf16.msra.mxu0 %v563
      %579 = vmatmul.bf16.gmra.mxu0 %v569
      %v580 = vpop.f32.mrf.mxu0
      %v581 = vadd.f32 %v553, %v580
      %v582 = vpop.f32.mrf.mxu0
      %583 = vdwg.mxu0
      %v584 = vld [vmem:[%s3] sm:$0xf]
      %v585 = vld [vmem:[%s3 + $0x4] sm:$0xf]
      %v586 = vld [vmem:[%s3 + $0x8] sm:$0xf]
      %v587 = vld [vmem:[%s3 + $0xc] sm:$0xf]
      %v588 = vld [vmem:[%s4] sm:$0x1]
      %v590 = vperm.slane %v588, 0
      %v596 = vunpack.c.l.b16 %v584
      %v597 = vunpack.c.l.b16 %v585
      %v598 = vunpack.c.l.b16 %v586
      %v599 = vunpack.c.l.b16 %v587
      %v600 = vpack.c.b16 %v597, %v596
      %v601 = vpack.c.b16 %v599, %v598
      %604 = vmatpush.bf16.msra.mxu0 0
      %605 = vmatpush.bf16.msra.mxu0 0
      %606 = vmatpush.bf16.msra.mxu0 0
      %607 = vmatpush.bf16.msra.mxu0 0
      %608 = vmatpush.bf16.msra.mxu0 0
      %609 = vmatpush.bf16.msra.mxu0 0
      %610 = vmatpush.bf16.msra.mxu0 %v601
      %611 = vmatpush.bf16.msra.mxu0 %v600
      %612 = vmatmul.bf16.gmra.mxu0 %v569
      %v613 = vpop.f32.mrf.mxu0
      %v614 = vadd.f32 %v590, %v613
      %v615 = vpop.f32.mrf.mxu0
      %616 = vdwg.mxu0
      %v617 = vld [vmem:[%s5] sm:$0xf]
      %v618 = vld [vmem:[%s5 + $0x4] sm:$0xf]
      %v619 = vld [vmem:[%s5 + $0x8] sm:$0xf]
      %v620 = vld [vmem:[%s5 + $0xc] sm:$0xf]
      %v621 = vld [vmem:[%s6] sm:$0x1]
      %v623 = vperm.slane %v621, 0
      %v629 = vunpack.c.l.b16 %v617
      %v630 = vunpack.c.l.b16 %v618
      %v631 = vunpack.c.l.b16 %v619
      %v632 = vunpack.c.l.b16 %v620
      %v633 = vpack.c.b16 %v630, %v629
      %v634 = vpack.c.b16 %v632, %v631
      %637 = vmatpush.bf16.msra.mxu0 0
      %638 = vmatpush.bf16.msra.mxu0 0
      %639 = vmatpush.bf16.msra.mxu0 0
      %640 = vmatpush.bf16.msra.mxu0 0
      %641 = vmatpush.bf16.msra.mxu0 0
      %642 = vmatpush.bf16.msra.mxu0 0
      %643 = vmatpush.bf16.msra.mxu0 %v634
      %644 = vmatpush.bf16.msra.mxu0 %v633
      %645 = vmatmul.bf16.gmra.mxu0 %v569
      %v646 = vpop.f32.mrf.mxu0
      %v647 = vadd.f32 %v623, %v646
      %v648 = vpop.f32.mrf.mxu0
      %649 = vdwg.mxu0
      %v650 = vpack.c.bf16 %v581, %v581
      %v651 = vpack.c.bf16 %v614, %v614
      %vm652 = vcmask 130048
      %v654 = vsel %vm652, %v650, 0
      %v657 = vsel %vm652, %v651, 0
      %659 = vmatpush.bf16.xpose.msra.mxu0 0
      %660 = vmatpush.bf16.xpose.msra.mxu0 0
      %661 = vmatpush.bf16.xpose.msra.mxu0 0
      %662 = vmatpush.bf16.xpose.msra.mxu0 0
      %663 = vmatpush.bf16.xpose.msra.mxu0 0
      %664 = vmatpush.bf16.xpose.msra.mxu0 0
      %665 = vmatpush.bf16.xpose.msra.mxu0 0
      %666 = vmatpush.bf16.xpose.msra.mxu0 %v657
      %667 = vmatmul.bf16.gmra.mxu0 %v654
      %v668 = vpop.f32.mrf.mxu0
      %v669 = vadd.f32 0.0, %v668
      %v670 = vpop.f32.mrf.mxu0
      %671 = vdwg.mxu0
      %v672 = vmul.f32 %v669, 0.25
      %vm673 = vcmask 64512
      %v674 = vsel %vm673, %v672, -inf
      %675 = vmax.xlane.f32.xlu0 %v674
      %v676 = vpop.xlane.xlu0 %675
      %v677 = vsub.f32 %v672, %v676
      %v678 = vmul.f32 %v677, 1.442695
      %v679 = vpow.pop %v678
      %v680 = vsel %vm673, %v679, 0.0
      %681 = vadd.xlane.f32.xlu0 %v680
      %v682 = vpop.xlane.xlu0 %681
      %v683 = vrcp.pop %v682
      %v684 = vmul.f32 %v679, %v683
      %v685 = vpack.c.bf16 %v684, %v684
      %v686 = vpack.c.bf16 %v647, %v647
      %v688 = vsel %vm673, %v685, 0
      %vm690 = vcmask 1043456
      %v692 = vsel %vm690, %v686, 0
      %694 = vmatpush.bf16.msra.mxu0 0
      %695 = vmatpush.bf16.msra.mxu0 0
      %696 = vmatpush.bf16.msra.mxu0 0
      %697 = vmatpush.bf16.msra.mxu0 0
      %698 = vmatpush.bf16.msra.mxu0 0
      %699 = vmatpush.bf16.msra.mxu0 0
      %700 = vmatpush.bf16.msra.mxu0 0
      %701 = vmatpush.bf16.msra.mxu0 %v692
      %702 = vmatmul.bf16.gmra.mxu0 %v688
      %v703 = vpop.f32.mrf.mxu0
      %v704 = vadd.f32 0.0, %v703
      %v705 = vpop.f32.mrf.mxu0
      %706 = vdwg.mxu0
      %v707 = vpack.c.bf16 %v704, %v704
      %v708 = vld [vmem:[%s7] sm:$0xf]
      %v709 = vld [vmem:[%s7 + $0x4] sm:$0xf]
      %s710 = scalar_lea.vmem %s1, 16
      %v711 = vld [vmem:[%s710] sm:$0xf]
      %v712 = vld [vmem:[%s710 + $0x4] sm:$0xf]
      %v713 = vld [vmem:[%s710 + $0x8] sm:$0xf]
      %v714 = vld [vmem:[%s710 + $0xc] sm:$0xf]
      %s715 = scalar_lea.vmem %s2, 1
      %v716 = vld [vmem:[%s715] sm:$0x1]
      %v718 = vperm.slane %v716, 0
      %v724 = vunpack.c.l.b16 %v711
      %v725 = vunpack.c.l.b16 %v712
      %v726 = vunpack.c.l.b16 %v713
      %v727 = vunpack.c.l.b16 %v714
      %v728 = vpack.c.b16 %v725, %v724
      %v729 = vpack.c.b16 %v727, %v726
      %732 = vmatpush.bf16.msra.mxu0 0
      %733 = vmatpush.bf16.msra.mxu0 0
      %734 = vmatpush.bf16.msra.mxu0 0
      %735 = vmatpush.bf16.msra.mxu0 0
      %736 = vmatpush.bf16.msra.mxu0 0
      %737 = vmatpush.bf16.msra.mxu0 0
      %738 = vmatpush.bf16.msra.mxu0 %v729
      %739 = vmatpush.bf16.msra.mxu0 %v728
      %740 = vmatmul.bf16.gmra.mxu0 %v569
      %v741 = vpop.f32.mrf.mxu0
      %v742 = vadd.f32 %v718, %v741
      %v743 = vpop.f32.mrf.mxu0
      %744 = vdwg.mxu0
      %s745 = scalar_lea.vmem %s3, 16
      %v746 = vld [vmem:[%s745] sm:$0xf]
      %v747 = vld [vmem:[%s745 + $0x4] sm:$0xf]
      %v748 = vld [vmem:[%s745 + $0x8] sm:$0xf]
      %v749 = vld [vmem:[%s745 + $0xc] sm:$0xf]
      %s750 = scalar_lea.vmem %s4, 1
      %v751 = vld [vmem:[%s750] sm:$0x1]
      %v753 = vperm.slane %v751, 0
      %v759 = vunpack.c.l.b16 %v746
      %v760 = vunpack.c.l.b16 %v747
      %v761 = vunpack.c.l.b16 %v748
      %v762 = vunpack.c.l.b16 %v749
      %v763 = vpack.c.b16 %v760, %v759
      %v764 = vpack.c.b16 %v762, %v761
      %767 = vmatpush.bf16.msra.mxu0 0
      %768 = vmatpush.bf16.msra.mxu0 0
      %769 = vmatpush.bf16.msra.mxu0 0
      %770 = vmatpush.bf16.msra.mxu0 0
      %771 = vmatpush.bf16.msra.mxu0 0
      %772 = vmatpush.bf16.msra.mxu0 0
      %773 = vmatpush.bf16.msra.mxu0 %v764
      %774 = vmatpush.bf16.msra.mxu0 %v763
      %775 = vmatmul.bf16.gmra.mxu0 %v569
      %v776 = vpop.f32.mrf.mxu0
      %v777 = vadd.f32 %v753, %v776
      %v778 = vpop.f32.mrf.mxu0
      %779 = vdwg.mxu0
      %s780 = scalar_lea.vmem %s5, 16
      %v781 = vld [vmem:[%s780] sm:$0xf]
      %v782 = vld [vmem:[%s780 + $0x4] sm:$0xf]
      %v783 = vld [vmem:[%s780 + $0x8] sm:$0xf]
      %v784 = vld [vmem:[%s780 + $0xc] sm:$0xf]
      %s785 = scalar_lea.vmem %s6, 1
      %v786 = vld [vmem:[%s785] sm:$0x1]
      %v788 = vperm.slane %v786, 0
      %v794 = vunpack.c.l.b16 %v781
      %v795 = vunpack.c.l.b16 %v782
      %v796 = vunpack.c.l.b16 %v783
      %v797 = vunpack.c.l.b16 %v784
      %v798 = vpack.c.b16 %v795, %v794
      %v799 = vpack.c.b16 %v797, %v796
      %802 = vmatpush.bf16.msra.mxu0 0
      %803 = vmatpush.bf16.msra.mxu0 0
      %804 = vmatpush.bf16.msra.mxu0 0
      %805 = vmatpush.bf16.msra.mxu0 0
      %806 = vmatpush.bf16.msra.mxu0 0
      %807 = vmatpush.bf16.msra.mxu0 0
      %808 = vmatpush.bf16.msra.mxu0 %v799
      %809 = vmatpush.bf16.msra.mxu0 %v798
      %810 = vmatmul.bf16.gmra.mxu0 %v569
      %v811 = vpop.f32.mrf.mxu0
      %v812 = vadd.f32 %v788, %v811
      %v813 = vpop.f32.mrf.mxu0
      %814 = vdwg.mxu0
      %v815 = vpack.c.bf16 %v742, %v742
      %v816 = vpack.c.bf16 %v777, %v777
      %v818 = vsel %vm652, %v815, 0
      %v821 = vsel %vm652, %v816, 0
      %823 = vmatpush.bf16.xpose.msra.mxu0 0
      %824 = vmatpush.bf16.xpose.msra.mxu0 0
      %825 = vmatpush.bf16.xpose.msra.mxu0 0
      %826 = vmatpush.bf16.xpose.msra.mxu0 0
      %827 = vmatpush.bf16.xpose.msra.mxu0 0
      %828 = vmatpush.bf16.xpose.msra.mxu0 0
      %829 = vmatpush.bf16.xpose.msra.mxu0 0
      %830 = vmatpush.bf16.xpose.msra.mxu0 %v821
      %831 = vmatmul.bf16.gmra.mxu0 %v818
      %v832 = vpop.f32.mrf.mxu0
      %v833 = vadd.f32 0.0, %v832
      %v834 = vpop.f32.mrf.mxu0
      %835 = vdwg.mxu0
      %v836 = vmul.f32 %v833, 0.25
      %v837 = vsel %vm673, %v836, -inf
      %838 = vmax.xlane.f32.xlu0 %v837
      %v839 = vpop.xlane.xlu0 %838
      %v840 = vsub.f32 %v836, %v839
      %v841 = vmul.f32 %v840, 1.442695
      %v842 = vpow.pop %v841
      %v843 = vsel %vm673, %v842, 0.0
      %844 = vadd.xlane.f32.xlu0 %v843
      %v845 = vpop.xlane.xlu0 %844
      %v846 = vrcp.pop %v845
      %v847 = vmul.f32 %v842, %v846
      %v848 = vpack.c.bf16 %v847, %v847
      %v849 = vpack.c.bf16 %v812, %v812
      %v851 = vsel %vm673, %v848, 0
      %v854 = vsel %vm690, %v849, 0
      %856 = vmatpush.bf16.msra.mxu0 0
      %857 = vmatpush.bf16.msra.mxu0 0
      %858 = vmatpush.bf16.msra.mxu0 0
      %859 = vmatpush.bf16.msra.mxu0 0
      %860 = vmatpush.bf16.msra.mxu0 0
      %861 = vmatpush.bf16.msra.mxu0 0
      %862 = vmatpush.bf16.msra.mxu0 0
      %863 = vmatpush.bf16.msra.mxu0 %v854
      %864 = vmatmul.bf16.gmra.mxu0 %v851
      %v865 = vpop.f32.mrf.mxu0
      %v866 = vadd.f32 0.0, %v865
      %v867 = vpop.f32.mrf.mxu0
      %868 = vdwg.mxu0
      %v869 = vpack.c.bf16 %v866, %v866
      %s870 = scalar_lea.vmem %s7, 8
      %v871 = vld [vmem:[%s870] sm:$0xf]
      %v872 = vld [vmem:[%s870 + $0x4] sm:$0xf]
      %v875 = vunpack.c.l.b16 %v871
      %v876 = vunpack.c.l.b16 %v872
      %v877 = vpack.c.b16 %v876, %v875
      %v880 = vsel %vm652, %v869, 0
      %882 = vmatpush.bf16.msra.mxu0 0
      %883 = vmatpush.bf16.msra.mxu0 0
      %884 = vmatpush.bf16.msra.mxu0 0
      %885 = vmatpush.bf16.msra.mxu0 0
      %886 = vmatpush.bf16.msra.mxu0 0
      %887 = vmatpush.bf16.msra.mxu0 0
      %888 = vmatpush.bf16.msra.mxu0 0
      %889 = vmatpush.bf16.msra.mxu0 %v877
      %890 = vmatmul.bf16.gmra.mxu0 %v880
      %v891 = vpop.f32.mrf.mxu0
      %v892 = vadd.f32 0.0, %v891
      %v893 = vpop.f32.mrf.mxu0
      %894 = vdwg.mxu0
      %v897 = vunpack.c.l.b16 %v708
      %v898 = vunpack.c.l.b16 %v709
      %v899 = vpack.c.b16 %v898, %v897
      %v902 = vsel %vm652, %v707, 0
      %904 = vmatpush.bf16.msra.mxu0 0
      %905 = vmatpush.bf16.msra.mxu0 0
      %906 = vmatpush.bf16.msra.mxu0 0
      %907 = vmatpush.bf16.msra.mxu0 0
      %908 = vmatpush.bf16.msra.mxu0 0
      %909 = vmatpush.bf16.msra.mxu0 0
      %910 = vmatpush.bf16.msra.mxu0 0
      %911 = vmatpush.bf16.msra.mxu0 %v899
      %912 = vmatmul.bf16.gmra.mxu0 %v902
      %v913 = vpop.f32.mrf.mxu0
      %v914 = vadd.f32 %v892, %v913
      %v915 = vpop.f32.mrf.mxu0
      %916 = vdwg.mxu0
      %v917 = vld [vmem:[%s8] sm:$0x1]
      %v919 = vperm.slane %v917, 0
      %v921 = vadd.f32 %v914, %v919
      %v922 = vadd.f32 %v921, %v545
      %v923 = vld [vmem:[%s13] sm:$0x1]
      %v924 = vld [vmem:[%s14] sm:$0x1]
      %v925 = vsel %vm567, %v922, 0.0
      %926 = vadd.xlane.f32.xlu0 %v925
      %v927 = vpop.xlane.xlu0 %926
      %v928 = vrcp.pop 32.0
      %v929 = vmul.f32 32.0, %v928
      %v930 = vsub.f32 1.0, %v929
      %v931 = vmul.f32 %v928, %v930
      %v932 = vadd.f32 %v928, %v931
      %vm933 = vweird.f32 %v928
      %v934 = vsel %vm933, %v928, %v932
      %v935 = vmul.f32 %v927, %v934
      %v936 = vsub.f32 %v922, %v935
      %v937 = vmul.f32 %v936, %v936
      %v938 = vsel %vm567, %v937, 0.0
      %939 = vadd.xlane.f32.xlu0 %v938
      %v940 = vpop.xlane.xlu0 %939
      %v941 = vmul.f32 %v940, %v934
      %v942 = vadd.f32 %v941, 1e-05
      %v943 = vrsqrt.pop %v942
      %v944 = vmul.f32 %v943, %v942
      %v945 = vmul.f32 %v944, %v943
      %v946 = vmul.f32 0.5, %v945
      %v947 = vsub.f32 1.5, %v946
      %v948 = vmul.f32 %v943, %v947
      %vm949 = vweird.f32 %v942
      %vm950 = vweird.f32 %v943
      %vm951 = vmor %vm949, %vm950
      %v952 = vsel %vm951, %v943, %v948
      %v953 = vmul.f32 %v936, %v952
      %v955 = vperm.slane %v923, 0
      %v957 = vmul.f32 %v953, %v955
      %v959 = vperm.slane %v924, 0
      %v961 = vadd.f32 %v957, %v959
      %v962 = vpack.c.bf16 %v961, %v961
      %v963 = vld [vmem:[%s9] sm:$0xf]
      %v964 = vld [vmem:[%s9 + $0x4] sm:$0xf]
      %v965 = vld [vmem:[%s9 + $0x8] sm:$0xf]
      %v966 = vld [vmem:[%s9 + $0xc] sm:$0xf]
      %v967 = vld [vmem:[%s10] sm:$0x1]
      %v969 = vperm.slane %v967, 0
      %v975 = vunpack.c.l.b16 %v963
      %v976 = vunpack.c.l.b16 %v964
      %v977 = vunpack.c.l.b16 %v965
      %v978 = vunpack.c.l.b16 %v966
      %v979 = vpack.c.b16 %v976, %v975
      %v980 = vpack.c.b16 %v978, %v977
      %v984 = vsel %vm567, %v962, 0
      %986 = vmatpush.bf16.msra.mxu0 0
      %987 = vmatpush.bf16.msra.mxu0 0
      %988 = vmatpush.bf16.msra.mxu0 0
      %989 = vmatpush.bf16.msra.mxu0 0
      %990 = vmatpush.bf16.msra.mxu0 0
      %991 = vmatpush.bf16.msra.mxu0 0
      %992 = vmatpush.bf16.msra.mxu0 %v980
      %993 = vmatpush.bf16.msra.mxu0 %v979
      %994 = vmatmul.bf16.gmra.mxu0 %v984
      %v995 = vpop.f32.mrf.mxu0
      %v996 = vadd.f32 %v969, %v995
      %v997 = vpop.f32.mrf.mxu0
      %998 = vdwg.mxu0
      %v999 = vmul.f32 %v996, 0.5
      %v1000 = vmul.f32 %v996, %v996
      %v1001 = vmul.f32 %v1000, %v996
      %v1002 = vmul.f32 %v1001, 0.044715
      %v1003 = vadd.f32 %v996, %v1002
      %v1004 = vmul.f32 %v1003, 0.7978846
      %v1005 = vtanh.pop %v1004
      %v1006 = vadd.f32 %v1005, 1.0
      %v1007 = vmul.f32 %v999, %v1006
      %v1008 = vpack.c.bf16 %v1007, %v1007
      %v1009 = vld [vmem:[%s11] sm:$0xf]
      %v1010 = vld [vmem:[%s11 + $0x4] sm:$0xf]
      %v1011 = vld [vmem:[%s11 + $0x8] sm:$0xf]
      %v1012 = vld [vmem:[%s11 + $0xc] sm:$0xf]
      %v1013 = vld [vmem:[%s11 + $0x10] sm:$0xf]
      %v1014 = vld [vmem:[%s11 + $0x14] sm:$0xf]
      %v1015 = vld [vmem:[%s11 + $0x18] sm:$0xf]
      %v1016 = vld [vmem:[%s11 + $0x1c] sm:$0xf]
      %v1017 = vld [vmem:[%s12] sm:$0x1]
      %v1019 = vperm.slane %v1017, 0
      %v1029 = vunpack.c.l.b16 %v1009
      %v1030 = vunpack.c.l.b16 %v1010
      %v1031 = vunpack.c.l.b16 %v1011
      %v1032 = vunpack.c.l.b16 %v1012
      %v1033 = vunpack.c.l.b16 %v1013
      %v1034 = vunpack.c.l.b16 %v1014
      %v1035 = vunpack.c.l.b16 %v1015
      %v1036 = vunpack.c.l.b16 %v1016
      %v1037 = vpack.c.b16 %v1030, %v1029
      %v1038 = vpack.c.b16 %v1032, %v1031
      %v1039 = vpack.c.b16 %v1034, %v1033
      %v1040 = vpack.c.b16 %v1036, %v1035
      %vm1045 = vcmask 523264
      %v1047 = vsel %vm1045, %v1008, 0
      %1049 = vmatpush.bf16.msra.mxu0 0
      %1050 = vmatpush.bf16.msra.mxu0 0
      %1051 = vmatpush.bf16.msra.mxu0 0
      %1052 = vmatpush.bf16.msra.mxu0 0
      %1053 = vmatpush.bf16.msra.mxu0 %v1040
      %1054 = vmatpush.bf16.msra.mxu0 %v1039
      %1055 = vmatpush.bf16.msra.mxu0 %v1038
      %1056 = vmatpush.bf16.msra.mxu0 %v1037
      %1057 = vmatmul.bf16.gmra.mxu0 %v1047
      %v1058 = vpop.f32.mrf.mxu0
      %v1059 = vadd.f32 %v1019, %v1058
      %v1060 = vpop.f32.mrf.mxu0
      %1061 = vdwg.mxu0
      %v1062 = vmul.f32 %v1059, 0.5
      %v1063 = vmul.f32 %v1059, %v1059
      %v1064 = vmul.f32 %v1063, %v1059
      %v1065 = vmul.f32 %v1064, 0.044715
      %v1066 = vadd.f32 %v1059, %v1065
      %v1067 = vmul.f32 %v1066, 0.7978846
      %v1068 = vtanh.pop %v1067
      %v1069 = vadd.f32 %v1068, 1.0
      %v1070 = vmul.f32 %v1062, %v1069
      %v1071 = vadd.f32 %v1070, %v545
      %v1072 = vld [vmem:[%s15] sm:$0x1]
      %v1073 = vld [vmem:[%s16] sm:$0x1]
      %v1074 = vsel %vm567, %v1071, 0.0
      %1075 = vadd.xlane.f32.xlu0 %v1074
      %v1076 = vpop.xlane.xlu0 %1075
      %v1077 = vmul.f32 %v1076, %v934
      %v1078 = vsub.f32 %v1071, %v1077
      %v1079 = vmul.f32 %v1078, %v1078
      %v1080 = vsel %vm567, %v1079, 0.0
      %1081 = vadd.xlane.f32.xlu0 %v1080
      %v1082 = vpop.xlane.xlu0 %1081
      %v1083 = vmul.f32 %v1082, %v934
      %v1084 = vadd.f32 %v1083, 1e-05
      %v1085 = vrsqrt.pop %v1084
      %v1086 = vmul.f32 %v1085, %v1084
      %v1087 = vmul.f32 %v1086, %v1085
      %v1088 = vmul.f32 0.5, %v1087
      %v1089 = vsub.f32 1.5, %v1088
      %v1090 = vmul.f32 %v1085, %v1089
      %vm1091 = vweird.f32 %v1084
      %vm1092 = vweird.f32 %v1085
      %vm1093 = vmor %vm1091, %vm1092
      %v1094 = vsel %vm1093, %v1085, %v1090
      %v1095 = vmul.f32 %v1078, %v1094
      %v1097 = vperm.slane %v1072, 0
      %v1099 = vmul.f32 %v1095, %v1097
      %v1101 = vperm.slane %v1073, 0
      %v1103 = vadd.f32 %v1099, %v1101
      %1104 = vst.msk [vmem:[%s543] sm:$0xff] %vm567, %v1103
      %p1105 = scmp.lt.s32.totalorder %s28, 1
      %s1106 = scalar_select %p1105, %s28, 1
      %s1107 = smul.addr %s1106, 8
      %s1108 = scalar_lea.vmem %s17, %s1107
      // Predicated region
      $region89: #{stb_forward.5} parent=87 // pred_check
        %p1109 = pneg %p408
      $region90: #{stb_forward.5} parent=87 // pred_check_branch
        %1111 = sbr.rel (%p1109) target = $region92
      $region91: #{stb_forward.5} parent=87 // pred_region
        _
      $region92: #{stb_forward.5} parent=87 // pred_fallthru
        _
    $region88: #{stb_forward.5} parent=5 // pred_fallthru
      _
    %p1112 = scmp.le.s32.totalorder 2, %s23
    // Predicated region
    $region93: #{stb_forward.5} parent=5 // pred_check
      %p1113 = pneg %p1112
    $region94: #{stb_forward.5} parent=5 // pred_check_branch
      %1115 = sbr.rel (%p1113) target = $region96
    $region95: #{stb_forward.5} parent=5 // pred_region
      %s1116 = ssub.s32 %s23, 2
      // Predicated region
      $region97: #{stb_forward.5} parent=95 // pred_check
        %p1117 = pneg %p414
      $region98: #{stb_forward.5} parent=95 // pred_check_branch
        %1119 = sbr.rel (%p1117) target = $region100
      $region99: #{stb_forward.5} parent=95 // pred_region
        %p1120 = scmp.lt.s32.totalorder %s29, 1
        %s1121 = scalar_select %p1120, %s29, 1
        %s1122 = smul.addr %s1121, 8
        %s1123 = scalar_lea.vmem %s17, %s1122
      $region100: #{stb_forward.5} parent=95 // pred_fallthru
        _
    $region96: #{stb_forward.5} parent=5 // pred_fallthru
      _
  $region6: #{stb_forward.5} parent=0 // loop_footer
    %s27 = sadd.s32 1, %s23
  $region7: #{stb_forward.5} parent=0 // loop_footer_branch
    %22 = sbr.rel target = $region3
  $region8: #{stb_forward.5} parent=0 // loop_exit
    _

// kernel: stb_forward.6
$region0: #{stb_forward.6}
  #allocation0 [shape = 'u32[]', space=smem, size = 0x4, offset = 0x4, fixed_abs, tag = 'smem constant byte address 0x4 - core index']
  #allocation1 [shape = 'u32[72,128]{1,0:T(1,128)}', space=vmem, size = 0x9000, scoped, tag = 'internal scratch']
  %s0 = inlined_call_operand.vmem [shape: f32[2,16,32], index: 0, kind: input, shape index: {}]
  %s1 = inlined_call_operand.vmem [shape: bf16[2,32,16], index: 1, kind: input, shape index: {}]
  %s2 = inlined_call_operand.vmem [shape: f32[2,1,16], index: 2, kind: input, shape index: {}]
  %s3 = inlined_call_operand.vmem [shape: bf16[2,32,16], index: 3, kind: input, shape index: {}]
  %s4 = inlined_call_operand.vmem [shape: f32[2,1,16], index: 4, kind: input, shape index: {}]
  %s5 = inlined_call_operand.vmem [shape: bf16[2,32,16], index: 5, kind: input, shape index: {}]
  %s6 = inlined_call_operand.vmem [shape: f32[2,1,16], index: 6, kind: input, shape index: {}]
  %s7 = inlined_call_operand.vmem [shape: bf16[2,16,32], index: 7, kind: input, shape index: {}]
  %s8 = inlined_call_operand.vmem [shape: f32[1,32], index: 8, kind: input, shape index: {}]
  %s9 = inlined_call_operand.vmem [shape: bf16[32,64], index: 9, kind: input, shape index: {}]
  %s10 = inlined_call_operand.vmem [shape: f32[1,64], index: 10, kind: input, shape index: {}]
  %s11 = inlined_call_operand.vmem [shape: bf16[64,32], index: 11, kind: input, shape index: {}]
  %s12 = inlined_call_operand.vmem [shape: f32[1,32], index: 12, kind: input, shape index: {}]
  %s13 = inlined_call_operand.vmem [shape: f32[1,32], index: 13, kind: input, shape index: {}]
  %s14 = inlined_call_operand.vmem [shape: f32[1,32], index: 14, kind: input, shape index: {}]
  %s15 = inlined_call_operand.vmem [shape: f32[1,32], index: 15, kind: input, shape index: {}]
  %s16 = inlined_call_operand.vmem [shape: f32[1,32], index: 16, kind: input, shape index: {}]
  %s17 = inlined_call_operand.vmem [shape: f32[2,16,32], index: 17, kind: output, shape index: {}]
  %s18 = sld [smem:[#allocation0]]
  $region101: #{stb_forward.6} parent=0
    _
  %s20 = ssub.s32 1, %s18
  %s21 = scalar_select 0, %s20, %s18
  loop: start=0, step=1, limit=4
  $region2: #{stb_forward.6} parent=0 // loop_pre_header
    _
  $region3: #{stb_forward.6} parent=0 // loop_header
    %s23 = sphi 0, %s27
    %p24 = scmp.ge.s32.totalorder %s23, 4
    %s33 = sphi 0, %s35
    %s36 = sphi 0, %s33
    %s37 = sphi 0, %s36
    %s53 = sphi 0, %s37
    %s57 = sphi 0, %s57
    %s59 = sphi 0, %s57
    %s60 = sphi 0, %s59
    %s74 = sphi 0, %s60
    %s78 = sphi 0, %s78
    %s80 = sphi 0, %s78
    %s81 = sphi 0, %s80
    %s95 = sphi 0, %s81
    %s99 = sphi 0, %s99
    %s101 = sphi 0, %s99
    %s102 = sphi 0, %s101
    %s116 = sphi 0, %s102
    %s120 = sphi 0, %s120
    %s122 = sphi 0, %s120
    %s123 = sphi 0, %s122
    %s137 = sphi 0, %s123
    %s141 = sphi 0, %s141
    %s143 = sphi 0, %s141
    %s144 = sphi 0, %s143
    %s158 = sphi 0, %s144
    %s162 = sphi 0, %s162
    %s164 = sphi 0, %s162
    %s165 = sphi 0, %s164
    %s179 = sphi 0, %s165
    %s183 = sphi 0, %s183
    %s185 = sphi 0, %s183
    %s186 = sphi 0, %s185
    %s200 = sphi 0, %s186
    %s204 = sphi 0, %s204
    %s206 = sphi 0, %s204
    %s207 = sphi 0, %s206
    %s221 = sphi 0, %s207
    %s225 = sphi 0, %s225
    %s227 = sphi 0, %s225
    %s228 = sphi 0, %s227
    %s242 = sphi 0, %s228
    %s246 = sphi 0, %s246
    %s248 = sphi 0, %s246
    %s249 = sphi 0, %s248
    %s263 = sphi 0, %s249
    %s267 = sphi 0, %s267
    %s269 = sphi 0, %s267
    %s270 = sphi 0, %s269
    %s284 = sphi 0, %s270
    %s288 = sphi 0, %s288
    %s290 = sphi 0, %s288
    %s291 = sphi 0, %s290
    %s305 = sphi 0, %s291
    %s309 = sphi 0, %s309
    %s311 = sphi 0, %s309
    %s312 = sphi 0, %s311
    %s326 = sphi 0, %s312
    %s330 = sphi 0, %s330
    %s332 = sphi 0, %s330
    %s333 = sphi 0, %s332
    %s347 = sphi 0, %s333
    %s351 = sphi 0, %s351
    %s353 = sphi 0, %s351
    %s354 = sphi 0, %s353
    %s368 = sphi 0, %s354
    %s372 = sphi 0, %s372
    %s374 = sphi 0, %s372
    %s375 = sphi 0, %s374
    %s389 = sphi 0, %s375
    %s395 = sphi 0, %s397
    %s398 = sphi 0, %s395
    %s399 = sphi 0, %s398
    %s415 = sphi 0, %s399
  $region4: #{stb_forward.6} parent=0 // loop_header_branch
    %26 = sbr.rel (%p24) target = $region8
  $region5: #{stb_forward.6} parent=0 // loop_body
    %s28 = ssub.s32 %s23, 1
    %s29 = ssub.s32 %s23, 2
    %s30 = sadd.s32 %s23, 1
    %s31 = ssub.s32 %s23, %s30
    %p32 = scmp.eq.s32.totalorder %s31, 0
    %s34 = sadd.s32 %s33, 1
    %s35 = scalar_select %p32, %s33, %s34
    %p38 = pneg %p32
    %p39 = scmp.eq.s32.totalorder %s23, 1
    %p40 = por %p38, %p39
    %p41 = scmp.ne.s32.totalorder %s33, %s36
    %p42 = scmp.eq.s32.totalorder %s23, 0
    %p43 = por %p41, %p42
    %p44 = scmp.ne.s32.totalorder %s33, %s36
    %p45 = scmp.eq.s32.totalorder %s28, 1
    %p46 = por %p44, %p45
    %p47 = scmp.ne.s32.totalorder %s36, %s37
    %p48 = scmp.eq.s32.totalorder %s28, 0
    %p49 = por %p47, %p48
    %p50 = scmp.ne.s32.totalorder %s36, %s37
    %p51 = scmp.eq.s32.totalorder %s29, 1
    %p52 = por %p50, %p51
    %p54 = scmp.ne.s32.totalorder %s37, %s53
    %p55 = scmp.eq.s32.totalorder %s29, 0
    %p56 = por %p54, %p55
    %s58 = sadd.s32 %s57, 1
    %p61 = scmp.eq.s32.totalorder %s23, 1
    %p62 = scmp.ne.s32.totalorder %s57, %s59
    %p63 = scmp.eq.s32.totalorder %s23, 0
    %p64 = por %p62, %p63
    %p65 = scmp.ne.s32.totalorder %s57, %s59
    %p66 = scmp.eq.s32.totalorder %s28, 1
    %p67 = por %p65, %p66
    %p68 = scmp.ne.s32.totalorder %s59, %s60
    %p69 = scmp.eq.s32.totalorder %s28, 0
    %p70 = por %p68, %p69
    %p71 = scmp.ne.s32.totalorder %s59, %s60
    %p72 = scmp.eq.s32.totalorder %s29, 1
    %p73 = por %p71, %p72
    %p75 = scmp.ne.s32.totalorder %s60, %s74
    %p76 = scmp.eq.s32.totalorder %s29, 0
    %p77 = por %p75, %p76
    %s79 = sadd.s32 %s78, 1
    %p82 = scmp.eq.s32.totalorder %s23, 1
    %p83 = scmp.ne.s32.totalorder %s78, %s80
    %p84 = scmp.eq.s32.totalorder %s23, 0
    %p85 = por %p83, %p84
    %p86 = scmp.ne.s32.totalorder %s78, %s80
    %p87 = scmp.eq.s32.totalorder %s28, 1
    %p88 = por %p86, %p87
    %p89 = scmp.ne.s32.totalorder %s80, %s81
    %p90 = scmp.eq.s32.totalorder %s28, 0
    %p91 = por %p89, %p90
    %p92 = scmp.ne.s32.totalorder %s80, %s81
    %p93 = scmp.eq.s32.totalorder %s29, 1
    %p94 = por %p92, %p93
    %p96 = scmp.ne.s32.totalorder %s81, %s95
    %p97 = scmp.eq.s32.totalorder %s29, 0
    %p98 = por %p96, %p97
    %s100 = sadd.s32 %s99, 1
    %p103 = scmp.eq.s32.totalorder %s23, 1
    %p104 = scmp.ne.s32.totalorder %s99, %s101
    %p105 = scmp.eq.s32.totalorder %s23, 0
    %p106 = por %p104, %p105
    %p107 = scmp.ne.s32.totalorder %s99, %s101
    %p108 = scmp.eq.s32.totalorder %s28, 1
    %p109 = por %p107, %p108
    %p110 = scmp.ne.s32.totalorder %s101, %s102
    %p111 = scmp.eq.s32.totalorder %s28, 0
    %p112 = por %p110, %p111
    %p113 = scmp.ne.s32.totalorder %s101, %s102
    %p114 = scmp.eq.s32.totalorder %s29, 1
    %p115 = por %p113, %p114
    %p117 = scmp.ne.s32.totalorder %s102, %s116
    %p118 = scmp.eq.s32.totalorder %s29, 0
    %p119 = por %p117, %p118
    %s121 = sadd.s32 %s120, 1
    %p124 = scmp.eq.s32.totalorder %s23, 1
    %p125 = scmp.ne.s32.totalorder %s120, %s122
    %p126 = scmp.eq.s32.totalorder %s23, 0
    %p127 = por %p125, %p126
    %p128 = scmp.ne.s32.totalorder %s120, %s122
    %p129 = scmp.eq.s32.totalorder %s28, 1
    %p130 = por %p128, %p129
    %p131 = scmp.ne.s32.totalorder %s122, %s123
    %p132 = scmp.eq.s32.totalorder %s28, 0
    %p133 = por %p131, %p132
    %p134 = scmp.ne.s32.totalorder %s122, %s123
    %p135 = scmp.eq.s32.totalorder %s29, 1
    %p136 = por %p134, %p135
    %p138 = scmp.ne.s32.totalorder %s123, %s137
    %p139 = scmp.eq.s32.totalorder %s29, 0
    %p140 = por %p138, %p139
    %s142 = sadd.s32 %s141, 1
    %p145 = scmp.eq.s32.totalorder %s23, 1
    %p146 = scmp.ne.s32.totalorder %s141, %s143
    %p147 = scmp.eq.s32.totalorder %s23, 0
    %p148 = por %p146, %p147
    %p149 = scmp.ne.s32.totalorder %s141, %s143
    %p150 = scmp.eq.s32.totalorder %s28, 1
    %p151 = por %p149, %p150
    %p152 = scmp.ne.s32.totalorder %s143, %s144
    %p153 = scmp.eq.s32.totalorder %s28, 0
    %p154 = por %p152, %p153
    %p155 = scmp.ne.s32.totalorder %s143, %s144
    %p156 = scmp.eq.s32.totalorder %s29, 1
    %p157 = por %p155, %p156
    %p159 = scmp.ne.s32.totalorder %s144, %s158
    %p160 = scmp.eq.s32.totalorder %s29, 0
    %p161 = por %p159, %p160
    %s163 = sadd.s32 %s162, 1
    %p166 = scmp.eq.s32.totalorder %s23, 1
    %p167 = scmp.ne.s32.totalorder %s162, %s164
    %p168 = scmp.eq.s32.totalorder %s23, 0
    %p169 = por %p167, %p168
    %p170 = scmp.ne.s32.totalorder %s162, %s164
    %p171 = scmp.eq.s32.totalorder %s28, 1
    %p172 = por %p170, %p171
    %p173 = scmp.ne.s32.totalorder %s164, %s165
    %p174 = scmp.eq.s32.totalorder %s28, 0
    %p175 = por %p173, %p174
    %p176 = scmp.ne.s32.totalorder %s164, %s165
    %p177 = scmp.eq.s32.totalorder %s29, 1
    %p178 = por %p176, %p177
    %p180 = scmp.ne.s32.totalorder %s165, %s179
    %p181 = scmp.eq.s32.totalorder %s29, 0
    %p182 = por %p180, %p181
    %s184 = sadd.s32 %s183, 1
    %p187 = scmp.eq.s32.totalorder %s23, 1
    %p188 = scmp.ne.s32.totalorder %s183, %s185
    %p189 = scmp.eq.s32.totalorder %s23, 0
    %p190 = por %p188, %p189
    %p191 = scmp.ne.s32.totalorder %s183, %s185
    %p192 = scmp.eq.s32.totalorder %s28, 1
    %p193 = por %p191, %p192
    %p194 = scmp.ne.s32.totalorder %s185, %s186
    %p195 = scmp.eq.s32.totalorder %s28, 0
    %p196 = por %p194, %p195
    %p197 = scmp.ne.s32.totalorder %s185, %s186
    %p198 = scmp.eq.s32.totalorder %s29, 1
    %p199 = por %p197, %p198
    %p201 = scmp.ne.s32.totalorder %s186, %s200
    %p202 = scmp.eq.s32.totalorder %s29, 0
    %p203 = por %p201, %p202
    %s205 = sadd.s32 %s204, 1
    %p208 = scmp.eq.s32.totalorder %s23, 1
    %p209 = scmp.ne.s32.totalorder %s204, %s206
    %p210 = scmp.eq.s32.totalorder %s23, 0
    %p211 = por %p209, %p210
    %p212 = scmp.ne.s32.totalorder %s204, %s206
    %p213 = scmp.eq.s32.totalorder %s28, 1
    %p214 = por %p212, %p213
    %p215 = scmp.ne.s32.totalorder %s206, %s207
    %p216 = scmp.eq.s32.totalorder %s28, 0
    %p217 = por %p215, %p216
    %p218 = scmp.ne.s32.totalorder %s206, %s207
    %p219 = scmp.eq.s32.totalorder %s29, 1
    %p220 = por %p218, %p219
    %p222 = scmp.ne.s32.totalorder %s207, %s221
    %p223 = scmp.eq.s32.totalorder %s29, 0
    %p224 = por %p222, %p223
    %s226 = sadd.s32 %s225, 1
    %p229 = scmp.eq.s32.totalorder %s23, 1
    %p230 = scmp.ne.s32.totalorder %s225, %s227
    %p231 = scmp.eq.s32.totalorder %s23, 0
    %p232 = por %p230, %p231
    %p233 = scmp.ne.s32.totalorder %s225, %s227
    %p234 = scmp.eq.s32.totalorder %s28, 1
    %p235 = por %p233, %p234
    %p236 = scmp.ne.s32.totalorder %s227, %s228
    %p237 = scmp.eq.s32.totalorder %s28, 0
    %p238 = por %p236, %p237
    %p239 = scmp.ne.s32.totalorder %s227, %s228
    %p240 = scmp.eq.s32.totalorder %s29, 1
    %p241 = por %p239, %p240
    %p243 = scmp.ne.s32.totalorder %s228, %s242
    %p244 = scmp.eq.s32.totalorder %s29, 0
    %p245 = por %p243, %p244
    %s247 = sadd.s32 %s246, 1
    %p250 = scmp.eq.s32.totalorder %s23, 1
    %p251 = scmp.ne.s32.totalorder %s246, %s248
    %p252 = scmp.eq.s32.totalorder %s23, 0
    %p253 = por %p251, %p252
    %p254 = scmp.ne.s32.totalorder %s246, %s248
    %p255 = scmp.eq.s32.totalorder %s28, 1
    %p256 = por %p254, %p255
    %p257 = scmp.ne.s32.totalorder %s248, %s249
    %p258 = scmp.eq.s32.totalorder %s28, 0
    %p259 = por %p257, %p258
    %p260 = scmp.ne.s32.totalorder %s248, %s249
    %p261 = scmp.eq.s32.totalorder %s29, 1
    %p262 = por %p260, %p261
    %p264 = scmp.ne.s32.totalorder %s249, %s263
    %p265 = scmp.eq.s32.totalorder %s29, 0
    %p266 = por %p264, %p265
    %s268 = sadd.s32 %s267, 1
    %p271 = scmp.eq.s32.totalorder %s23, 1
    %p272 = scmp.ne.s32.totalorder %s267, %s269
    %p273 = scmp.eq.s32.totalorder %s23, 0
    %p274 = por %p272, %p273
    %p275 = scmp.ne.s32.totalorder %s267, %s269
    %p276 = scmp.eq.s32.totalorder %s28, 1
    %p277 = por %p275, %p276
    %p278 = scmp.ne.s32.totalorder %s269, %s270
    %p279 = scmp.eq.s32.totalorder %s28, 0
    %p280 = por %p278, %p279
    %p281 = scmp.ne.s32.totalorder %s269, %s270
    %p282 = scmp.eq.s32.totalorder %s29, 1
    %p283 = por %p281, %p282
    %p285 = scmp.ne.s32.totalorder %s270, %s284
    %p286 = scmp.eq.s32.totalorder %s29, 0
    %p287 = por %p285, %p286
    %s289 = sadd.s32 %s288, 1
    %p292 = scmp.eq.s32.totalorder %s23, 1
    %p293 = scmp.ne.s32.totalorder %s288, %s290
    %p294 = scmp.eq.s32.totalorder %s23, 0
    %p295 = por %p293, %p294
    %p296 = scmp.ne.s32.totalorder %s288, %s290
    %p297 = scmp.eq.s32.totalorder %s28, 1
    %p298 = por %p296, %p297
    %p299 = scmp.ne.s32.totalorder %s290, %s291
    %p300 = scmp.eq.s32.totalorder %s28, 0
    %p301 = por %p299, %p300
    %p302 = scmp.ne.s32.totalorder %s290, %s291
    %p303 = scmp.eq.s32.totalorder %s29, 1
    %p304 = por %p302, %p303
    %p306 = scmp.ne.s32.totalorder %s291, %s305
    %p307 = scmp.eq.s32.totalorder %s29, 0
    %p308 = por %p306, %p307
    %s310 = sadd.s32 %s309, 1
    %p313 = scmp.eq.s32.totalorder %s23, 1
    %p314 = scmp.ne.s32.totalorder %s309, %s311
    %p315 = scmp.eq.s32.totalorder %s23, 0
    %p316 = por %p314, %p315
    %p317 = scmp.ne.s32.totalorder %s309, %s311
    %p318 = scmp.eq.s32.totalorder %s28, 1
    %p319 = por %p317, %p318
    %p320 = scmp.ne.s32.totalorder %s311, %s312
    %p321 = scmp.eq.s32.totalorder %s28, 0
    %p322 = por %p320, %p321
    %p323 = scmp.ne.s32.totalorder %s311, %s312
    %p324 = scmp.eq.s32.totalorder %s29, 1
    %p325 = por %p323, %p324
    %p327 = scmp.ne.s32.totalorder %s312, %s326
    %p328 = scmp.eq.s32.totalorder %s29, 0
    %p329 = por %p327, %p328
    %s331 = sadd.s32 %s330, 1
    %p334 = scmp.eq.s32.totalorder %s23, 1
    %p335 = scmp.ne.s32.totalorder %s330, %s332
    %p336 = scmp.eq.s32.totalorder %s23, 0
    %p337 = por %p335, %p336
    %p338 = scmp.ne.s32.totalorder %s330, %s332
    %p339 = scmp.eq.s32.totalorder %s28, 1
    %p340 = por %p338, %p339
    %p341 = scmp.ne.s32.totalorder %s332, %s333
    %p342 = scmp.eq.s32.totalorder %s28, 0
    %p343 = por %p341, %p342
    %p344 = scmp.ne.s32.totalorder %s332, %s333
    %p345 = scmp.eq.s32.totalorder %s29, 1
    %p346 = por %p344, %p345
    %p348 = scmp.ne.s32.totalorder %s333, %s347
    %p349 = scmp.eq.s32.totalorder %s29, 0
    %p350 = por %p348, %p349
    %s352 = sadd.s32 %s351, 1
    %p355 = scmp.eq.s32.totalorder %s23, 1
    %p356 = scmp.ne.s32.totalorder %s351, %s353
    %p357 = scmp.eq.s32.totalorder %s23, 0
    %p358 = por %p356, %p357
    %p359 = scmp.ne.s32.totalorder %s351, %s353
    %p360 = scmp.eq.s32.totalorder %s28, 1
    %p361 = por %p359, %p360
    %p362 = scmp.ne.s32.totalorder %s353, %s354
    %p363 = scmp.eq.s32.totalorder %s28, 0
    %p364 = por %p362, %p363
    %p365 = scmp.ne.s32.totalorder %s353, %s354
    %p366 = scmp.eq.s32.totalorder %s29, 1
    %p367 = por %p365, %p366
    %p369 = scmp.ne.s32.totalorder %s354, %s368
    %p370 = scmp.eq.s32.totalorder %s29, 0
    %p371 = por %p369, %p370
    %s373 = sadd.s32 %s372, 1
    %p376 = scmp.eq.s32.totalorder %s23, 1
    %p377 = scmp.ne.s32.totalorder %s372, %s374
    %p378 = scmp.eq.s32.totalorder %s23, 0
    %p379 = por %p377, %p378
    %p380 = scmp.ne.s32.totalorder %s372, %s374
    %p381 = scmp.eq.s32.totalorder %s28, 1
    %p382 = por %p380, %p381
    %p383 = scmp.ne.s32.totalorder %s374, %s375
    %p384 = scmp.eq.s32.totalorder %s28, 0
    %p385 = por %p383, %p384
    %p386 = scmp.ne.s32.totalorder %s374, %s375
    %p387 = scmp.eq.s32.totalorder %s29, 1
    %p388 = por %p386, %p387
    %p390 = scmp.ne.s32.totalorder %s375, %s389
    %p391 = scmp.eq.s32.totalorder %s29, 0
    %p392 = por %p390, %p391
    %s393 = ssub.s32 %s23, %s30
    %p394 = scmp.eq.s32.totalorder %s393, 0
    %s396 = sadd.s32 %s395, 1
    %s397 = scalar_select %p394, %s395, %s396
    %p400 = pneg %p394
    %p401 = scmp.eq.s32.totalorder %s23, 1
    %p402 = por %p400, %p401
    %p403 = scmp.ne.s32.totalorder %s395, %s398
    %p404 = scmp.eq.s32.totalorder %s23, 0
    %p405 = por %p403, %p404
    %p406 = scmp.ne.s32.totalorder %s395, %s398
    %p407 = scmp.eq.s32.totalorder %s28, 1
    %p408 = por %p406, %p407
    %p409 = scmp.ne.s32.totalorder %s398, %s399
    %p410 = scmp.eq.s32.totalorder %s28, 0
    %p411 = por %p409, %p410
    %p412 = scmp.ne.s32.totalorder %s398, %s399
    %p413 = scmp.eq.s32.totalorder %s29, 1
    %p414 = por %p412, %p413
    %p416 = scmp.ne.s32.totalorder %s399, %s415
    %p417 = scmp.eq.s32.totalorder %s29, 0
    %p418 = por %p416, %p417
    %p419 = scmp.le.s32.totalorder 1, %s23
    %p420 = scmp.lt.s32.totalorder %s23, 3
    %p421 = pnand %p419, %p420
    %p422 = pneg %p421
    // Predicated region
    $region9: #{stb_forward.6} parent=5 // pred_check
      _
    $region10: #{stb_forward.6} parent=5 // pred_check_branch
      %424 = sbr.rel (%p421) target = $region12
    $region11: #{stb_forward.6} parent=5 // pred_region
      %s425 = ssub.s32 %s23, 1
      // Predicated region
      $region13: #{stb_forward.6} parent=11 // pred_check
        %p426 = pneg %p70
      $region14: #{stb_forward.6} parent=11 // pred_check_branch
        %428 = sbr.rel (%p426) target = $region16
      $region15: #{stb_forward.6} parent=11 // pred_region
        _
      $region16: #{stb_forward.6} parent=11 // pred_fallthru
        _
      // Predicated region
      $region17: #{stb_forward.6} parent=11 // pred_check
        %p429 = pneg %p91
      $region18: #{stb_forward.6} parent=11 // pred_check_branch
        %431 = sbr.rel (%p429) target = $region20
      $region19: #{stb_forward.6} parent=11 // pred_region
        _
      $region20: #{stb_forward.6} parent=11 // pred_fallthru
        _
      // Predicated region
      $region21: #{stb_forward.6} parent=11 // pred_check
        %p432 = pneg %p112
      $region22: #{stb_forward.6} parent=11 // pred_check_branch
        %434 = sbr.rel (%p432) target = $region24
      $region23: #{stb_forward.6} parent=11 // pred_region
        _
      $region24: #{stb_forward.6} parent=11 // pred_fallthru
        _
      // Predicated region
      $region25: #{stb_forward.6} parent=11 // pred_check
        %p435 = pneg %p133
      $region26: #{stb_forward.6} parent=11 // pred_check_branch
        %437 = sbr.rel (%p435) target = $region28
      $region27: #{stb_forward.6} parent=11 // pred_region
        _
      $region28: #{stb_forward.6} parent=11 // pred_fallthru
        _
      // Predicated region
      $region29: #{stb_forward.6} parent=11 // pred_check
        %p438 = pneg %p154
      $region30: #{stb_forward.6} parent=11 // pred_check_branch
        %440 = sbr.rel (%p438) target = $region32
      $region31: #{stb_forward.6} parent=11 // pred_region
        _
      $region32: #{stb_forward.6} parent=11 // pred_fallthru
        _
      // Predicated region
      $region33: #{stb_forward.6} parent=11 // pred_check
        %p441 = pneg %p175
      $region34: #{stb_forward.6} parent=11 // pred_check_branch
        %443 = sbr.rel (%p441) target = $region36
      $region35: #{stb_forward.6} parent=11 // pred_region
        _
      $region36: #{stb_forward.6} parent=11 // pred_fallthru
        _
      // Predicated region
      $region37: #{stb_forward.6} parent=11 // pred_check
        %p444 = pneg %p196
      $region38: #{stb_forward.6} parent=11 // pred_check_branch
        %446 = sbr.rel (%p444) target = $region40
      $region39: #{stb_forward.6} parent=11 // pred_region
        _
      $region40: #{stb_forward.6} parent=11 // pred_fallthru
        _
      // Predicated region
      $region41: #{stb_forward.6} parent=11 // pred_check
        %p447 = pneg %p217
      $region42: #{stb_forward.6} parent=11 // pred_check_branch
        %449 = sbr.rel (%p447) target = $region44
      $region43: #{stb_forward.6} parent=11 // pred_region
        _
      $region44: #{stb_forward.6} parent=11 // pred_fallthru
        _
      // Predicated region
      $region45: #{stb_forward.6} parent=11 // pred_check
        %p450 = pneg %p238
      $region46: #{stb_forward.6} parent=11 // pred_check_branch
        %452 = sbr.rel (%p450) target = $region48
      $region47: #{stb_forward.6} parent=11 // pred_region
        _
      $region48: #{stb_forward.6} parent=11 // pred_fallthru
        _
      // Predicated region
      $region49: #{stb_forward.6} parent=11 // pred_check
        %p453 = pneg %p259
      $region50: #{stb_forward.6} parent=11 // pred_check_branch
        %455 = sbr.rel (%p453) target = $region52
      $region51: #{stb_forward.6} parent=11 // pred_region
        _
      $region52: #{stb_forward.6} parent=11 // pred_fallthru
        _
      // Predicated region
      $region53: #{stb_forward.6} parent=11 // pred_check
        %p456 = pneg %p280
      $region54: #{stb_forward.6} parent=11 // pred_check_branch
        %458 = sbr.rel (%p456) target = $region56
      $region55: #{stb_forward.6} parent=11 // pred_region
        _
      $region56: #{stb_forward.6} parent=11 // pred_fallthru
        _
      // Predicated region
      $region57: #{stb_forward.6} parent=11 // pred_check
        %p459 = pneg %p301
      $region58: #{stb_forward.6} parent=11 // pred_check_branch
        %461 = sbr.rel (%p459) target = $region60
      $region59: #{stb_forward.6} parent=11 // pred_region
        _
      $region60: #{stb_forward.6} parent=11 // pred_fallthru
        _
      // Predicated region
      $region61: #{stb_forward.6} parent=11 // pred_check
        %p462 = pneg %p322
      $region62: #{stb_forward.6} parent=11 // pred_check_branch
        %464 = sbr.rel (%p462) target = $region64
      $region63: #{stb_forward.6} parent=11 // pred_region
        _
      $region64: #{stb_forward.6} parent=11 // pred_fallthru
        _
      // Predicated region
      $region65: #{stb_forward.6} parent=11 // pred_check
        %p465 = pneg %p343
      $region66: #{stb_forward.6} parent=11 // pred_check_branch
        %467 = sbr.rel (%p465) target = $region68
      $region67: #{stb_forward.6} parent=11 // pred_region
        _
      $region68: #{stb_forward.6} parent=11 // pred_fallthru
        _
      // Predicated region
      $region69: #{stb_forward.6} parent=11 // pred_check
        %p468 = pneg %p364
      $region70: #{stb_forward.6} parent=11 // pred_check_branch
        %470 = sbr.rel (%p468) target = $region72
      $region71: #{stb_forward.6} parent=11 // pred_region
        _
      $region72: #{stb_forward.6} parent=11 // pred_fallthru
        _
      // Predicated region
      $region73: #{stb_forward.6} parent=11 // pred_check
        %p471 = pneg %p385
      $region74: #{stb_forward.6} parent=11 // pred_check_branch
        %473 = sbr.rel (%p471) target = $region76
      $region75: #{stb_forward.6} parent=11 // pred_region
        _
      $region76: #{stb_forward.6} parent=11 // pred_fallthru
        _
    $region12: #{stb_forward.6} parent=5 // pred_fallthru
      _
    %p474 = scmp.lt.s32.totalorder %s23, 2
    // Predicated region
    $region77: #{stb_forward.6} parent=5 // pred_check
      %p475 = pneg %p474
    $region78: #{stb_forward.6} parent=5 // pred_check_branch
      %477 = sbr.rel (%p475) target = $region80
    $region79: #{stb_forward.6} parent=5 // pred_region
      // Predicated region
      $region81: #{stb_forward.6} parent=79 // pred_check
        %p478 = pneg %p43
      $region82: #{stb_forward.6} parent=79 // pred_check_branch
        %480 = sbr.rel (%p478) target = $region84
      $region83: #{stb_forward.6} parent=79 // pred_region
        %p481 = scmp.lt.s32.totalorder %s23, 1
        %s482 = scalar_select %p481, %s23, 1
        %s483 = smul.addr %s482, 2
        %s484 = smul.addr %s483, 8
        %s485 = scalar_lea.vmem %s0, %s484
      $region84: #{stb_forward.6} parent=79 // pred_fallthru
        _
    $region80: #{stb_forward.6} parent=5 // pred_fallthru
      _
    %p486 = scmp.le.s32.totalorder 1, %s23
    %p487 = scmp.lt.s32.totalorder %s23, 3
    %p488 = pnand %p486, %p487
    %p489 = pneg %p488
    // Predicated region
    $region85: #{stb_forward.6} parent=5 // pred_check
      _
    $region86: #{stb_forward.6} parent=5 // pred_check_branch
      %491 = sbr.rel (%p488) target = $region88
    $region87: #{stb_forward.6} parent=5 // pred_region
      %s492 = ssub.s32 %s23, 1
      %p493 = scmp.lt.s32.totalorder %s28, 1
      %s494 = scalar_select %p493, %s28, 1
      %s495 = smul.addr %s494, 2
      %s496 = smul.addr %s495, 8
      %s497 = scalar_lea.vmem %s0, %s496
      %p498 = pneg %p49
      %p499 = pneg %p46
      %p500 = pneg %p70
      %p501 = pneg %p67
      %p502 = pneg %p91
      %p503 = pneg %p88
      %p504 = pneg %p112
      %p505 = pneg %p109
      %p506 = pneg %p133
      %p507 = pneg %p130
      %p508 = pneg %p154
      %p509 = pneg %p151
      %p510 = pneg %p175
      %p511 = pneg %p172
      %p512 = pneg %p196
      %p513 = pneg %p193
      %p514 = pneg %p217
      %p515 = pneg %p214
      %p516 = pneg %p238
      %p517 = pneg %p235
      %p518 = pneg %p259
      %p519 = pneg %p256
      %p520 = pneg %p280
      %p521 = pneg %p277
      %p522 = pneg %p301
      %p523 = pneg %p298
      %p524 = pneg %p322
      %p525 = pneg %p319
      %p526 = pneg %p343
      %p527 = pneg %p340
      %p528 = pneg %p364
      %p529 = pneg %p361
      %p530 = pneg %p385
      %p531 = pneg %p382
      %p532 = pneg %p411
      %p533 = pneg %p408
      %p534 = scmp.lt.s32.totalorder %s28, 1
      %s535 = scalar_select %p534, %s28, 1
      %s536 = smul.addr %s535, 2
      %s537 = smul.addr %s536, 8
      %s538 = scalar_lea.vmem %s17, %s537
      %p539 = scmp.lt.s32.totalorder %s28, 1
      %s540 = scalar_select %p539, %s28, 1
      %s541 = smul.addr %s540, 2
      %s542 = smul.addr %s541, 8
      %s543 = scalar_lea.vmem %s0, %s542
      %p544 = scmp.lt.s32.totalorder %s28, 1
      %s545 = scalar_select %p544, %s28, 1
      %s546 = smul.addr %s545, 2
      %s547 = smul.addr %s546, 8
      %s548 = scalar_lea.vmem %s17, %s547
      %v550 = vld [vmem:[%s543] sm:$0xff]
      %v551 = vld [vmem:[%s543 + $0x8] sm:$0xff]
      %v552 = vpack.c.bf16 %v551, %v550
      %v553 = vld [vmem:[%s1] sm:$0xf]
      %v554 = vld [vmem:[%s1 + $0x4] sm:$0xf]
      %v555 = vld [vmem:[%s1 + $0x8] sm:$0xf]
      %v556 = vld [vmem:[%s1 + $0xc] sm:$0xf]
      %v557 = vld [vmem:[%s2] sm:$0x1]
      %v559 = vperm.slane %v557, 0
      %v565 = vunpack.c.l.b16 %v553
      %v566 = vunpack.c.l.b16 %v554
      %v567 = vunpack.c.l.b16 %v555
      %v568 = vunpack.c.l.b16 %v556
      %v569 = vpack.c.b16 %v566, %v565
      %v570 = vpack.c.b16 %v568, %v567
      %vm573 = vcmask 261120
      %v575 = vsel %vm573, %v552, 0
      %577 = vmatpush.bf16.msra.mxu0 0
      %578 = vmatpush.bf16.msra.mxu0 0
      %579 = vmatpush.bf16.msra.mxu0 0
      %580 = vmatpush.bf16.msra.mxu0 0
      %581 = vmatpush.bf16.msra.mxu0 0
      %582 = vmatpush.bf16.msra.mxu0 0
      %583 = vmatpush.bf16.msra.mxu0 %v570
      %584 = vmatpush.bf16.msra.mxu0 %v569
      %585 = vmatmul.bf16.gmra.mxu0 %v575
      %v586 = vpop.f32.mrf.mxu0
      %v587 = vadd.f32 %v559, %v586
      %v588 = vpop.f32.mrf.mxu0
      %v589 = vadd.f32 %v559, %v588
      %590 = vdwg.mxu0
      %v591 = vld [vmem:[%s3] sm:$0xf]
      %v592 = vld [vmem:[%s3 + $0x4] sm:$0xf]
      %v593 = vld [vmem:[%s3 + $0x8] sm:$0xf]
      %v594 = vld [vmem:[%s3 + $0xc] sm:$0xf]
      %v595 = vld [vmem:[%s4] sm:$0x1]
      %v597 = vperm.slane %v595, 0
      %v603 = vunpack.c.l.b16 %v591
      %v604 = vunpack.c.l.b16 %v592
      %v605 = vunpack.c.l.b16 %v593
      %v606 = vunpack.c.l.b16 %v594
      %v607 = vpack.c.b16 %v604, %v603
      %v608 = vpack.c.b16 %v606, %v605
      %611 = vmatpush.bf16.msra.mxu0 0
      %612 = vmatpush.bf16.msra.mxu0 0
      %613 = vmatpush.bf16.msra.mxu0 0
      %614 = vmatpush.bf16.msra.mxu0 0
      %615 = vmatpush.bf16.msra.mxu0 0
      %616 = vmatpush.bf16.msra.mxu0 0
      %617 = vmatpush.bf16.msra.mxu0 %v608
      %618 = vmatpush.bf16.msra.mxu0 %v607
      %619 = vmatmul.bf16.gmra.mxu0 %v575
      %v620 = vpop.f32.mrf.mxu0
      %v621 = vadd.f32 %v597, %v620
      %v622 = vpop.f32.mrf.mxu0
      %v623 = vadd.f32 %v597, %v622
      %624 = vdwg.mxu0
      %v625 = vld [vmem:[%s5] sm:$0xf]
      %v626 = vld [vmem:[%s5 + $0x4] sm:$0xf]
      %v627 = vld [vmem:[%s5 + $0x8] sm:$0xf]
      %v628 = vld [vmem:[%s5 + $0xc] sm:$0xf]
      %v629 = vld [vmem:[%s6] sm:$0x1]
      %v631 = vperm.slane %v629, 0
      %v637 = vunpack.c.l.b16 %v625
      %v638 = vunpack.c.l.b16 %v626
      %v639 = vunpack.c.l.b16 %v627
      %v640 = vunpack.c.l.b16 %v628
      %v641 = vpack.c.b16 %v638, %v637
      %v642 = vpack.c.b16 %v640, %v639
      %645 = vmatpush.bf16.msra.mxu0 0
      %646 = vmatpush.bf16.msra.mxu0 0
      %647 = vmatpush.bf16.msra.mxu0 0
      %648 = vmatpush.bf16.msra.mxu0 0
      %649 = vmatpush.bf16.msra.mxu0 0
      %650 = vmatpush.bf16.msra.mxu0 0
      %651 = vmatpush.bf16.msra.mxu0 %v642
      %652 = vmatpush.bf16.msra.mxu0 %v641
      %653 = vmatmul.bf16.gmra.mxu0 %v575
      %v654 = vpop.f32.mrf.mxu0
      %v655 = vadd.f32 %v631, %v654
      %v656 = vpop.f32.mrf.mxu0
      %v657 = vadd.f32 %v631, %v656
      %658 = vdwg.mxu0
      %v659 = vpack.c.bf16 %v589, %v587
      %v660 = vpack.c.bf16 %v623, %v621
      %vm661 = vcmask 130048
      %v663 = vsel %vm661, %v659, 0
      %v666 = vsel %vm661, %v660, 0
      %668 = vmatpush.bf16.xpose.msra.mxu0 0
      %669 = vmatpush.bf16.xpose.msra.mxu0 0
      %670 = vmatpush.bf16.xpose.msra.mxu0 0
      %671 = vmatpush.bf16.xpose.msra.mxu0 0
      %672 = vmatpush.bf16.xpose.msra.mxu0 0
      %673 = vmatpush.bf16.xpose.msra.mxu0 0
      %674 = vmatpush.bf16.xpose.msra.mxu0 0
      %675 = vmatpush.bf16.xpose.msra.mxu0 %v666
      %676 = vmatmul.bf16.gmra.mxu0 %v663
      %v677 = vpop.f32.mrf.mxu0
      %v678 = vadd.f32 0.0, %v677
      %v679 = vpop.f32.mrf.mxu0
      %v680 = vadd.f32 0.0, %v679
      %681 = vdwg.mxu0
      %v682 = vmul.f32 %v678, 0.25
      %v683 = vmul.f32 %v680, 0.25
      %v684 = vsel %vm661, %v682, -inf
      %685 = vmax.xlane.f32.xlu0 %v684
      %v686 = vpop.xlane.xlu0 %685
      %v687 = vsel %vm661, %v683, -inf
      %688 = vmax.xlane.f32.xlu0 %v687
      %v689 = vpop.xlane.xlu0 %688
      %v690 = vsub.f32 %v682, %v686
      %v691 = vsub.f32 %v683, %v689
      %v692 = vmul.f32 %v690, 1.442695
      %v693 = vpow.pop %v692
      %v694 = vmul.f32 %v691, 1.442695
      %v695 = vpow.pop %v694
      %v696 = vsel %vm661, %v693, 0.0
      %697 = vadd.xlane.f32.xlu0 %v696
      %v698 = vpop.xlane.xlu0 %697
      %v699 = vsel %vm661, %v695, 0.0
      %700 = vadd.xlane.f32.xlu0 %v699
      %v701 = vpop.xlane.xlu0 %700
      %v702 = vrcp.pop %v698
      %v703 = vrcp.pop %v701
      %v704 = vmul.f32 %v693, %v702
      %v705 = vmul.f32 %v695, %v703
      %v706 = vpack.c.bf16 %v705, %v704
      %v707 = vpack.c.bf16 %v657, %v655
      %v709 = vsel %vm661, %v706, 0
      %711 = vmatpush.bf16.msra.mxu0 0
      %712 = vmatpush.bf16.msra.mxu0 0
      %713 = vmatpush.bf16.msra.mxu0 0
      %714 = vmatpush.bf16.msra.mxu0 0
      %715 = vmatpush.bf16.msra.mxu0 0
      %716 = vmatpush.bf16.msra.mxu0 0
      %717 = vmatpush.bf16.msra.mxu0 0
      %718 = vmatpush.bf16.msra.mxu0 %v707
      %719 = vmatmul.bf16.gmra.mxu0 %v709
      %v720 = vpop.f32.mrf.mxu0
      %v721 = vadd.f32 0.0, %v720
      %v722 = vpop.f32.mrf.mxu0
      %v723 = vadd.f32 0.0, %v722
      %724 = vdwg.mxu0
      %v725 = vpack.c.bf16 %v723, %v721
      %v726 = vld [vmem:[%s7] sm:$0xf]
      %v727 = vld [vmem:[%s7 + $0x4] sm:$0xf]
      %s728 = scalar_lea.vmem %s1, 16
      %v729 = vld [vmem:[%s728] sm:$0xf]
      %v730 = vld [vmem:[%s728 + $0x4] sm:$0xf]
      %v731 = vld [vmem:[%s728 + $0x8] sm:$0xf]
      %v732 = vld [vmem:[%s728 + $0xc] sm:$0xf]
      %s733 = scalar_lea.vmem %s2, 1
      %v734 = vld [vmem:[%s733] sm:$0x1]
      %v736 = vperm.slane %v734, 0
      %v742 = vunpack.c.l.b16 %v729
      %v743 = vunpack.c.l.b16 %v730
      %v744 = vunpack.c.l.b16 %v731
      %v745 = vunpack.c.l.b16 %v732
      %v746 = vpack.c.b16 %v743, %v742
      %v747 = vpack.c.b16 %v745, %v744
      %750 = vmatpush.bf16.msra.mxu0 0
      %751 = vmatpush.bf16.msra.mxu0 0
      %752 = vmatpush.bf16.msra.mxu0 0
      %753 = vmatpush.bf16.msra.mxu0 0
      %754 = vmatpush.bf16.msra.mxu0 0
      %755 = vmatpush.bf16.msra.mxu0 0
      %756 = vmatpush.bf16.msra.mxu0 %v747
      %757 = vmatpush.bf16.msra.mxu0 %v746
      %758 = vmatmul.bf16.gmra.mxu0 %v575
      %v759 = vpop.f32.mrf.mxu0
      %v760 = vadd.f32 %v736, %v759
      %v761 = vpop.f32.mrf.mxu0
      %v762 = vadd.f32 %v736, %v761
      %763 = vdwg.mxu0
      %s764 = scalar_lea.vmem %s3, 16
      %v765 = vld [vmem:[%s764] sm:$0xf]
      %v766 = vld [vmem:[%s764 + $0x4] sm:$0xf]
      %v767 = vld [vmem:[%s764 + $0x8] sm:$0xf]
      %v768 = vld [vmem:[%s764 + $0xc] sm:$0xf]
      %s769 = scalar_lea.vmem %s4, 1
      %v770 = vld [vmem:[%s769] sm:$0x1]
      %v772 = vperm.slane %v770, 0
      %v778 = vunpack.c.l.b16 %v765
      %v779 = vunpack.c.l.b16 %v766
      %v780 = vunpack.c.l.b16 %v767
      %v781 = vunpack.c.l.b16 %v768
      %v782 = vpack.c.b16 %v779, %v778
      %v783 = vpack.c.b16 %v781, %v780
      %786 = vmatpush.bf16.msra.mxu0 0
      %787 = vmatpush.bf16.msra.mxu0 0
      %788 = vmatpush.bf16.msra.mxu0 0
      %789 = vmatpush.bf16.msra.mxu0 0
      %790 = vmatpush.bf16.msra.mxu0 0
      %791 = vmatpush.bf16.msra.mxu0 0
      %792 = vmatpush.bf16.msra.mxu0 %v783
      %793 = vmatpush.bf16.msra.mxu0 %v782
      %794 = vmatmul.bf16.gmra.mxu0 %v575
      %v795 = vpop.f32.mrf.mxu0
      %v796 = vadd.f32 %v772, %v795
      %v797 = vpop.f32.mrf.mxu0
      %v798 = vadd.f32 %v772, %v797
      %799 = vdwg.mxu0
      %s800 = scalar_lea.vmem %s5, 16
      %v801 = vld [vmem:[%s800] sm:$0xf]
      %v802 = vld [vmem:[%s800 + $0x4] sm:$0xf]
      %v803 = vld [vmem:[%s800 + $0x8] sm:$0xf]
      %v804 = vld [vmem:[%s800 + $0xc] sm:$0xf]
      %s805 = scalar_lea.vmem %s6, 1
      %v806 = vld [vmem:[%s805] sm:$0x1]
      %v808 = vperm.slane %v806, 0
      %v814 = vunpack.c.l.b16 %v801
      %v815 = vunpack.c.l.b16 %v802
      %v816 = vunpack.c.l.b16 %v803
      %v817 = vunpack.c.l.b16 %v804
      %v818 = vpack.c.b16 %v815, %v814
      %v819 = vpack.c.b16 %v817, %v816
      %822 = vmatpush.bf16.msra.mxu0 0
      %823 = vmatpush.bf16.msra.mxu0 0
      %824 = vmatpush.bf16.msra.mxu0 0
      %825 = vmatpush.bf16.msra.mxu0 0
      %826 = vmatpush.bf16.msra.mxu0 0
      %827 = vmatpush.bf16.msra.mxu0 0
      %828 = vmatpush.bf16.msra.mxu0 %v819
      %829 = vmatpush.bf16.msra.mxu0 %v818
      %830 = vmatmul.bf16.gmra.mxu0 %v575
      %v831 = vpop.f32.mrf.mxu0
      %v832 = vadd.f32 %v808, %v831
      %v833 = vpop.f32.mrf.mxu0
      %v834 = vadd.f32 %v808, %v833
      %835 = vdwg.mxu0
      %v836 = vpack.c.bf16 %v762, %v760
      %v837 = vpack.c.bf16 %v798, %v796
      %v839 = vsel %vm661, %v836, 0
      %v842 = vsel %vm661, %v837, 0
      %844 = vmatpush.bf16.xpose.msra.mxu0 0
      %845 = vmatpush.bf16.xpose.msra.mxu0 0
      %846 = vmatpush.bf16.xpose.msra.mxu0 0
      %847 = vmatpush.bf16.xpose.msra.mxu0 0
      %848 = vmatpush.bf16.xpose.msra.mxu0 0
      %849 = vmatpush.bf16.xpose.msra.mxu0 0
      %850 = vmatpush.bf16.xpose.msra.mxu0 0
      %851 = vmatpush.bf16.xpose.msra.mxu0 %v842
      %852 = vmatmul.bf16.gmra.mxu0 %v839
      %v853 = vpop.f32.mrf.mxu0
      %v854 = vadd.f32 0.0, %v853
      %v855 = vpop.f32.mrf.mxu0
      %v856 = vadd.f32 0.0, %v855
      %857 = vdwg.mxu0
      %v858 = vmul.f32 %v854, 0.25
      %v859 = vmul.f32 %v856, 0.25
      %v860 = vsel %vm661, %v858, -inf
      %861 = vmax.xlane.f32.xlu0 %v860
      %v862 = vpop.xlane.xlu0 %861
      %v863 = vsel %vm661, %v859, -inf
      %864 = vmax.xlane.f32.xlu0 %v863
      %v865 = vpop.xlane.xlu0 %864
      %v866 = vsub.f32 %v858, %v862
      %v867 = vsub.f32 %v859, %v865
      %v868 = vmul.f32 %v866, 1.442695
      %v869 = vpow.pop %v868
      %v870 = vmul.f32 %v867, 1.442695
      %v871 = vpow.pop %v870
      %v872 = vsel %vm661, %v869, 0.0
      %873 = vadd.xlane.f32.xlu0 %v872
      %v874 = vpop.xlane.xlu0 %873
      %v875 = vsel %vm661, %v871, 0.0
      %876 = vadd.xlane.f32.xlu0 %v875
      %v877 = vpop.xlane.xlu0 %876
      %v878 = vrcp.pop %v874
      %v879 = vrcp.pop %v877
      %v880 = vmul.f32 %v869, %v878
      %v881 = vmul.f32 %v871, %v879
      %v882 = vpack.c.bf16 %v881, %v880
      %v883 = vpack.c.bf16 %v834, %v832
      %v885 = vsel %vm661, %v882, 0
      %887 = vmatpush.bf16.msra.mxu0 0
      %888 = vmatpush.bf16.msra.mxu0 0
      %889 = vmatpush.bf16.msra.mxu0 0
      %890 = vmatpush.bf16.msra.mxu0 0
      %891 = vmatpush.bf16.msra.mxu0 0
      %892 = vmatpush.bf16.msra.mxu0 0
      %893 = vmatpush.bf16.msra.mxu0 0
      %894 = vmatpush.bf16.msra.mxu0 %v883
      %895 = vmatmul.bf16.gmra.mxu0 %v885
      %v896 = vpop.f32.mrf.mxu0
      %v897 = vadd.f32 0.0, %v896
      %v898 = vpop.f32.mrf.mxu0
      %v899 = vadd.f32 0.0, %v898
      %900 = vdwg.mxu0
      %v901 = vpack.c.bf16 %v899, %v897
      %s902 = scalar_lea.vmem %s7, 8
      %v903 = vld [vmem:[%s902] sm:$0xf]
      %v904 = vld [vmem:[%s902 + $0x4] sm:$0xf]
      %v907 = vunpack.c.l.b16 %v903
      %v908 = vunpack.c.l.b16 %v904
      %v909 = vpack.c.b16 %v908, %v907
      %v912 = vsel %vm661, %v901, 0
      %914 = vmatpush.bf16.msra.mxu0 0
      %915 = vmatpush.bf16.msra.mxu0 0
      %916 = vmatpush.bf16.msra.mxu0 0
      %917 = vmatpush.bf16.msra.mxu0 0
      %918 = vmatpush.bf16.msra.mxu0 0
      %919 = vmatpush.bf16.msra.mxu0 0
      %920 = vmatpush.bf16.msra.mxu0 0
      %921 = vmatpush.bf16.msra.mxu0 %v909
      %922 = vmatmul.bf16.gmra.mxu0 %v912
      %v923 = vpop.f32.mrf.mxu0
      %v924 = vadd.f32 0.0, %v923
      %v925 = vpop.f32.mrf.mxu0
      %v926 = vadd.f32 0.0, %v925
      %927 = vdwg.mxu0
      %v930 = vunpack.c.l.b16 %v726
      %v931 = vunpack.c.l.b16 %v727
      %v932 = vpack.c.b16 %v931, %v930
      %v935 = vsel %vm661, %v725, 0
      %937 = vmatpush.bf16.msra.mxu0 0
      %938 = vmatpush.bf16.msra.mxu0 0
      %939 = vmatpush.bf16.msra.mxu0 0
      %940 = vmatpush.bf16.msra.mxu0 0
      %941 = vmatpush.bf16.msra.mxu0 0
      %942 = vmatpush.bf16.msra.mxu0 0
      %943 = vmatpush.bf16.msra.mxu0 0
      %944 = vmatpush.bf16.msra.mxu0 %v932
      %945 = vmatmul.bf16.gmra.mxu0 %v935
      %v946 = vpop.f32.mrf.mxu0
      %v947 = vadd.f32 %v924, %v946
      %v948 = vpop.f32.mrf.mxu0
      %v949 = vadd.f32 %v926, %v948
      %950 = vdwg.mxu0
      %v951 = vld [vmem:[%s8] sm:$0x1]
      %v953 = vperm.slane %v951, 0
      %v955 = vadd.f32 %v947, %v953
      %v956 = vadd.f32 %v949, %v953
      %v957 = vadd.f32 %v955, %v550
      %v958 = vadd.f32 %v956, %v551
      %v959 = vld [vmem:[%s13] sm:$0x1]
      %v960 = vld [vmem:[%s14] sm:$0x1]
      %v961 = vsel %vm573, %v957, 0.0
      %962 = vadd.xlane.f32.xlu0 %v961
      %v963 = vpop.xlane.xlu0 %962
      %v964 = vsel %vm573, %v958, 0.0
      %965 = vadd.xlane.f32.xlu0 %v964
      %v966 = vpop.xlane.xlu0 %965
      %v967 = vrcp.pop 32.0
      %v968 = vmul.f32 32.0, %v967
      %v969 = vsub.f32 1.0, %v968
      %v970 = vmul.f32 %v967, %v969
      %v971 = vadd.f32 %v967, %v970
      %vm972 = vweird.f32 %v967
      %v973 = vsel %vm972, %v967, %v971
      %v974 = vmul.f32 %v963, %v973
      %v975 = vmul.f32 %v966, %v973
      %v976 = vsub.f32 %v957, %v974
      %v977 = vsub.f32 %v958, %v975
      %v978 = vmul.f32 %v976, %v976
      %v979 = vmul.f32 %v977, %v977
      %v980 = vsel %vm573, %v978, 0.0
      %981 = vadd.xlane.f32.xlu0 %v980
      %v982 = vpop.xlane.xlu0 %981
      %v983 = vsel %vm573, %v979, 0.0
      %984 = vadd.xlane.f32.xlu0 %v983
      %v985 = vpop.xlane.xlu0 %984
      %v986 = vmul.f32 %v982, %v973
      %v987 = vmul.f32 %v985, %v973
      %v988 = vadd.f32 %v986, 1e-05
      %v989 = vadd.f32 %v987, 1e-05
      %v990 = vrsqrt.pop %v988
      %v991 = vmul.f32 %v990, %v988
      %v992 = vmul.f32 %v991, %v990
      %v993 = vmul.f32 0.5, %v992
      %v994 = vsub.f32 1.5, %v993
      %v995 = vmul.f32 %v990, %v994
      %vm996 = vweird.f32 %v988
      %vm997 = vweird.f32 %v990
      %vm998 = vmor %vm996, %vm997
      %v999 = vsel %vm998, %v990, %v995
      %v1000 = vrsqrt.pop %v989
      %v1001 = vmul.f32 %v1000, %v989
      %v1002 = vmul.f32 %v1001, %v1000
      %v1003 = vmul.f32 0.5, %v1002
      %v1004 = vsub.f32 1.5, %v1003
      %v1005 = vmul.f32 %v1000, %v1004
      %vm1006 = vweird.f32 %v989
      %vm1007 = vweird.f32 %v1000
      %vm1008 = vmor %vm1006, %vm1007
      %v1009 = vsel %vm1008, %v1000, %v1005
      %v1010 = vmul.f32 %v976, %v999
      %v1011 = vmul.f32 %v977, %v1009
      %v1013 = vperm.slane %v959, 0
      %v1015 = vmul.f32 %v1010, %v1013
      %v1016 = vmul.f32 %v1011, %v1013
      %v1018 = vperm.slane %v960, 0
      %v1020 = vadd.f32 %v1015, %v1018
      %v1021 = vadd.f32 %v1016, %v1018
      %v1022 = vpack.c.bf16 %v1021, %v1020
      %v1023 = vld [vmem:[%s9] sm:$0xf]
      %v1024 = vld [vmem:[%s9 + $0x4] sm:$0xf]
      %v1025 = vld [vmem:[%s9 + $0x8] sm:$0xf]
      %v1026 = vld [vmem:[%s9 + $0xc] sm:$0xf]
      %v1027 = vld [vmem:[%s10] sm:$0x1]
      %v1029 = vperm.slane %v1027, 0
      %v1035 = vunpack.c.l.b16 %v1023
      %v1036 = vunpack.c.l.b16 %v1024
      %v1037 = vunpack.c.l.b16 %v1025
      %v1038 = vunpack.c.l.b16 %v1026
      %v1039 = vpack.c.b16 %v1036, %v1035
      %v1040 = vpack.c.b16 %v1038, %v1037
      %v1044 = vsel %vm573, %v1022, 0
      %1046 = vmatpush.bf16.msra.mxu0 0
      %1047 = vmatpush.bf16.msra.mxu0 0
      %1048 = vmatpush.bf16.msra.mxu0 0
      %1049 = vmatpush.bf16.msra.mxu0 0
      %1050 = vmatpush.bf16.msra.mxu0 0
      %1051 = vmatpush.bf16.msra.mxu0 0
      %1052 = vmatpush.bf16.msra.mxu0 %v1040
      %1053 = vmatpush.bf16.msra.mxu0 %v1039
      %1054 = vmatmul.bf16.gmra.mxu0 %v1044
      %v1055 = vpop.f32.mrf.mxu0
      %v1056 = vadd.f32 %v1029, %v1055
      %v1057 = vpop.f32.mrf.mxu0
      %v1058 = vadd.f32 %v1029, %v1057
      %1059 = vdwg.mxu0
      %v1060 = vmul.f32 %v1056, 0.5
      %v1061 = vmul.f32 %v1058, 0.5
      %v1062 = vmul.f32 %v1056, %v1056
      %v1063 = vmul.f32 %v1058, %v1058
      %v1064 = vmul.f32 %v1062, %v1056
      %v1065 = vmul.f32 %v1063, %v1058
      %v1066 = vmul.f32 %v1064, 0.044715
      %v1067 = vmul.f32 %v1065, 0.044715
      %v1068 = vadd.f32 %v1056, %v1066
      %v1069 = vadd.f32 %v1058, %v1067
      %v1070 = vmul.f32 %v1068, 0.7978846
      %v1071 = vmul.f32 %v1069, 0.7978846
      %v1072 = vtanh.pop %v1070
      %v1073 = vtanh.pop %v1071
      %v1074 = vadd.f32 %v1072, 1.0
      %v1075 = vadd.f32 %v1073, 1.0
      %v1076 = vmul.f32 %v1060, %v1074
      %v1077 = vmul.f32 %v1061, %v1075
      %v1078 = vpack.c.bf16 %v1077, %v1076
      %v1079 = vld [vmem:[%s11] sm:$0xf]
      %v1080 = vld [vmem:[%s11 + $0x4] sm:$0xf]
      %v1081 = vld [vmem:[%s11 + $0x8] sm:$0xf]
      %v1082 = vld [vmem:[%s11 + $0xc] sm:$0xf]
      %v1083 = vld [vmem:[%s11 + $0x10] sm:$0xf]
      %v1084 = vld [vmem:[%s11 + $0x14] sm:$0xf]
      %v1085 = vld [vmem:[%s11 + $0x18] sm:$0xf]
      %v1086 = vld [vmem:[%s11 + $0x1c] sm:$0xf]
      %v1087 = vld [vmem:[%s12] sm:$0x1]
      %v1089 = vperm.slane %v1087, 0
      %v1099 = vunpack.c.l.b16 %v1079
      %v1100 = vunpack.c.l.b16 %v1080
      %v1101 = vunpack.c.l.b16 %v1081
      %v1102 = vunpack.c.l.b16 %v1082
      %v1103 = vunpack.c.l.b16 %v1083
      %v1104 = vunpack.c.l.b16 %v1084
      %v1105 = vunpack.c.l.b16 %v1085
      %v1106 = vunpack.c.l.b16 %v1086
      %v1107 = vpack.c.b16 %v1100, %v1099
      %v1108 = vpack.c.b16 %v1102, %v1101
      %v1109 = vpack.c.b16 %v1104, %v1103
      %v1110 = vpack.c.b16 %v1106, %v1105
      %vm1115 = vcmask 523264
      %v1117 = vsel %vm1115, %v1078, 0
      %1119 = vmatpush.bf16.msra.mxu0 0
      %1120 = vmatpush.bf16.msra.mxu0 0
      %1121 = vmatpush.bf16.msra.mxu0 0
      %1122 = vmatpush.bf16.msra.mxu0 0
      %1123 = vmatpush.bf16.msra.mxu0 %v1110
      %1124 = vmatpush.bf16.msra.mxu0 %v1109
      %1125 = vmatpush.bf16.msra.mxu0 %v1108
      %1126 = vmatpush.bf16.msra.mxu0 %v1107
      %1127 = vmatmul.bf16.gmra.mxu0 %v1117
      %v1128 = vpop.f32.mrf.mxu0
      %v1129 = vadd.f32 %v1089, %v1128
      %v1130 = vpop.f32.mrf.mxu0
      %v1131 = vadd.f32 %v1089, %v1130
      %1132 = vdwg.mxu0
      %v1133 = vmul.f32 %v1129, 0.5
      %v1134 = vmul.f32 %v1131, 0.5
      %v1135 = vmul.f32 %v1129, %v1129
      %v1136 = vmul.f32 %v1131, %v1131
      %v1137 = vmul.f32 %v1135, %v1129
      %v1138 = vmul.f32 %v1136, %v1131
      %v1139 = vmul.f32 %v1137, 0.044715
      %v1140 = vmul.f32 %v1138, 0.044715
      %v1141 = vadd.f32 %v1129, %v1139
      %v1142 = vadd.f32 %v1131, %v1140
      %v1143 = vmul.f32 %v1141, 0.7978846
      %v1144 = vmul.f32 %v1142, 0.7978846
      %v1145 = vtanh.pop %v1143
      %v1146 = vtanh.pop %v1144
      %v1147 = vadd.f32 %v1145, 1.0
      %v1148 = vadd.f32 %v1146, 1.0
      %v1149 = vmul.f32 %v1133, %v1147
      %v1150 = vmul.f32 %v1134, %v1148
      %v1151 = vadd.f32 %v1149, %v550
      %v1152 = vadd.f32 %v1150, %v551
      %v1153 = vld [vmem:[%s15] sm:$0x1]
      %v1154 = vld [vmem:[%s16] sm:$0x1]
      %v1155 = vsel %vm573, %v1151, 0.0
      %1156 = vadd.xlane.f32.xlu0 %v1155
      %v1157 = vpop.xlane.xlu0 %1156
      %v1158 = vsel %vm573, %v1152, 0.0
      %1159 = vadd.xlane.f32.xlu0 %v1158
      %v1160 = vpop.xlane.xlu0 %1159
      %v1161 = vmul.f32 %v1157, %v973
      %v1162 = vmul.f32 %v1160, %v973
      %v1163 = vsub.f32 %v1151, %v1161
      %v1164 = vsub.f32 %v1152, %v1162
      %v1165 = vmul.f32 %v1163, %v1163
      %v1166 = vmul.f32 %v1164, %v1164
      %v1167 = vsel %vm573, %v1165, 0.0
      %1168 = vadd.xlane.f32.xlu0 %v1167
      %v1169 = vpop.xlane.xlu0 %1168
      %v1170 = vsel %vm573, %v1166, 0.0
      %1171 = vadd.xlane.f32.xlu0 %v1170
      %v1172 = vpop.xlane.xlu0 %1171
      %v1173 = vmul.f32 %v1169, %v973
      %v1174 = vmul.f32 %v1172, %v973
      %v1175 = vadd.f32 %v1173, 1e-05
      %v1176 = vadd.f32 %v1174, 1e-05
      %v1177 = vrsqrt.pop %v1175
      %v1178 = vmul.f32 %v1177, %v1175
      %v1179 = vmul.f32 %v1178, %v1177
      %v1180 = vmul.f32 0.5, %v1179
      %v1181 = vsub.f32 1.5, %v1180
      %v1182 = vmul.f32 %v1177, %v1181
      %vm1183 = vweird.f32 %v1175
      %vm1184 = vweird.f32 %v1177
      %vm1185 = vmor %vm1183, %vm1184
      %v1186 = vsel %vm1185, %v1177, %v1182
      %v1187 = vrsqrt.pop %v1176
      %v1188 = vmul.f32 %v1187, %v1176
      %v1189 = vmul.f32 %v1188, %v1187
      %v1190 = vmul.f32 0.5, %v1189
      %v1191 = vsub.f32 1.5, %v1190
      %v1192 = vmul.f32 %v1187, %v1191
      %vm1193 = vweird.f32 %v1176
      %vm1194 = vweird.f32 %v1187
      %vm1195 = vmor %vm1193, %vm1194
      %v1196 = vsel %vm1195, %v1187, %v1192
      %v1197 = vmul.f32 %v1163, %v1186
      %v1198 = vmul.f32 %v1164, %v1196
      %v1200 = vperm.slane %v1153, 0
      %v1202 = vmul.f32 %v1197, %v1200
      %v1203 = vmul.f32 %v1198, %v1200
      %v1205 = vperm.slane %v1154, 0
      %v1207 = vadd.f32 %v1202, %v1205
      %v1208 = vadd.f32 %v1203, %v1205
      %1209 = vst.msk [vmem:[%s548] sm:$0xff] %vm573, %v1207
      %1210 = vst.msk [vmem:[%s548 + $0x8] sm:$0xff] %vm573, %v1208
      %p1211 = scmp.lt.s32.totalorder %s28, 1
      %s1212 = scalar_select %p1211, %s28, 1
      %s1213 = smul.addr %s1212, 2
      %s1214 = smul.addr %s1213, 8
      %s1215 = scalar_lea.vmem %s17, %s1214
      // Predicated region
      $region89: #{stb_forward.6} parent=87 // pred_check
        %p1216 = pneg %p408
      $region90: #{stb_forward.6} parent=87 // pred_check_branch
        %1218 = sbr.rel (%p1216) target = $region92
      $region91: #{stb_forward.6} parent=87 // pred_region
        _
      $region92: #{stb_forward.6} parent=87 // pred_fallthru
        _
    $region88: #{stb_forward.6} parent=5 // pred_fallthru
      _
    %p1219 = scmp.le.s32.totalorder 2, %s23
    // Predicated region
    $region93: #{stb_forward.6} parent=5 // pred_check
      %p1220 = pneg %p1219
    $region94: #{stb_forward.6} parent=5 // pred_check_branch
      %1222 = sbr.rel (%p1220) target = $region96
    $region95: #{stb_forward.6} parent=5 // pred_region
      %s1223 = ssub.s32 %s23, 2
      // Predicated region
      $region97: #{stb_forward.6} parent=95 // pred_check
        %p1224 = pneg %p414
      $region98: #{stb_forward.6} parent=95 // pred_check_branch
        %1226 = sbr.rel (%p1224) target = $region100
      $region99: #{stb_forward.6} parent=95 // pred_region
        %p1227 = scmp.lt.s32.totalorder %s29, 1
        %s1228 = scalar_select %p1227, %s29, 1
        %s1229 = smul.addr %s1228, 2
        %s1230 = smul.addr %s1229, 8
        %s1231 = scalar_lea.vmem %s17, %s1230
      $region100: #{stb_forward.6} parent=95 // pred_fallthru
        _
    $region96: #{stb_forward.6} parent=5 // pred_fallthru
      _
  $region6: #{stb_forward.6} parent=0 // loop_footer
    %s27 = sadd.s32 1, %s23
  $region7: #{stb_forward.6} parent=0 // loop_footer_branch
    %22 = sbr.rel target = $region3
  $region8: #{stb_forward.6} parent=0 // loop_exit
    _

// kernel: stb_forward.9
$region0: #{stb_forward.9}
  #allocation0 [shape = 'u32[]', space=smem, size = 0x4, offset = 0x4, fixed_abs, tag = 'smem constant byte address 0x4 - core index']
  #allocation1 [shape = 'u32[72,128]{1,0:T(1,128)}', space=vmem, size = 0x9000, scoped, tag = 'internal scratch']
  %s0 = inlined_call_operand.vmem [shape: f32[2,8,32], index: 0, kind: input, shape index: {}]
  %s1 = inlined_call_operand.vmem [shape: f32[2,8,32], index: 1, kind: input, shape index: {}]
  %s2 = inlined_call_operand.vmem [shape: bf16[32,64], index: 2, kind: input, shape index: {}]
  %s3 = inlined_call_operand.vmem [shape: f32[1,64], index: 3, kind: input, shape index: {}]
  %s4 = inlined_call_operand.vmem [shape: bf16[64,32], index: 4, kind: input, shape index: {}]
  %s5 = inlined_call_operand.vmem [shape: f32[1,32], index: 5, kind: input, shape index: {}]
  %s6 = inlined_call_operand.vmem [shape: f32[1,32], index: 6, kind: input, shape index: {}]
  %s7 = inlined_call_operand.vmem [shape: f32[1,32], index: 7, kind: input, shape index: {}]
  %s8 = inlined_call_operand.hbm [shape: f32[2,8,32], index: 8, kind: output, shape index: {}]
  %s9 = sld [smem:[#allocation0]]
  $region65: #{stb_forward.9} parent=0
    _
  %s11 = ssub.s32 1, %s9
  %s12 = scalar_select 0, %s11, %s9
  $region1: #{stb_forward.9} parent=0
    #allocation2 [shape = 'u8[8192]{0}', space=vmem, size = 0x2000, scoped, tag = 'output window, operand 0']
    #allocation3 [shape = 's32[2]{0}', space=sflag, size = 0x8, scoped, tag = 'scoped memory for stb_forward.9']
    %13 = vsyncpa [#allocation3], 0
    %s14 = scalar_lea.sflag [#allocation3], 1
    %15 = vsyncpa %s14, 0
    loop: start=0, step=1, limit=4
    $region2: #{stb_forward.9} parent=1 // loop_pre_header
      _
    $region3: #{stb_forward.9} parent=1 // loop_header
      %s17 = sphi 0, %s21
      %p18 = scmp.ge.s32.totalorder %s17, 4
      %s27 = sphi 0, %s29
      %s30 = sphi 0, %s27
      %s31 = sphi 0, %s30
      %s47 = sphi 0, %s31
      %s53 = sphi 0, %s55
      %s56 = sphi 0, %s53
      %s57 = sphi 0, %s56
      %s73 = sphi 0, %s57
      %s77 = sphi 0, %s77
      %s79 = sphi 0, %s77
      %s80 = sphi 0, %s79
      %s94 = sphi 0, %s80
      %s98 = sphi 0, %s98
      %s100 = sphi 0, %s98
      %s101 = sphi 0, %s100
      %s115 = sphi 0, %s101
      %s119 = sphi 0, %s119
      %s121 = sphi 0, %s119
      %s122 = sphi 0, %s121
      %s136 = sphi 0, %s122
      %s140 = sphi 0, %s140
      %s142 = sphi 0, %s140
      %s143 = sphi 0, %s142
      %s157 = sphi 0, %s143
      %s161 = sphi 0, %s161
      %s163 = sphi 0, %s161
      %s164 = sphi 0, %s163
      %s178 = sphi 0, %s164
      %s182 = sphi 0, %s182
      %s184 = sphi 0, %s182
      %s185 = sphi 0, %s184
      %s199 = sphi 0, %s185
      %s205 = sphi 0, %s207
      %s208 = sphi 0, %s205
      %s209 = sphi 0, %s208
      %s225 = sphi 0, %s209
    $region4: #{stb_forward.9} parent=1 // loop_header_branch
      %20 = sbr.rel (%p18) target = $region8
    $region5: #{stb_forward.9} parent=1 // loop_body
      %s22 = ssub.s32 %s17, 1
      %s23 = ssub.s32 %s17, 2
      %s24 = sadd.s32 %s17, 1
      %s25 = ssub.s32 %s17, %s24
      %p26 = scmp.eq.s32.totalorder %s25, 0
      %s28 = sadd.s32 %s27, 1
      %s29 = scalar_select %p26, %s27, %s28
      %p32 = pneg %p26
      %p33 = scmp.eq.s32.totalorder %s17, 1
      %p34 = por %p32, %p33
      %p35 = scmp.ne.s32.totalorder %s27, %s30
      %p36 = scmp.eq.s32.totalorder %s17, 0
      %p37 = por %p35, %p36
      %p38 = scmp.ne.s32.totalorder %s27, %s30
      %p39 = scmp.eq.s32.totalorder %s22, 1
      %p40 = por %p38, %p39
      %p41 = scmp.ne.s32.totalorder %s30, %s31
      %p42 = scmp.eq.s32.totalorder %s22, 0
      %p43 = por %p41, %p42
      %p44 = scmp.ne.s32.totalorder %s30, %s31
      %p45 = scmp.eq.s32.totalorder %s23, 1
      %p46 = por %p44, %p45
      %p48 = scmp.ne.s32.totalorder %s31, %s47
      %p49 = scmp.eq.s32.totalorder %s23, 0
      %p50 = por %p48, %p49
      %s51 = ssub.s32 %s17, %s24
      %p52 = scmp.eq.s32.totalorder %s51, 0
      %s54 = sadd.s32 %s53, 1
      %s55 = scalar_select %p52, %s53, %s54
      %p58 = pneg %p52
      %p59 = scmp.eq.s32.totalorder %s17, 1
      %p60 = por %p58, %p59
      %p61 = scmp.ne.s32.totalorder %s53, %s56
      %p62 = scmp.eq.s32.totalorder %s17, 0
      %p63 = por %p61, %p62
      %p64 = scmp.ne.s32.totalorder %s53, %s56
      %p65 = scmp.eq.s32.totalorder %s22, 1
      %p66 = por %p64, %p65
      %p67 = scmp.ne.s32.totalorder %s56, %s57
      %p68 = scmp.eq.s32.totalorder %s22, 0
      %p69 = por %p67, %p68
      %p70 = scmp.ne.s32.totalorder %s56, %s57
      %p71 = scmp.eq.s32.totalorder %s23, 1
      %p72 = por %p70, %p71
      %p74 = scmp.ne.s32.totalorder %s57, %s73
      %p75 = scmp.eq.s32.totalorder %s23, 0
      %p76 = por %p74, %p75
      %s78 = sadd.s32 %s77, 1
      %p81 = scmp.eq.s32.totalorder %s17, 1
      %p82 = scmp.ne.s32.totalorder %s77, %s79
      %p83 = scmp.eq.s32.totalorder %s17, 0
      %p84 = por %p82, %p83
      %p85 = scmp.ne.s32.totalorder %s77, %s79
      %p86 = scmp.eq.s32.totalorder %s22, 1
      %p87 = por %p85, %p86
      %p88 = scmp.ne.s32.totalorder %s79, %s80
      %p89 = scmp.eq.s32.totalorder %s22, 0
      %p90 = por %p88, %p89
      %p91 = scmp.ne.s32.totalorder %s79, %s80
      %p92 = scmp.eq.s32.totalorder %s23, 1
      %p93 = por %p91, %p92
      %p95 = scmp.ne.s32.totalorder %s80, %s94
      %p96 = scmp.eq.s32.totalorder %s23, 0
      %p97 = por %p95, %p96
      %s99 = sadd.s32 %s98, 1
      %p102 = scmp.eq.s32.totalorder %s17, 1
      %p103 = scmp.ne.s32.totalorder %s98, %s100
      %p104 = scmp.eq.s32.totalorder %s17, 0
      %p105 = por %p103, %p104
      %p106 = scmp.ne.s32.totalorder %s98, %s100
      %p107 = scmp.eq.s32.totalorder %s22, 1
      %p108 = por %p106, %p107
      %p109 = scmp.ne.s32.totalorder %s100, %s101
      %p110 = scmp.eq.s32.totalorder %s22, 0
      %p111 = por %p109, %p110
      %p112 = scmp.ne.s32.totalorder %s100, %s101
      %p113 = scmp.eq.s32.totalorder %s23, 1
      %p114 = por %p112, %p113
      %p116 = scmp.ne.s32.totalorder %s101, %s115
      %p117 = scmp.eq.s32.totalorder %s23, 0
      %p118 = por %p116, %p117
      %s120 = sadd.s32 %s119, 1
      %p123 = scmp.eq.s32.totalorder %s17, 1
      %p124 = scmp.ne.s32.totalorder %s119, %s121
      %p125 = scmp.eq.s32.totalorder %s17, 0
      %p126 = por %p124, %p125
      %p127 = scmp.ne.s32.totalorder %s119, %s121
      %p128 = scmp.eq.s32.totalorder %s22, 1
      %p129 = por %p127, %p128
      %p130 = scmp.ne.s32.totalorder %s121, %s122
      %p131 = scmp.eq.s32.totalorder %s22, 0
      %p132 = por %p130, %p131
      %p133 = scmp.ne.s32.totalorder %s121, %s122
      %p134 = scmp.eq.s32.totalorder %s23, 1
      %p135 = por %p133, %p134
      %p137 = scmp.ne.s32.totalorder %s122, %s136
      %p138 = scmp.eq.s32.totalorder %s23, 0
      %p139 = por %p137, %p138
      %s141 = sadd.s32 %s140, 1
      %p144 = scmp.eq.s32.totalorder %s17, 1
      %p145 = scmp.ne.s32.totalorder %s140, %s142
      %p146 = scmp.eq.s32.totalorder %s17, 0
      %p147 = por %p145, %p146
      %p148 = scmp.ne.s32.totalorder %s140, %s142
      %p149 = scmp.eq.s32.totalorder %s22, 1
      %p150 = por %p148, %p149
      %p151 = scmp.ne.s32.totalorder %s142, %s143
      %p152 = scmp.eq.s32.totalorder %s22, 0
      %p153 = por %p151, %p152
      %p154 = scmp.ne.s32.totalorder %s142, %s143
      %p155 = scmp.eq.s32.totalorder %s23, 1
      %p156 = por %p154, %p155
      %p158 = scmp.ne.s32.totalorder %s143, %s157
      %p159 = scmp.eq.s32.totalorder %s23, 0
      %p160 = por %p158, %p159
      %s162 = sadd.s32 %s161, 1
      %p165 = scmp.eq.s32.totalorder %s17, 1
      %p166 = scmp.ne.s32.totalorder %s161, %s163
      %p167 = scmp.eq.s32.totalorder %s17, 0
      %p168 = por %p166, %p167
      %p169 = scmp.ne.s32.totalorder %s161, %s163
      %p170 = scmp.eq.s32.totalorder %s22, 1
      %p171 = por %p169, %p170
      %p172 = scmp.ne.s32.totalorder %s163, %s164
      %p173 = scmp.eq.s32.totalorder %s22, 0
      %p174 = por %p172, %p173
      %p175 = scmp.ne.s32.totalorder %s163, %s164
      %p176 = scmp.eq.s32.totalorder %s23, 1
      %p177 = por %p175, %p176
      %p179 = scmp.ne.s32.totalorder %s164, %s178
      %p180 = scmp.eq.s32.totalorder %s23, 0
      %p181 = por %p179, %p180
      %s183 = sadd.s32 %s182, 1
      %p186 = scmp.eq.s32.totalorder %s17, 1
      %p187 = scmp.ne.s32.totalorder %s182, %s184
      %p188 = scmp.eq.s32.totalorder %s17, 0
      %p189 = por %p187, %p188
      %p190 = scmp.ne.s32.totalorder %s182, %s184
      %p191 = scmp.eq.s32.totalorder %s22, 1
      %p192 = por %p190, %p191
      %p193 = scmp.ne.s32.totalorder %s184, %s185
      %p194 = scmp.eq.s32.totalorder %s22, 0
      %p195 = por %p193, %p194
      %p196 = scmp.ne.s32.totalorder %s184, %s185
      %p197 = scmp.eq.s32.totalorder %s23, 1
      %p198 = por %p196, %p197
      %p200 = scmp.ne.s32.totalorder %s185, %s199
      %p201 = scmp.eq.s32.totalorder %s23, 0
      %p202 = por %p200, %p201
      %s203 = ssub.s32 %s17, %s24
      %p204 = scmp.eq.s32.totalorder %s203, 0
      %s206 = sadd.s32 %s205, 1
      %s207 = scalar_select %p204, %s205, %s206
      %p210 = pneg %p204
      %p211 = scmp.eq.s32.totalorder %s17, 1
      %p212 = por %p210, %p211
      %p213 = scmp.ne.s32.totalorder %s205, %s208
      %p214 = scmp.eq.s32.totalorder %s17, 0
      %p215 = por %p213, %p214
      %p216 = scmp.ne.s32.totalorder %s205, %s208
      %p217 = scmp.eq.s32.totalorder %s22, 1
      %p218 = por %p216, %p217
      %p219 = scmp.ne.s32.totalorder %s208, %s209
      %p220 = scmp.eq.s32.totalorder %s22, 0
      %p221 = por %p219, %p220
      %p222 = scmp.ne.s32.totalorder %s208, %s209
      %p223 = scmp.eq.s32.totalorder %s23, 1
      %p224 = por %p222, %p223
      %p226 = scmp.ne.s32.totalorder %s209, %s225
      %p227 = scmp.eq.s32.totalorder %s23, 0
      %p228 = por %p226, %p227
      %p229 = scmp.le.s32.totalorder 1, %s17
      %p230 = scmp.lt.s32.totalorder %s17, 3
      %p231 = pnand %p229, %p230
      %p232 = pneg %p231
      // Predicated region
      $region9: #{stb_forward.9} parent=5 // pred_check
        _
      $region10: #{stb_forward.9} parent=5 // pred_check_branch
        %234 = sbr.rel (%p231) target = $region12
      $region11: #{stb_forward.9} parent=5 // pred_region
        %s235 = ssub.s32 %s17, 1
        // Predicated region
        $region13: #{stb_forward.9} parent=11 // pred_check
          %p236 = pneg %p90
        $region14: #{stb_forward.9} parent=11 // pred_check_branch
          %238 = sbr.rel (%p236) target = $region16
        $region15: #{stb_forward.9} parent=11 // pred_region
          _
        $region16: #{stb_forward.9} parent=11 // pred_fallthru
          _
        // Predicated region
        $region17: #{stb_forward.9} parent=11 // pred_check
          %p239 = pneg %p111
        $region18: #{stb_forward.9} parent=11 // pred_check_branch
          %241 = sbr.rel (%p239) target = $region20
        $region19: #{stb_forward.9} parent=11 // pred_region
          _
        $region20: #{stb_forward.9} parent=11 // pred_fallthru
          _
        // Predicated region
        $region21: #{stb_forward.9} parent=11 // pred_check
          %p242 = pneg %p132
        $region22: #{stb_forward.9} parent=11 // pred_check_branch
          %244 = sbr.rel (%p242) target = $region24
        $region23: #{stb_forward.9} parent=11 // pred_region
          _
        $region24: #{stb_forward.9} parent=11 // pred_fallthru
          _
        // Predicated region
        $region25: #{stb_forward.9} parent=11 // pred_check
          %p245 = pneg %p153
        $region26: #{stb_forward.9} parent=11 // pred_check_branch
          %247 = sbr.rel (%p245) target = $region28
        $region27: #{stb_forward.9} parent=11 // pred_region
          _
        $region28: #{stb_forward.9} parent=11 // pred_fallthru
          _
        // Predicated region
        $region29: #{stb_forward.9} parent=11 // pred_check
          %p248 = pneg %p174
        $region30: #{stb_forward.9} parent=11 // pred_check_branch
          %250 = sbr.rel (%p248) target = $region32
        $region31: #{stb_forward.9} parent=11 // pred_region
          _
        $region32: #{stb_forward.9} parent=11 // pred_fallthru
          _
        // Predicated region
        $region33: #{stb_forward.9} parent=11 // pred_check
          %p251 = pneg %p195
        $region34: #{stb_forward.9} parent=11 // pred_check_branch
          %253 = sbr.rel (%p251) target = $region36
        $region35: #{stb_forward.9} parent=11 // pred_region
          _
        $region36: #{stb_forward.9} parent=11 // pred_fallthru
          _
      $region12: #{stb_forward.9} parent=5 // pred_fallthru
        _
      %p254 = scmp.lt.s32.totalorder %s17, 2
      // Predicated region
      $region37: #{stb_forward.9} parent=5 // pred_check
        %p255 = pneg %p254
      $region38: #{stb_forward.9} parent=5 // pred_check_branch
        %257 = sbr.rel (%p255) target = $region40
      $region39: #{stb_forward.9} parent=5 // pred_region
        // Predicated region
        $region41: #{stb_forward.9} parent=39 // pred_check
          %p258 = pneg %p37
        $region42: #{stb_forward.9} parent=39 // pred_check_branch
          %260 = sbr.rel (%p258) target = $region44
        $region43: #{stb_forward.9} parent=39 // pred_region
          %p261 = scmp.lt.s32.totalorder %s17, 1
          %s262 = scalar_select %p261, %s17, 1
          %s263 = smul.addr %s262, 8
          %s264 = scalar_lea.vmem %s0, %s263
        $region44: #{stb_forward.9} parent=39 // pred_fallthru
          _
        // Predicated region
        $region45: #{stb_forward.9} parent=39 // pred_check
          %p265 = pneg %p63
        $region46: #{stb_forward.9} parent=39 // pred_check_branch
          %267 = sbr.rel (%p265) target = $region48
        $region47: #{stb_forward.9} parent=39 // pred_region
          %p268 = scmp.lt.s32.totalorder %s17, 1
          %s269 = scalar_select %p268, %s17, 1
          %s270 = smul.addr %s269, 8
          %s271 = scalar_lea.vmem %s1, %s270
        $region48: #{stb_forward.9} parent=39 // pred_fallthru
          _
      $region40: #{stb_forward.9} parent=5 // pred_fallthru
        _
      %p272 = scmp.le.s32.totalorder 1, %s17
      %p273 = scmp.lt.s32.totalorder %s17, 3
      %p274 = pnand %p272, %p273
      %p275 = pneg %p274
      // Predicated region
      $region49: #{stb_forward.9} parent=5 // pred_check
        _
      $region50: #{stb_forward.9} parent=5 // pred_check_branch
        %277 = sbr.rel (%p274) target = $region52
      $region51: #{stb_forward.9} parent=5 // pred_region
        %s278 = ssub.s32 %s17, 1
        %p279 = scmp.lt.s32.totalorder %s22, 1
        %s280 = scalar_select %p279, %s22, 1
        %s281 = smul.addr %s280, 8
        %s282 = scalar_lea.vmem %s0, %s281
        %p283 = pneg %p43
        %p284 = pneg %p40
        %p285 = scmp.lt.s32.totalorder %s22, 1
        %s286 = scalar_select %p285, %s22, 1
        %s287 = smul.addr %s286, 8
        %s288 = scalar_lea.vmem %s1, %s287
        %p289 = pneg %p69
        %p290 = pneg %p66
        %p291 = pneg %p90
        %p292 = pneg %p87
        %p293 = pneg %p111
        %p294 = pneg %p108
        %p295 = pneg %p132
        %p296 = pneg %p129
        %p297 = pneg %p153
        %p298 = pneg %p150
        %p299 = pneg %p174
        %p300 = pneg %p171
        %p301 = pneg %p195
        %p302 = pneg %p192
        %p303 = pneg %p221
        %p304 = pneg %p218
        %s305 = sand.u32 %s208, 1
        %s306 = scalar_lea.sflag [#allocation3], %s305
        %s307 = sand.u32 %s208, 1
        %s308 = smul.addr %s307, 8
        %s309 = scalar_lea.vmem [#allocation2], %s308
        %p310 = scmp.lt.s32.totalorder %s22, 1
        %s311 = scalar_select %p310, %s22, 1
        %s312 = smul.addr %s311, 8
        %s313 = scalar_lea.vmem %s0, %s312
        %p314 = scmp.lt.s32.totalorder %s22, 1
        %s315 = scalar_select %p314, %s22, 1
        %s316 = smul.addr %s315, 8
        %s317 = scalar_lea.vmem %s1, %s316
        %v319 = vld [vmem:[%s313] sm:$0xff]
        %v320 = vpack.c.bf16 %v319, %v319
        %v321 = vld [vmem:[%s2] sm:$0xf]
        %v322 = vld [vmem:[%s2 + $0x4] sm:$0xf]
        %v323 = vld [vmem:[%s2 + $0x8] sm:$0xf]
        %v324 = vld [vmem:[%s2 + $0xc] sm:$0xf]
        %v325 = vld [vmem:[%s3] sm:$0x1]
        %v327 = vperm.slane %v325, 0
        %v333 = vunpack.c.l.b16 %v321
        %v334 = vunpack.c.l.b16 %v322
        %v335 = vunpack.c.l.b16 %v323
        %v336 = vunpack.c.l.b16 %v324
        %v337 = vpack.c.b16 %v334, %v333
        %v338 = vpack.c.b16 %v336, %v335
        %vm341 = vcmask 261120
        %v343 = vsel %vm341, %v320, 0
        %345 = vmatpush.bf16.msra.mxu0 0
        %346 = vmatpush.bf16.msra.mxu0 0
        %347 = vmatpush.bf16.msra.mxu0 0
        %348 = vmatpush.bf16.msra.mxu0 0
        %349 = vmatpush.bf16.msra.mxu0 0
        %350 = vmatpush.bf16.msra.mxu0 0
        %351 = vmatpush.bf16.msra.mxu0 %v338
        %352 = vmatpush.bf16.msra.mxu0 %v337
        %353 = vmatmul.bf16.gmra.mxu0 %v343
        %v354 = vpop.f32.mrf.mxu0
        %v355 = vadd.f32 %v327, %v354
        %v356 = vpop.f32.mrf.mxu0
        %357 = vdwg.mxu0
        %v358 = vmul.f32 %v355, 0.5
        %v359 = vmul.f32 %v355, %v355
        %v360 = vmul.f32 %v359, %v355
        %v361 = vmul.f32 %v360, 0.044715
        %v362 = vadd.f32 %v355, %v361
        %v363 = vmul.f32 %v362, 0.7978846
        %v364 = vtanh.pop %v363
        %v365 = vadd.f32 %v364, 1.0
        %v366 = vmul.f32 %v358, %v365
        %v367 = vpack.c.bf16 %v366, %v366
        %v368 = vld [vmem:[%s4] sm:$0xf]
        %v369 = vld [vmem:[%s4 + $0x4] sm:$0xf]
        %v370 = vld [vmem:[%s4 + $0x8] sm:$0xf]
        %v371 = vld [vmem:[%s4 + $0xc] sm:$0xf]
        %v372 = vld [vmem:[%s4 + $0x10] sm:$0xf]
        %v373 = vld [vmem:[%s4 + $0x14] sm:$0xf]
        %v374 = vld [vmem:[%s4 + $0x18] sm:$0xf]
        %v375 = vld [vmem:[%s4 + $0x1c] sm:$0xf]
        %v376 = vld [vmem:[%s5] sm:$0x1]
        %v378 = vperm.slane %v376, 0
        %v388 = vunpack.c.l.b16 %v368
        %v389 = vunpack.c.l.b16 %v369
        %v390 = vunpack.c.l.b16 %v370
        %v391 = vunpack.c.l.b16 %v371
        %v392 = vunpack.c.l.b16 %v372
        %v393 = vunpack.c.l.b16 %v373
        %v394 = vunpack.c.l.b16 %v374
        %v395 = vunpack.c.l.b16 %v375
        %v396 = vpack.c.b16 %v389, %v388
        %v397 = vpack.c.b16 %v391, %v390
        %v398 = vpack.c.b16 %v393, %v392
        %v399 = vpack.c.b16 %v395, %v394
        %vm404 = vcmask 523264
        %v406 = vsel %vm404, %v367, 0
        %408 = vmatpush.bf16.msra.mxu0 0
        %409 = vmatpush.bf16.msra.mxu0 0
        %410 = vmatpush.bf16.msra.mxu0 0
        %411 = vmatpush.bf16.msra.mxu0 0
        %412 = vmatpush.bf16.msra.mxu0 %v399
        %413 = vmatpush.bf16.msra.mxu0 %v398
        %414 = vmatpush.bf16.msra.mxu0 %v397
        %415 = vmatpush.bf16.msra.mxu0 %v396
        %416 = vmatmul.bf16.gmra.mxu0 %v406
        %v417 = vpop.f32.mrf.mxu0
        %v418 = vadd.f32 %v378, %v417
        %v419 = vpop.f32.mrf.mxu0
        %420 = vdwg.mxu0
        %v421 = vmul.f32 %v418, 0.5
        %v422 = vmul.f32 %v418, %v418
        %v423 = vmul.f32 %v422, %v418
        %v424 = vmul.f32 %v423, 0.044715
        %v425 = vadd.f32 %v418, %v424
        %v426 = vmul.f32 %v425, 0.7978846
        %v427 = vtanh.pop %v426
        %v428 = vadd.f32 %v427, 1.0
        %v429 = vmul.f32 %v421, %v428
        %v430 = vld [vmem:[%s317] sm:$0xff]
        %v431 = vadd.f32 %v429, %v430
        %v432 = vld [vmem:[%s6] sm:$0x1]
        %v433 = vld [vmem:[%s7] sm:$0x1]
        %v434 = vsel %vm341, %v431, 0.0
        %435 = vadd.xlane.f32.xlu0 %v434
        %v436 = vpop.xlane.xlu0 %435
        %v437 = vrcp.pop 32.0
        %v438 = vmul.f32 32.0, %v437
        %v439 = vsub.f32 1.0, %v438
        %v440 = vmul.f32 %v437, %v439
        %v441 = vadd.f32 %v437, %v440
        %vm442 = vweird.f32 %v437
        %v443 = vsel %vm442, %v437, %v441
        %v444 = vmul.f32 %v436, %v443
        %v445 = vsub.f32 %v431, %v444
        %v446 = vmul.f32 %v445, %v445
        %v447 = vsel %vm341, %v446, 0.0
        %448 = vadd.xlane.f32.xlu0 %v447
        %v449 = vpop.xlane.xlu0 %448
        %v450 = vmul.f32 %v449, %v443
        %v451 = vadd.f32 %v450, 1e-05
        %v452 = vrsqrt.pop %v451
        %v453 = vmul.f32 %v452, %v451
        %v454 = vmul.f32 %v453, %v452
        %v455 = vmul.f32 0.5, %v454
        %v456 = vsub.f32 1.5, %v455
        %v457 = vmul.f32 %v452, %v456
        %vm458 = vweird.f32 %v451
        %vm459 = vweird.f32 %v452
        %vm460 = vmor %vm458, %vm459
        %v461 = vsel %vm460, %v452, %v457
        %v462 = vmul.f32 %v445, %v461
        %v464 = vperm.slane %v432, 0
        %v466 = vmul.f32 %v462, %v464
        %v468 = vperm.slane %v433, 0
        %v470 = vadd.f32 %v466, %v468
        %471 = vst.msk [vmem:[%s309] sm:$0xff] %vm341, %v470
        %s472 = sand.u32 %s208, 1
        %s473 = scalar_lea.sflag [#allocation3], %s472
        %s474 = sand.u32 %s208, 1
        %s475 = smul.addr %s474, 8
        %s476 = scalar_lea.vmem [#allocation2], %s475
        // Predicated region
        $region53: #{stb_forward.9} parent=51 // pred_check
          %p477 = pneg %p218
        $region54: #{stb_forward.9} parent=51 // pred_check_branch
          %479 = sbr.rel (%p477) target = $region56
        $region55: #{stb_forward.9} parent=51 // pred_region
          %481 = vsyncadd %s473, 0
          %s482 = smul.addr %s22, 8
          %s483 = scalar_lea.hbm %s8, %s482
          %s485 = sshll.u32 %s476, 4
          %s486 = int_to_ptr.vmem [resolvable:$true] %s485
          %s487 = sshll.u32 %s483, 4
          %s488 = int_to_ptr.hbm [resolvable:$true] %s487
          %490 = dma.vmem_to_hbm [thread:$0]  %s486, 128, %s488, %s473
        $region56: #{stb_forward.9} parent=51 // pred_fallthru
          _
      $region52: #{stb_forward.9} parent=5 // pred_fallthru
        _
      %p491 = scmp.le.s32.totalorder 2, %s17
      // Predicated region
      $region57: #{stb_forward.9} parent=5 // pred_check
        %p492 = pneg %p491
      $region58: #{stb_forward.9} parent=5 // pred_check_branch
        %494 = sbr.rel (%p492) target = $region60
      $region59: #{stb_forward.9} parent=5 // pred_region
        %s495 = ssub.s32 %s17, 2
        // Predicated region
        $region61: #{stb_forward.9} parent=59 // pred_check
          %p496 = pneg %p224
        $region62: #{stb_forward.9} parent=59 // pred_check_branch
          %498 = sbr.rel (%p496) target = $region64
        $region63: #{stb_forward.9} parent=59 // pred_region
          %s499 = sand.u32 %s209, 1
          %s500 = scalar_lea.sflag [#allocation3], %s499
          %s501 = sand.u32 %s209, 1
          %s502 = smul.addr %s501, 8
          %s503 = scalar_lea.vmem [#allocation2], %s502
          %505 = dma.done %s500, 128
        $region64: #{stb_forward.9} parent=59 // pred_fallthru
          _
      $region60: #{stb_forward.9} parent=5 // pred_fallthru
        _
    $region6: #{stb_forward.9} parent=1 // loop_footer
      %s21 = sadd.s32 1, %s17
    $region7: #{stb_forward.9} parent=1 // loop_footer_branch
      %16 = sbr.rel target = $region3
    $region8: #{stb_forward.9} parent=1 // loop_exit
      _
    %506 = vsyncpa [#allocation3], 1
    %s507 = scalar_lea.sflag [#allocation3], 1
    %508 = vsyncpa %s507, 1

</llo_original>
